<compile_context>
chip_gen: v6e
topology: v6e:2x2x1
jax: 0.10.0
libtpu: 0.0.40
codegen_flags: <defaults>
</compile_context>

<pallas_src>
import functools

import jax
import jax.numpy as jnp
import numpy as np
from jax.experimental import pallas as pl
from jax.experimental.pallas import tpu as pltpu

_LN_EPS = 1e-5  # PyTorch nn.LayerNorm default


def _gelu(x):
    return jax.nn.gelu(x, approximate=True)


def _layer_norm(x, gamma, beta):
    # LayerNorm over the last (hidden) dim, biased variance (matches PyTorch).
    # xc bound once so only one full-width temporary stays live.
    mu = jnp.mean(x, axis=-1, keepdims=True)
    xc = x - mu
    var = jnp.mean(xc * xc, axis=-1, keepdims=True)
    return xc * jax.lax.rsqrt(var + _LN_EPS) * gamma + beta


def fire_mixer_kernel(num_s_tiles,
                      x_ref,        # (S, D)  f32   whole batch row (single-buffered)
                      tok_g_ref,    # (1, D)  f32
                      tok_b_ref,    # (1, D)  f32
                      w_tok_ref,    # (TS, S) bf16  rows of this token tile
                      b_tok_ref,    # (TS, 1) f32   bias per output token row
                      feat_g_ref,   # (1, D)  f32
                      feat_b_ref,   # (1, D)  f32
                      w_feat_ref,   # (D, D)  bf16  pre-transposed (in, out)
                      b_feat_ref,   # (1, D)  f32
                      o_ref,        # (TS, D) out dtype
                      xn_scratch):  # (S, D)  bf16  cached token-norm of this row
    ts = o_ref.shape[0]
    s_idx = pl.program_id(1)

    # ---- token-branch LayerNorm: computed once per batch row ---------------
    # Chunked over (TS, D) blocks so LN temporaries stay tile-sized.
    @pl.when(s_idx == 0)
    def _():
        g = tok_g_ref[...]
        b = tok_b_ref[...]

        @pl.loop(0, num_s_tiles)
        def _(t):
            r0 = pl.multiple_of(t * ts, ts)
            blk = x_ref[pl.ds(r0, ts), :]                       # (TS, D) f32
            xn_scratch[pl.ds(r0, ts), :] = _layer_norm(blk, g, b).astype(
                jnp.bfloat16)

    # ---- token branch: (TS, S) x (S, D) on the MXU --------------------------
    row0 = pl.multiple_of(s_idx * ts, ts)
    residual = x_ref[pl.ds(row0, ts), :]                         # (TS, D) f32

    y = jnp.dot(w_tok_ref[...], xn_scratch[...],
                preferred_element_type=jnp.float32)              # (TS, D) f32
    y = y + b_tok_ref[...]
    x1 = _gelu(y + residual)                                     # f32

    # ---- feature branch (row-wise, tile-local) ------------------------------
    xn2 = _layer_norm(x1, feat_g_ref[...], feat_b_ref[...])
    # DropPath -> identity (eval).
    y2 = jnp.dot(xn2.astype(jnp.bfloat16), w_feat_ref[...],
                 preferred_element_type=jnp.float32) + b_feat_ref[...]
    o_ref[...] = _gelu(y2 + x1).astype(o_ref.dtype)


@functools.lru_cache(maxsize=None)
def _pipeline_mode_supported(buffer_count: int) -> bool:
    """One-time capability probe for pl.Buffered(buffer_count)."""
    def _probe(x_ref, o_ref):
        o_ref[...] = x_ref[...] + 1.0

    try:
        fn = pl.pallas_call(
            _probe,
            out_shape=jax.ShapeDtypeStruct((32, 128), jnp.float32),
            grid=(4,),
            in_specs=[pl.BlockSpec((8, 128), lambda i: (i, 0),
                                   pipeline_mode=pl.Buffered(buffer_count))],
            out_specs=pl.BlockSpec((8, 128), lambda i: (i, 0)),
        )
        jax.jit(fn).lower(
            jax.ShapeDtypeStruct((32, 128), jnp.float32)).compile()
        return True
    except Exception:
        return False


def _device_kind() -> str:
    try:
        return jax.devices()[0].device_kind.lower()
    except Exception:
        return ""


def _pick_token_tile(S):
    # v6e/v7x: 2x256x256 MXU -> TS=256 when possible. v2-v5: 128-wide MXU,
    # single vst slot -> cap at 128.
    kind = _device_kind()
    max_ts = 128 if any(v in kind for v in ("v2", "v3", "v4", "v5")) else 256
    for ts in (256, 128, 64, 32, 16, 8):
        if ts <= max_ts and S % ts == 0:
            return ts
    return S


def _vmem_limit_bytes(requested):
    # Generation-aware clamp: leave headroom for Mosaic internal scratch and
    # spills on 64 MiB parts (v7x); allow more on 128 MiB parts (v5e/v6e).
    try:
        cap = int(pltpu.get_tpu_info().vmem_capacity_bytes)
    except Exception:
        cap = 64 << 20  # conservative fallback
    if cap <= (64 << 20):
        clamp = 48 << 20
    else:
        clamp = min(100 << 20, cap - (28 << 20))
    return int(min(clamp, max(requested, 16 << 20)))


def _fire_mixer_call(x, params, ts, *, out_dtype):
    B, S, D = x.shape
    tok_g, tok_b, w_tok, b_tok, feat_g, feat_b, w_feat, b_feat = params
    num_s_tiles = S // ts

    # Weights go to the MXU as bf16 (activations cast in-kernel).
    w_tok_bf = w_tok.astype(jnp.bfloat16)
    w_feat_bf = w_feat.astype(jnp.bfloat16)

    single_buffer = _pipeline_mode_supported(1)
    deep_wtok = _pipeline_mode_supported(3)
    single_kwargs = dict(pipeline_mode=pl.Buffered(1)) if single_buffer else {}
    wtok_kwargs = dict(pipeline_mode=pl.Buffered(3)) if deep_wtok else {}

    def const_spec(shape):
        # Parameters whose block index never changes: double-buffering them
        # only burns VMEM.
        return pl.BlockSpec(shape, lambda b, s: (0, 0), **single_kwargs)

    # Full f32 row: block index only changes on the b axis -> single-buffer.
    x_spec = pl.BlockSpec((pl.Squeezed(), S, D), lambda b, s: (b, 0, 0),
                          **single_kwargs)
    out_spec = pl.BlockSpec((pl.Squeezed(), ts, D), lambda b, s: (b, s, 0))
    # w_tok is the only stream whose block changes every inner step -> 3-deep.
    w_tok_spec = pl.BlockSpec((ts, S), lambda b, s: (s, 0), **wtok_kwargs)
    b_tok_spec = pl.BlockSpec((ts, 1), lambda b, s: (s, 0))

    # VMEM budget from the actual block sizes (lane/sublane padded), with
    # headroom, then generation-aware clamp.
    lane = 128
    n_x = 1 if single_buffer else 2
    n_c = 1 if single_buffer else 2
    n_w = 3 if deep_wtok else 2
    est = (
        n_x * S * D * 4                      # f32 x row
        + S * D * 2                          # bf16 xn scratch
        + n_w * ts * S * 2                   # w_tok tiles
        + 2 * ts * lane * 4                  # b_tok tiles (lane padded)
        + n_c * (D * D * 2                   # w_feat
                 + 5 * 8 * max(D, lane) * 4)  # five (1, D) consts, sublane padded
        + 2 * ts * D * 4                     # output tiles
        + 3 * ts * D * 4                     # LN / GELU tile temporaries
    )
    vmem_limit = _vmem_limit_bytes(2 * est)

    kernel = functools.partial(fire_mixer_kernel, num_s_tiles)

    return pl.pallas_call(
        kernel,
        out_shape=jax.ShapeDtypeStruct((B, S, D), out_dtype),
        grid=(B, num_s_tiles),
        in_specs=[
            x_spec,
            const_spec((1, D)),   # token_norm gamma
            const_spec((1, D)),   # token_norm beta
            w_tok_spec,           # token mixer weight tile (bf16)
            b_tok_spec,           # token mixer bias (per output token row)
            const_spec((1, D)),   # feature_norm gamma
            const_spec((1, D)),   # feature_norm beta
            const_spec((D, D)),   # feature mixer weight (bf16, (in, out))
            const_spec((1, D)),   # feature mixer bias
        ],
        out_specs=out_spec,
        scratch_shapes=[pltpu.VMEM((S, D), jnp.bfloat16)],  # cached token LN
        compiler_params=pltpu.CompilerParams(
            # Inner axis must be "arbitrary": the xn scratch is written at
            # s == 0 and reused by the later token tiles of the same row.
            dimension_semantics=("parallel", "arbitrary"),
            vmem_limit_bytes=vmem_limit,
        ),
    )(x, tok_g, tok_b, w_tok_bf, b_tok, feat_g, feat_b, w_feat_bf, b_feat)


def fire_mixer_layer(x, params, *, token_tile=None, out_dtype=None):
    """x: (B, S, D) float32.

    params = (tok_g (1,D), tok_b (1,D), w_tok (S,S), b_tok (S,1),
              feat_g (1,D), feat_b (1,D), w_feat (D,D) pre-transposed (in,out),
              b_feat (1,D)).
    """
    _, S, _ = x.shape
    ts = token_tile if token_tile is not None else _pick_token_tile(S)
    assert S % ts == 0, "token tile must divide the sequence length"
    out_dtype = x.dtype if out_dtype is None else out_dtype
    return _fire_mixer_call(x, params, ts, out_dtype=out_dtype)


def fire_mixer_layer_ref(x, params):
    """Pure-JAX f32 reference (same math as the PyTorch forward)."""
    tok_g, tok_b, w_tok, b_tok, feat_g, feat_b, w_feat, b_feat = params
    residual = x
    xn = _layer_norm(x, tok_g, tok_b)
    y = jnp.einsum('st,btd->bsd', w_tok, xn) + b_tok[None, :, :]
    x = _gelu(y + residual)
    residual = x
    xn = _layer_norm(x, feat_g, feat_b)
    y = xn @ w_feat + b_feat          # DropPath -> identity
    return _gelu(y + residual)


if __name__ == "__main__":
    # Small but lane-dense demo shapes (D multiple of 128, S a multiple of the
    # 256 token tile so the cached-LN multi-tile path is exercised).
    B, S, D = 2, 512, 128
    keys = jax.random.split(jax.random.PRNGKey(0), 9)

    x = jax.random.normal(keys[0], (B, S, D), jnp.float32)

    # Non-trivial LayerNorm affine params so the gamma/beta paths are exercised.
    tok_g = 1.0 + 0.1 * jax.random.normal(keys[1], (1, D), jnp.float32)
    tok_b = 0.1 * jax.random.normal(keys[2], (1, D), jnp.float32)
    w_tok = 0.02 * jax.random.normal(keys[3], (S, S), jnp.float32)
    b_tok = 0.02 * jax.random.normal(keys[4], (S, 1), jnp.float32)
    feat_g = 1.0 + 0.1 * jax.random.normal(keys[5], (1, D), jnp.float32)
    feat_b = 0.1 * jax.random.normal(keys[6], (1, D), jnp.float32)
    # stored pre-transposed (in, out) so the kernel does xn @ w_feat directly
    w_feat = 0.02 * jax.random.normal(keys[7], (D, D), jnp.float32)
    b_feat = 0.02 * jax.random.normal(keys[8], (1, D), jnp.float32)

    params = (tok_g, tok_b, w_tok, b_tok, feat_g, feat_b, w_feat, b_feat)

    out = jax.block_until_ready(fire_mixer_layer(x, params))
    ref = jax.block_until_ready(fire_mixer_layer_ref(x, params))

    # Kernel uses bf16 matmul operands (f32 accumulation); reference is pure
    # f32 -> compare with a correspondingly loose tolerance.
    np.testing.assert_allclose(np.asarray(out), np.asarray(ref),
                               rtol=2e-2, atol=2e-2)

    print("KERNEL_OK")
</pallas_src>

<mosaic_0001>
module attributes {stable_mosaic.version = 11 : i64} {
  func.func @fire_mixer_kernel(%arg0: i32, %arg1: i32, %arg2: memref<1x512x128xf32, #tpu.memory_space<vmem>>, %arg3: memref<1x128xf32, #tpu.memory_space<vmem>>, %arg4: memref<1x128xf32, #tpu.memory_space<vmem>>, %arg5: memref<256x512xbf16, #tpu.memory_space<vmem>>, %arg6: memref<256x1xf32, #tpu.memory_space<vmem>>, %arg7: memref<1x128xf32, #tpu.memory_space<vmem>>, %arg8: memref<1x128xf32, #tpu.memory_space<vmem>>, %arg9: memref<128x128xbf16, #tpu.memory_space<vmem>>, %arg10: memref<1x128xf32, #tpu.memory_space<vmem>>, %arg11: memref<1x256x128xf32, #tpu.memory_space<vmem>>, %arg12: memref<512x128xbf16, #tpu.memory_space<vmem>>) attributes {dimension_semantics = [#tpu.dimension_semantics<parallel>, #tpu.dimension_semantics<arbitrary>], iteration_bounds = array<i64: 2, 2>, scalar_prefetch = 0 : i64, scratch_operands = 1 : i64, tpu.core_type = #tpu.core_type<tc>, window_params = [{transform_indices = @transform_0, window_bounds = array<i64: 1, 512, 128>}, {pipeline_mode = #tpu.pipeline_mode<synchronous>, transform_indices = @transform_1, window_bounds = array<i64: 1, 128>}, {pipeline_mode = #tpu.pipeline_mode<synchronous>, transform_indices = @transform_2, window_bounds = array<i64: 1, 128>}, {transform_indices = @transform_3, window_bounds = array<i64: 256, 512>}, {transform_indices = @transform_4, window_bounds = array<i64: 256, 1>}, {pipeline_mode = #tpu.pipeline_mode<synchronous>, transform_indices = @transform_5, window_bounds = array<i64: 1, 128>}, {pipeline_mode = #tpu.pipeline_mode<synchronous>, transform_indices = @transform_6, window_bounds = array<i64: 1, 128>}, {pipeline_mode = #tpu.pipeline_mode<synchronous>, transform_indices = @transform_7, window_bounds = array<i64: 128, 128>}, {pipeline_mode = #tpu.pipeline_mode<synchronous>, transform_indices = @transform_8, window_bounds = array<i64: 1, 128>}, {transform_indices = @transform_9, window_bounds = array<i64: 1, 256, 128>}]} {
    %c0_i32 = arith.constant 0 : i32
    %0 = arith.cmpi eq, %arg1, %c0_i32 : i32
    %1 = arith.extui %0 : i1 to i32
    %c0_i32_0 = arith.constant 0 : i32
    %2 = arith.cmpi ne, %1, %c0_i32_0 : i32
    scf.if %2 {
      %c0_33 = arith.constant 0 : index
      %c0_34 = arith.constant 0 : index
      %73 = vector.load %arg3[%c0_33, %c0_34] : memref<1x128xf32, #tpu.memory_space<vmem>>, vector<1x128xf32>
      %c0_35 = arith.constant 0 : index
      %c0_36 = arith.constant 0 : index
      %74 = vector.load %arg4[%c0_35, %c0_36] : memref<1x128xf32, #tpu.memory_space<vmem>>, vector<1x128xf32>
      %c0_i32_37 = arith.constant 0 : i32
      %c2_i32 = arith.constant 2 : i32
      %75 = arith.addi %c0_i32_37, %c2_i32 : i32
      %c1_i32 = arith.constant 1 : i32
      scf.for %arg13 = %c0_i32_37 to %75 step %c1_i32  : i32 {
        %c1_i32_39 = arith.constant 1 : i32
        %76 = arith.muli %arg13, %c1_i32_39 : i32
        %c0_i32_40 = arith.constant 0 : i32
        %77 = arith.addi %c0_i32_40, %76 : i32
        %c256_i32_41 = arith.constant 256 : i32
        %78 = arith.muli %77, %c256_i32_41 : i32
        %79 = tpu.assume_multiple %78, 256 : i32
        %c0_42 = arith.constant 0 : index
        %80 = arith.index_cast %79 : i32 to index
        %c0_43 = arith.constant 0 : index
        %81 = vector.load %arg2[%c0_42, %80, %c0_43] : memref<1x512x128xf32, #tpu.memory_space<vmem>>, vector<1x256x128xf32>
        %82 = vector.shape_cast %81 : vector<1x256x128xf32> to vector<256x128xf32>
        %cst_44 = arith.constant dense<0.000000e+00> : vector<256xf32>
        %83 = vector.multi_reduction <add>, %82, %cst_44 [1] : vector<256x128xf32> to vector<256xf32>
        %84 = vector.shape_cast %83 : vector<256xf32> to vector<256x1xf32>
        %cst_45 = arith.constant 1.280000e+02 : f32
        %85 = vector.broadcast %cst_45 : f32 to vector<256x1xf32>
        %86 = arith.divf %84, %85 : vector<256x1xf32>
        %87 = vector.broadcast %86 : vector<256x1xf32> to vector<256x128xf32>
        %88 = arith.subf %82, %87 : vector<256x128xf32>
        %89 = arith.mulf %88, %88 : vector<256x128xf32>
        %cst_46 = arith.constant dense<0.000000e+00> : vector<256xf32>
        %90 = vector.multi_reduction <add>, %89, %cst_46 [1] : vector<256x128xf32> to vector<256xf32>
        %91 = vector.shape_cast %90 : vector<256xf32> to vector<256x1xf32>
        %cst_47 = arith.constant 1.280000e+02 : f32
        %92 = vector.broadcast %cst_47 : f32 to vector<256x1xf32>
        %93 = arith.divf %91, %92 : vector<256x1xf32>
        %cst_48 = arith.constant 9.99999974E-6 : f32
        %94 = vector.broadcast %cst_48 : f32 to vector<256x1xf32>
        %95 = arith.addf %93, %94 : vector<256x1xf32>
        %96 = math.rsqrt %95 : vector<256x1xf32>
        %97 = vector.broadcast %96 : vector<256x1xf32> to vector<256x128xf32>
        %98 = arith.mulf %88, %97 : vector<256x128xf32>
        %99 = vector.broadcast %73 : vector<1x128xf32> to vector<256x128xf32>
        %100 = arith.mulf %98, %99 : vector<256x128xf32>
        %101 = vector.broadcast %74 : vector<1x128xf32> to vector<256x128xf32>
        %102 = arith.addf %100, %101 : vector<256x128xf32>
        %103 = arith.truncf %102 : vector<256x128xf32> to vector<256x128xbf16>
        %104 = arith.index_cast %79 : i32 to index
        %c0_49 = arith.constant 0 : index
        %105 = vector.load %arg12[%104, %c0_49] : memref<512x128xbf16, #tpu.memory_space<vmem>>, vector<256x128xbf16>
        tpu.vector_store %arg12[%104, %c0_49], %103 {strides = array<i32>} : memref<512x128xbf16, #tpu.memory_space<vmem>>, vector<256x128xbf16>,
      }
      %c2_i32_38 = arith.constant 2 : i32
    } else {
    }
    %c256_i32 = arith.constant 256 : i32
    %3 = arith.muli %arg1, %c256_i32 : i32
    %4 = tpu.assume_multiple %3, 256 : i32
    %c0 = arith.constant 0 : index
    %5 = arith.index_cast %4 : i32 to index
    %c0_1 = arith.constant 0 : index
    %6 = vector.load %arg2[%c0, %5, %c0_1] : memref<1x512x128xf32, #tpu.memory_space<vmem>>, vector<1x256x128xf32>
    %7 = vector.shape_cast %6 : vector<1x256x128xf32> to vector<256x128xf32>
    %c0_2 = arith.constant 0 : index
    %c0_3 = arith.constant 0 : index
    %8 = vector.load %arg5[%c0_2, %c0_3] : memref<256x512xbf16, #tpu.memory_space<vmem>>, vector<256x512xbf16>
    %c0_4 = arith.constant 0 : index
    %c0_5 = arith.constant 0 : index
    %9 = vector.load %arg12[%c0_4, %c0_5] : memref<512x128xbf16, #tpu.memory_space<vmem>>, vector<512x128xbf16>
    %cst = arith.constant dense<0.000000e+00> : vector<256x128xf32>
    %10 = tpu.matmul %8, %9, %cst {dimension_numbers = #tpu.dot_dimension_numbers<[1], [0], [0], [1], [0, 0, 1, 1], [], []>} : vector<256x512xbf16>, vector<512x128xbf16>, vector<256x128xf32> -> vector<256x128xf32>
    %c0_6 = arith.constant 0 : index
    %c0_7 = arith.constant 0 : index
    %11 = vector.load %arg6[%c0_6, %c0_7] : memref<256x1xf32, #tpu.memory_space<vmem>>, vector<256x1xf32>
    %12 = vector.broadcast %11 : vector<256x1xf32> to vector<256x128xf32>
    %13 = arith.addf %10, %12 : vector<256x128xf32>
    %14 = arith.addf %13, %7 : vector<256x128xf32>
    %15 = arith.mulf %14, %14 : vector<256x128xf32>
    %16 = arith.mulf %14, %15 : vector<256x128xf32>
    %cst_8 = arith.constant 4.471500e-02 : f32
    %17 = vector.broadcast %cst_8 : f32 to vector<256x128xf32>
    %18 = arith.mulf %17, %16 : vector<256x128xf32>
    %19 = arith.addf %14, %18 : vector<256x128xf32>
    %cst_9 = arith.constant 0.797884583 : f32
    %20 = vector.broadcast %cst_9 : f32 to vector<256x128xf32>
    %21 = arith.mulf %20, %19 : vector<256x128xf32>
    %22 = math.tanh %21 : vector<256x128xf32>
    %cst_10 = arith.constant 1.000000e+00 : f32
    %23 = vector.broadcast %cst_10 : f32 to vector<256x128xf32>
    %24 = arith.addf %23, %22 : vector<256x128xf32>
    %cst_11 = arith.constant 5.000000e-01 : f32
    %25 = vector.broadcast %cst_11 : f32 to vector<256x128xf32>
    %26 = arith.mulf %25, %24 : vector<256x128xf32>
    %27 = arith.mulf %14, %26 : vector<256x128xf32>
    %c0_12 = arith.constant 0 : index
    %c0_13 = arith.constant 0 : index
    %28 = vector.load %arg7[%c0_12, %c0_13] : memref<1x128xf32, #tpu.memory_space<vmem>>, vector<1x128xf32>
    %c0_14 = arith.constant 0 : index
    %c0_15 = arith.constant 0 : index
    %29 = vector.load %arg8[%c0_14, %c0_15] : memref<1x128xf32, #tpu.memory_space<vmem>>, vector<1x128xf32>
    %cst_16 = arith.constant dense<0.000000e+00> : vector<256xf32>
    %30 = vector.multi_reduction <add>, %27, %cst_16 [1] : vector<256x128xf32> to vector<256xf32>
    %31 = vector.shape_cast %30 : vector<256xf32> to vector<256x1xf32>
    %cst_17 = arith.constant 1.280000e+02 : f32
    %32 = vector.broadcast %cst_17 : f32 to vector<256x1xf32>
    %33 = arith.divf %31, %32 : vector<256x1xf32>
    %34 = vector.broadcast %33 : vector<256x1xf32> to vector<256x128xf32>
    %35 = arith.subf %27, %34 : vector<256x128xf32>
    %36 = arith.mulf %35, %35 : vector<256x128xf32>
    %cst_18 = arith.constant dense<0.000000e+00> : vector<256xf32>
    %37 = vector.multi_reduction <add>, %36, %cst_18 [1] : vector<256x128xf32> to vector<256xf32>
    %38 = vector.shape_cast %37 : vector<256xf32> to vector<256x1xf32>
    %cst_19 = arith.constant 1.280000e+02 : f32
    %39 = vector.broadcast %cst_19 : f32 to vector<256x1xf32>
    %40 = arith.divf %38, %39 : vector<256x1xf32>
    %cst_20 = arith.constant 9.99999974E-6 : f32
    %41 = vector.broadcast %cst_20 : f32 to vector<256x1xf32>
    %42 = arith.addf %40, %41 : vector<256x1xf32>
    %43 = math.rsqrt %42 : vector<256x1xf32>
    %44 = vector.broadcast %43 : vector<256x1xf32> to vector<256x128xf32>
    %45 = arith.mulf %35, %44 : vector<256x128xf32>
    %46 = vector.broadcast %28 : vector<1x128xf32> to vector<256x128xf32>
    %47 = arith.mulf %45, %46 : vector<256x128xf32>
    %48 = vector.broadcast %29 : vector<1x128xf32> to vector<256x128xf32>
    %49 = arith.addf %47, %48 : vector<256x128xf32>
    %50 = arith.truncf %49 : vector<256x128xf32> to vector<256x128xbf16>
    %c0_21 = arith.constant 0 : index
    %c0_22 = arith.constant 0 : index
    %51 = vector.load %arg9[%c0_21, %c0_22] : memref<128x128xbf16, #tpu.memory_space<vmem>>, vector<128x128xbf16>
    %cst_23 = arith.constant dense<0.000000e+00> : vector<256x128xf32>
    %52 = tpu.matmul %50, %51, %cst_23 {dimension_numbers = #tpu.dot_dimension_numbers<[1], [0], [0], [1], [0, 0, 1, 1], [], []>} : vector<256x128xbf16>, vector<128x128xbf16>, vector<256x128xf32> -> vector<256x128xf32>
    %c0_24 = arith.constant 0 : index
    %c0_25 = arith.constant 0 : index
    %53 = vector.load %arg10[%c0_24, %c0_25] : memref<1x128xf32, #tpu.memory_space<vmem>>, vector<1x128xf32>
    %54 = vector.broadcast %53 : vector<1x128xf32> to vector<256x128xf32>
    %55 = arith.addf %52, %54 : vector<256x128xf32>
    %56 = arith.addf %55, %27 : vector<256x128xf32>
    %57 = arith.mulf %56, %56 : vector<256x128xf32>
    %58 = arith.mulf %56, %57 : vector<256x128xf32>
    %cst_26 = arith.constant 4.471500e-02 : f32
    %59 = vector.broadcast %cst_26 : f32 to vector<256x128xf32>
    %60 = arith.mulf %59, %58 : vector<256x128xf32>
    %61 = arith.addf %56, %60 : vector<256x128xf32>
    %cst_27 = arith.constant 0.797884583 : f32
    %62 = vector.broadcast %cst_27 : f32 to vector<256x128xf32>
    %63 = arith.mulf %62, %61 : vector<256x128xf32>
    %64 = math.tanh %63 : vector<256x128xf32>
    %cst_28 = arith.constant 1.000000e+00 : f32
    %65 = vector.broadcast %cst_28 : f32 to vector<256x128xf32>
    %66 = arith.addf %65, %64 : vector<256x128xf32>
    %cst_29 = arith.constant 5.000000e-01 : f32
    %67 = vector.broadcast %cst_29 : f32 to vector<256x128xf32>
    %68 = arith.mulf %67, %66 : vector<256x128xf32>
    %69 = arith.mulf %56, %68 : vector<256x128xf32>
    %c0_30 = arith.constant 0 : index
    %c0_31 = arith.constant 0 : index
    %c0_32 = arith.constant 0 : index
    %70 = vector.load %arg11[%c0_30, %c0_31, %c0_32] : memref<1x256x128xf32, #tpu.memory_space<vmem>>, vector<1x256x128xf32>
    %71 = vector.shape_cast %70 : vector<1x256x128xf32> to vector<256x128xf32>
    %72 = vector.shape_cast %69 : vector<256x128xf32> to vector<1x256x128xf32>
    tpu.vector_store %arg11[%c0_30, %c0_31, %c0_32], %72 {strides = array<i32>} : memref<1x256x128xf32, #tpu.memory_space<vmem>>, vector<1x256x128xf32>,
    return
  }
  func.func @transform_0(%arg0: i32, %arg1: i32) -> (i32, i32, i32) {
    %c0_i32 = arith.constant 0 : i32
    %c0_i32_0 = arith.constant 0 : i32
    %c0_i32_1 = arith.constant 0 : i32
    return %arg0, %c0_i32, %c0_i32_0 : i32, i32, i32
  }
  func.func @transform_1(%arg0: i32, %arg1: i32) -> (i32, i32) {
    %c0_i32 = arith.constant 0 : i32
    %c0_i32_0 = arith.constant 0 : i32
    %c0_i32_1 = arith.constant 0 : i32
    return %c0_i32, %c0_i32_0 : i32, i32
  }
  func.func @transform_2(%arg0: i32, %arg1: i32) -> (i32, i32) {
    %c0_i32 = arith.constant 0 : i32
    %c0_i32_0 = arith.constant 0 : i32
    %c0_i32_1 = arith.constant 0 : i32
    return %c0_i32, %c0_i32_0 : i32, i32
  }
  func.func @transform_3(%arg0: i32, %arg1: i32) -> (i32, i32) {
    %c0_i32 = arith.constant 0 : i32
    %c0_i32_0 = arith.constant 0 : i32
    return %arg1, %c0_i32 : i32, i32
  }
  func.func @transform_4(%arg0: i32, %arg1: i32) -> (i32, i32) {
    %c0_i32 = arith.constant 0 : i32
    %c0_i32_0 = arith.constant 0 : i32
    return %arg1, %c0_i32 : i32, i32
  }
  func.func @transform_5(%arg0: i32, %arg1: i32) -> (i32, i32) {
    %c0_i32 = arith.constant 0 : i32
    %c0_i32_0 = arith.constant 0 : i32
    %c0_i32_1 = arith.constant 0 : i32
    return %c0_i32, %c0_i32_0 : i32, i32
  }
  func.func @transform_6(%arg0: i32, %arg1: i32) -> (i32, i32) {
    %c0_i32 = arith.constant 0 : i32
    %c0_i32_0 = arith.constant 0 : i32
    %c0_i32_1 = arith.constant 0 : i32
    return %c0_i32, %c0_i32_0 : i32, i32
  }
  func.func @transform_7(%arg0: i32, %arg1: i32) -> (i32, i32) {
    %c0_i32 = arith.constant 0 : i32
    %c0_i32_0 = arith.constant 0 : i32
    %c0_i32_1 = arith.constant 0 : i32
    return %c0_i32, %c0_i32_0 : i32, i32
  }
  func.func @transform_8(%arg0: i32, %arg1: i32) -> (i32, i32) {
    %c0_i32 = arith.constant 0 : i32
    %c0_i32_0 = arith.constant 0 : i32
    %c0_i32_1 = arith.constant 0 : i32
    return %c0_i32, %c0_i32_0 : i32, i32
  }
  func.func @transform_9(%arg0: i32, %arg1: i32) -> (i32, i32, i32) {
    %c0_i32 = arith.constant 0 : i32
    %c0_i32_0 = arith.constant 0 : i32
    return %arg0, %arg1, %c0_i32 : i32, i32, i32
  }
}

</mosaic_0001>

<llo_original>
// kernel: tpu_custom_call.1
$region0: #{tpu_custom_call.1}
  #allocation0 [shape = 'u32[]', space=smem, size = 0x4, offset = 0x4, fixed_abs, tag = 'smem constant byte address 0x4 - core index']
  #allocation1 [shape = 'u32[144,128]{1,0:T(1,128)}', space=vmem, size = 0x12000, scoped, tag = 'internal scratch']
  #allocation2 [shape = 'bf16[512,128]{1,0:T(8,128)(2,1)}', space=vmem, size = 0x20000, scoped, tag = 'scratch operand']
  %s0 = inlined_call_operand.hbm [shape: f32[2,512,128], index: 0, kind: input, shape index: {}]
  %s1 = inlined_call_operand.vmem [shape: f32[1,128], index: 1, kind: input, shape index: {}]
  %s2 = inlined_call_operand.vmem [shape: f32[1,128], index: 2, kind: input, shape index: {}]
  %s3 = inlined_call_operand.hbm [shape: bf16[512,512], index: 3, kind: input, shape index: {}]
  %s4 = inlined_call_operand.vmem [shape: f32[512,1], index: 4, kind: input, shape index: {}]
  %s5 = inlined_call_operand.vmem [shape: f32[1,128], index: 5, kind: input, shape index: {}]
  %s6 = inlined_call_operand.vmem [shape: f32[1,128], index: 6, kind: input, shape index: {}]
  %s7 = inlined_call_operand.vmem [shape: bf16[128,128], index: 7, kind: input, shape index: {}]
  %s8 = inlined_call_operand.vmem [shape: f32[1,128], index: 8, kind: input, shape index: {}]
  %s9 = inlined_call_operand.hbm [shape: f32[2,512,128], index: 9, kind: output, shape index: {}]
  %s10 = sld [smem:[#allocation0]]
  $region88: #{tpu_custom_call.1} parent=0
    _
  %s12 = ssub.s32 1, %s10
  %s13 = scalar_select 0, %s12, %s10
  $region1: #{tpu_custom_call.1} parent=0
    #allocation3 [shape = 'u8[524288]{0}', space=vmem, size = 0x80000, scoped, tag = 'input window, operand 0']
    #allocation4 [shape = 's32[2]{0}', space=sflag, size = 0x8, scoped, tag = 'scoped memory for tpu_custom_call.1']
    #allocation5 [shape = 's32[2]{0}', space=sflag, size = 0x8, scoped, tag = 'scoped memory for tpu_custom_call.1']
    #allocation6 [shape = 'u8[524288]{0}', space=vmem, size = 0x80000, scoped, tag = 'input window, operand 3']
    #allocation7 [shape = 's32[2]{0}', space=sflag, size = 0x8, scoped, tag = 'scoped memory for tpu_custom_call.1']
    #allocation8 [shape = 'u8[262144]{0}', space=vmem, size = 0x40000, scoped, tag = 'output window, operand 0']
    %14 = vsyncpa [#allocation4], 0
    %s15 = scalar_lea.sflag [#allocation4], 1
    %16 = vsyncpa %s15, 0
    %17 = vsyncpa [#allocation7], 0
    %s18 = scalar_lea.sflag [#allocation7], 1
    %19 = vsyncpa %s18, 0
    %20 = vsyncpa [#allocation5], 0
    %s21 = scalar_lea.sflag [#allocation5], 1
    %22 = vsyncpa %s21, 0
    loop: start=0, step=1, limit=6
    $region2: #{tpu_custom_call.1} parent=1 // loop_pre_header
      _
    $region3: #{tpu_custom_call.1} parent=1 // loop_header
      %s24 = sphi 0, %s28
      %p25 = scmp.ge.s32.totalorder %s24, 6
      %s31 = sphi 0, %s43
      %s32 = sphi 0, %s39
      %s33 = sphi 0, %s31
      %s34 = sphi 0, %s32
      %s35 = sphi 0, %s33
      %s36 = sphi 0, %s34
      %s46 = sphi 0, %s48
      %s49 = sphi 0, %s46
      %s50 = sphi 0, %s49
      %s66 = sphi 0, %s50
      %s70 = sphi 0, %s70
      %s72 = sphi 0, %s70
      %s73 = sphi 0, %s72
      %s87 = sphi 0, %s73
      %s91 = sphi 0, %s91
      %s93 = sphi 0, %s91
      %s94 = sphi 0, %s93
      %s108 = sphi 0, %s94
      %s114 = sphi 0, %s116
      %s117 = sphi 0, %s114
      %s118 = sphi 0, %s117
      %s134 = sphi 0, %s118
      %s140 = sphi 0, %s142
      %s143 = sphi 0, %s140
      %s144 = sphi 0, %s143
      %s160 = sphi 0, %s144
      %s164 = sphi 0, %s164
      %s166 = sphi 0, %s164
      %s167 = sphi 0, %s166
      %s181 = sphi 0, %s167
      %s185 = sphi 0, %s185
      %s187 = sphi 0, %s185
      %s188 = sphi 0, %s187
      %s202 = sphi 0, %s188
      %s206 = sphi 0, %s206
      %s208 = sphi 0, %s206
      %s209 = sphi 0, %s208
      %s223 = sphi 0, %s209
      %s227 = sphi 0, %s227
      %s229 = sphi 0, %s227
      %s230 = sphi 0, %s229
      %s244 = sphi 0, %s230
      %s252 = sphi 0, %s254
      %s255 = sphi 0, %s252
      %s256 = sphi 0, %s255
      %s272 = sphi 0, %s256
    $region4: #{tpu_custom_call.1} parent=1 // loop_header_branch
      %27 = sbr.rel (%p25) target = $region8
    $region5: #{tpu_custom_call.1} parent=1 // loop_body
      %s29 = ssub.s32 %s24, 1
      %s30 = ssub.s32 %s24, 2
      %s37 = sadd.s32 1, %s32
      %p38 = scmp.ge.s32.totalorder %s37, 2
      %s39 = scalar_select %p38, 0, %s37
      %s40 = sadd.s32 1, %s31
      %s41 = scalar_select %p38, %s40, %s31
      %p42 = scmp.ge.s32.totalorder %s41, 2
      %s43 = scalar_select %p42, 0, %s41
      %s44 = ssub.s32 %s31, %s43
      %p45 = scmp.eq.s32.totalorder %s44, 0
      %s47 = sadd.s32 %s46, 1
      %s48 = scalar_select %p45, %s46, %s47
      %p51 = pneg %p45
      %p52 = scmp.eq.s32.totalorder %s24, 3
      %p53 = por %p51, %p52
      %p54 = scmp.ne.s32.totalorder %s46, %s49
      %p55 = scmp.eq.s32.totalorder %s24, 0
      %p56 = por %p54, %p55
      %p57 = scmp.ne.s32.totalorder %s46, %s49
      %p58 = scmp.eq.s32.totalorder %s29, 3
      %p59 = por %p57, %p58
      %p60 = scmp.ne.s32.totalorder %s49, %s50
      %p61 = scmp.eq.s32.totalorder %s29, 0
      %p62 = por %p60, %p61
      %p63 = scmp.ne.s32.totalorder %s49, %s50
      %p64 = scmp.eq.s32.totalorder %s30, 3
      %p65 = por %p63, %p64
      %p67 = scmp.ne.s32.totalorder %s50, %s66
      %p68 = scmp.eq.s32.totalorder %s30, 0
      %p69 = por %p67, %p68
      %s71 = sadd.s32 %s70, 1
      %p74 = scmp.eq.s32.totalorder %s24, 3
      %p75 = scmp.ne.s32.totalorder %s70, %s72
      %p76 = scmp.eq.s32.totalorder %s24, 0
      %p77 = por %p75, %p76
      %p78 = scmp.ne.s32.totalorder %s70, %s72
      %p79 = scmp.eq.s32.totalorder %s29, 3
      %p80 = por %p78, %p79
      %p81 = scmp.ne.s32.totalorder %s72, %s73
      %p82 = scmp.eq.s32.totalorder %s29, 0
      %p83 = por %p81, %p82
      %p84 = scmp.ne.s32.totalorder %s72, %s73
      %p85 = scmp.eq.s32.totalorder %s30, 3
      %p86 = por %p84, %p85
      %p88 = scmp.ne.s32.totalorder %s73, %s87
      %p89 = scmp.eq.s32.totalorder %s30, 0
      %p90 = por %p88, %p89
      %s92 = sadd.s32 %s91, 1
      %p95 = scmp.eq.s32.totalorder %s24, 3
      %p96 = scmp.ne.s32.totalorder %s91, %s93
      %p97 = scmp.eq.s32.totalorder %s24, 0
      %p98 = por %p96, %p97
      %p99 = scmp.ne.s32.totalorder %s91, %s93
      %p100 = scmp.eq.s32.totalorder %s29, 3
      %p101 = por %p99, %p100
      %p102 = scmp.ne.s32.totalorder %s93, %s94
      %p103 = scmp.eq.s32.totalorder %s29, 0
      %p104 = por %p102, %p103
      %p105 = scmp.ne.s32.totalorder %s93, %s94
      %p106 = scmp.eq.s32.totalorder %s30, 3
      %p107 = por %p105, %p106
      %p109 = scmp.ne.s32.totalorder %s94, %s108
      %p110 = scmp.eq.s32.totalorder %s30, 0
      %p111 = por %p109, %p110
      %s112 = ssub.s32 %s32, %s39
      %p113 = scmp.eq.s32.totalorder %s112, 0
      %s115 = sadd.s32 %s114, 1
      %s116 = scalar_select %p113, %s114, %s115
      %p119 = pneg %p113
      %p120 = scmp.eq.s32.totalorder %s24, 3
      %p121 = por %p119, %p120
      %p122 = scmp.ne.s32.totalorder %s114, %s117
      %p123 = scmp.eq.s32.totalorder %s24, 0
      %p124 = por %p122, %p123
      %p125 = scmp.ne.s32.totalorder %s114, %s117
      %p126 = scmp.eq.s32.totalorder %s29, 3
      %p127 = por %p125, %p126
      %p128 = scmp.ne.s32.totalorder %s117, %s118
      %p129 = scmp.eq.s32.totalorder %s29, 0
      %p130 = por %p128, %p129
      %p131 = scmp.ne.s32.totalorder %s117, %s118
      %p132 = scmp.eq.s32.totalorder %s30, 3
      %p133 = por %p131, %p132
      %p135 = scmp.ne.s32.totalorder %s118, %s134
      %p136 = scmp.eq.s32.totalorder %s30, 0
      %p137 = por %p135, %p136
      %s138 = ssub.s32 %s32, %s39
      %p139 = scmp.eq.s32.totalorder %s138, 0
      %s141 = sadd.s32 %s140, 1
      %s142 = scalar_select %p139, %s140, %s141
      %p145 = pneg %p139
      %p146 = scmp.eq.s32.totalorder %s24, 3
      %p147 = por %p145, %p146
      %p148 = scmp.ne.s32.totalorder %s140, %s143
      %p149 = scmp.eq.s32.totalorder %s24, 0
      %p150 = por %p148, %p149
      %p151 = scmp.ne.s32.totalorder %s140, %s143
      %p152 = scmp.eq.s32.totalorder %s29, 3
      %p153 = por %p151, %p152
      %p154 = scmp.ne.s32.totalorder %s143, %s144
      %p155 = scmp.eq.s32.totalorder %s29, 0
      %p156 = por %p154, %p155
      %p157 = scmp.ne.s32.totalorder %s143, %s144
      %p158 = scmp.eq.s32.totalorder %s30, 3
      %p159 = por %p157, %p158
      %p161 = scmp.ne.s32.totalorder %s144, %s160
      %p162 = scmp.eq.s32.totalorder %s30, 0
      %p163 = por %p161, %p162
      %s165 = sadd.s32 %s164, 1
      %p168 = scmp.eq.s32.totalorder %s24, 3
      %p169 = scmp.ne.s32.totalorder %s164, %s166
      %p170 = scmp.eq.s32.totalorder %s24, 0
      %p171 = por %p169, %p170
      %p172 = scmp.ne.s32.totalorder %s164, %s166
      %p173 = scmp.eq.s32.totalorder %s29, 3
      %p174 = por %p172, %p173
      %p175 = scmp.ne.s32.totalorder %s166, %s167
      %p176 = scmp.eq.s32.totalorder %s29, 0
      %p177 = por %p175, %p176
      %p178 = scmp.ne.s32.totalorder %s166, %s167
      %p179 = scmp.eq.s32.totalorder %s30, 3
      %p180 = por %p178, %p179
      %p182 = scmp.ne.s32.totalorder %s167, %s181
      %p183 = scmp.eq.s32.totalorder %s30, 0
      %p184 = por %p182, %p183
      %s186 = sadd.s32 %s185, 1
      %p189 = scmp.eq.s32.totalorder %s24, 3
      %p190 = scmp.ne.s32.totalorder %s185, %s187
      %p191 = scmp.eq.s32.totalorder %s24, 0
      %p192 = por %p190, %p191
      %p193 = scmp.ne.s32.totalorder %s185, %s187
      %p194 = scmp.eq.s32.totalorder %s29, 3
      %p195 = por %p193, %p194
      %p196 = scmp.ne.s32.totalorder %s187, %s188
      %p197 = scmp.eq.s32.totalorder %s29, 0
      %p198 = por %p196, %p197
      %p199 = scmp.ne.s32.totalorder %s187, %s188
      %p200 = scmp.eq.s32.totalorder %s30, 3
      %p201 = por %p199, %p200
      %p203 = scmp.ne.s32.totalorder %s188, %s202
      %p204 = scmp.eq.s32.totalorder %s30, 0
      %p205 = por %p203, %p204
      %s207 = sadd.s32 %s206, 1
      %p210 = scmp.eq.s32.totalorder %s24, 3
      %p211 = scmp.ne.s32.totalorder %s206, %s208
      %p212 = scmp.eq.s32.totalorder %s24, 0
      %p213 = por %p211, %p212
      %p214 = scmp.ne.s32.totalorder %s206, %s208
      %p215 = scmp.eq.s32.totalorder %s29, 3
      %p216 = por %p214, %p215
      %p217 = scmp.ne.s32.totalorder %s208, %s209
      %p218 = scmp.eq.s32.totalorder %s29, 0
      %p219 = por %p217, %p218
      %p220 = scmp.ne.s32.totalorder %s208, %s209
      %p221 = scmp.eq.s32.totalorder %s30, 3
      %p222 = por %p220, %p221
      %p224 = scmp.ne.s32.totalorder %s209, %s223
      %p225 = scmp.eq.s32.totalorder %s30, 0
      %p226 = por %p224, %p225
      %s228 = sadd.s32 %s227, 1
      %p231 = scmp.eq.s32.totalorder %s24, 3
      %p232 = scmp.ne.s32.totalorder %s227, %s229
      %p233 = scmp.eq.s32.totalorder %s24, 0
      %p234 = por %p232, %p233
      %p235 = scmp.ne.s32.totalorder %s227, %s229
      %p236 = scmp.eq.s32.totalorder %s29, 3
      %p237 = por %p235, %p236
      %p238 = scmp.ne.s32.totalorder %s229, %s230
      %p239 = scmp.eq.s32.totalorder %s29, 0
      %p240 = por %p238, %p239
      %p241 = scmp.ne.s32.totalorder %s229, %s230
      %p242 = scmp.eq.s32.totalorder %s30, 3
      %p243 = por %p241, %p242
      %p245 = scmp.ne.s32.totalorder %s230, %s244
      %p246 = scmp.eq.s32.totalorder %s30, 0
      %p247 = por %p245, %p246
      %s248 = ssub.s32 %s31, %s43
      %s249 = ssub.s32 %s32, %s39
      %s250 = sor.u32 %s248, %s249
      %p251 = scmp.eq.s32.totalorder %s250, 0
      %s253 = sadd.s32 %s252, 1
      %s254 = scalar_select %p251, %s252, %s253
      %p257 = pneg %p251
      %p258 = scmp.eq.s32.totalorder %s24, 3
      %p259 = por %p257, %p258
      %p260 = scmp.ne.s32.totalorder %s252, %s255
      %p261 = scmp.eq.s32.totalorder %s24, 0
      %p262 = por %p260, %p261
      %p263 = scmp.ne.s32.totalorder %s252, %s255
      %p264 = scmp.eq.s32.totalorder %s29, 3
      %p265 = por %p263, %p264
      %p266 = scmp.ne.s32.totalorder %s255, %s256
      %p267 = scmp.eq.s32.totalorder %s29, 0
      %p268 = por %p266, %p267
      %p269 = scmp.ne.s32.totalorder %s255, %s256
      %p270 = scmp.eq.s32.totalorder %s30, 3
      %p271 = por %p269, %p270
      %p273 = scmp.ne.s32.totalorder %s256, %s272
      %p274 = scmp.eq.s32.totalorder %s30, 0
      %p275 = por %p273, %p274
      %p276 = scmp.le.s32.totalorder 1, %s24
      %p277 = scmp.lt.s32.totalorder %s24, 5
      %p278 = pnand %p276, %p277
      %p279 = pneg %p278
      // Predicated region
      $region9: #{tpu_custom_call.1} parent=5 // pred_check
        _
      $region10: #{tpu_custom_call.1} parent=5 // pred_check_branch
        %281 = sbr.rel (%p278) target = $region12
      $region11: #{tpu_custom_call.1} parent=5 // pred_region
        %s282 = ssub.s32 %s24, 1
        // Predicated region
        $region13: #{tpu_custom_call.1} parent=11 // pred_check
          %p283 = pneg %p83
        $region14: #{tpu_custom_call.1} parent=11 // pred_check_branch
          %285 = sbr.rel (%p283) target = $region16
        $region15: #{tpu_custom_call.1} parent=11 // pred_region
          _
        $region16: #{tpu_custom_call.1} parent=11 // pred_fallthru
          _
        // Predicated region
        $region17: #{tpu_custom_call.1} parent=11 // pred_check
          %p286 = pneg %p104
        $region18: #{tpu_custom_call.1} parent=11 // pred_check_branch
          %288 = sbr.rel (%p286) target = $region20
        $region19: #{tpu_custom_call.1} parent=11 // pred_region
          _
        $region20: #{tpu_custom_call.1} parent=11 // pred_fallthru
          _
        // Predicated region
        $region21: #{tpu_custom_call.1} parent=11 // pred_check
          %p289 = pneg %p177
        $region22: #{tpu_custom_call.1} parent=11 // pred_check_branch
          %291 = sbr.rel (%p289) target = $region24
        $region23: #{tpu_custom_call.1} parent=11 // pred_region
          _
        $region24: #{tpu_custom_call.1} parent=11 // pred_fallthru
          _
        // Predicated region
        $region25: #{tpu_custom_call.1} parent=11 // pred_check
          %p292 = pneg %p198
        $region26: #{tpu_custom_call.1} parent=11 // pred_check_branch
          %294 = sbr.rel (%p292) target = $region28
        $region27: #{tpu_custom_call.1} parent=11 // pred_region
          _
        $region28: #{tpu_custom_call.1} parent=11 // pred_fallthru
          _
        // Predicated region
        $region29: #{tpu_custom_call.1} parent=11 // pred_check
          %p295 = pneg %p219
        $region30: #{tpu_custom_call.1} parent=11 // pred_check_branch
          %297 = sbr.rel (%p295) target = $region32
        $region31: #{tpu_custom_call.1} parent=11 // pred_region
          _
        $region32: #{tpu_custom_call.1} parent=11 // pred_fallthru
          _
        // Predicated region
        $region33: #{tpu_custom_call.1} parent=11 // pred_check
          %p298 = pneg %p240
        $region34: #{tpu_custom_call.1} parent=11 // pred_check_branch
          %300 = sbr.rel (%p298) target = $region36
        $region35: #{tpu_custom_call.1} parent=11 // pred_region
          _
        $region36: #{tpu_custom_call.1} parent=11 // pred_fallthru
          _
      $region12: #{tpu_custom_call.1} parent=5 // pred_fallthru
        _
      %p301 = scmp.lt.s32.totalorder %s24, 4
      // Predicated region
      $region37: #{tpu_custom_call.1} parent=5 // pred_check
        %p302 = pneg %p301
      $region38: #{tpu_custom_call.1} parent=5 // pred_check_branch
        %304 = sbr.rel (%p302) target = $region40
      $region39: #{tpu_custom_call.1} parent=5 // pred_region
        // Predicated region
        $region41: #{tpu_custom_call.1} parent=39 // pred_check
          %p305 = pneg %p56
        $region42: #{tpu_custom_call.1} parent=39 // pred_check_branch
          %307 = sbr.rel (%p305) target = $region44
        $region43: #{tpu_custom_call.1} parent=39 // pred_region
          %s308 = sand.u32 %s46, 1
          %s309 = scalar_lea.sflag [#allocation4], %s308
          %s310 = sand.u32 %s46, 1
          %s311 = smul.addr %s310, 512
          %s312 = scalar_lea.vmem [#allocation3], %s311
          %s314 = ssub.s32 8192, 8192
          %315 = vsyncadd %s309, %s314
          %s316 = smul.addr %s31, 64
          %s317 = smul.addr %s316, 128
          %s318 = scalar_lea.hbm %s0, %s317
          %s319 = sshll.u32 %s312, 4
          %s320 = int_to_ptr.vmem [resolvable:$true] %s319
          %325 = dma.hbm_to_vmem [thread:$0]  %s318, 8192, %s320, %s309, 128, 128, 8
        $region44: #{tpu_custom_call.1} parent=39 // pred_fallthru
          _
        // Predicated region
        $region45: #{tpu_custom_call.1} parent=39 // pred_check
          %p326 = pneg %p124
        $region46: #{tpu_custom_call.1} parent=39 // pred_check_branch
          %328 = sbr.rel (%p326) target = $region48
        $region47: #{tpu_custom_call.1} parent=39 // pred_region
          %s329 = sand.u32 %s114, 1
          %s330 = scalar_lea.sflag [#allocation7], %s329
          %s331 = sand.u32 %s114, 1
          %s332 = smul.addr %s331, 512
          %s333 = scalar_lea.vmem [#allocation6], %s332
          %s334 = smul.u32 32, %s32
          %s336 = ssub.s32 8192, 8192
          %337 = vsyncadd %s330, %s336
          %s338 = smul.addr %s334, 4
          %s339 = smul.addr %s338, 64
          %s340 = scalar_lea.hbm %s3, %s339
          %s341 = sshll.u32 %s333, 4
          %s342 = int_to_ptr.vmem [resolvable:$true] %s341
          %347 = dma.hbm_to_vmem [thread:$0]  %s340, 8192, %s342, %s330, 256, 256, 16
        $region48: #{tpu_custom_call.1} parent=39 // pred_fallthru
          _
        // Predicated region
        $region49: #{tpu_custom_call.1} parent=39 // pred_check
          %p348 = pneg %p150
        $region50: #{tpu_custom_call.1} parent=39 // pred_check_branch
          %350 = sbr.rel (%p348) target = $region52
        $region51: #{tpu_custom_call.1} parent=39 // pred_region
          %s351 = smul.u32 32, %s32
          %p352 = scmp.lt.s32.totalorder %s351, 63
          %s353 = scalar_select %p352, %s351, 63
          %s354 = smul.addr %s353, 8
          %s355 = scalar_lea.vmem %s4, %s354
          %s356 = smul.u32 32, %s32
        $region52: #{tpu_custom_call.1} parent=39 // pred_fallthru
          _
      $region40: #{tpu_custom_call.1} parent=5 // pred_fallthru
        _
      %p357 = scmp.le.s32.totalorder 1, %s24
      %p358 = scmp.lt.s32.totalorder %s24, 5
      %p359 = pnand %p357, %p358
      %p360 = pneg %p359
      // Predicated region
      $region53: #{tpu_custom_call.1} parent=5 // pred_check
        _
      $region54: #{tpu_custom_call.1} parent=5 // pred_check_branch
        %362 = sbr.rel (%p359) target = $region56
      $region55: #{tpu_custom_call.1} parent=5 // pred_region
        %s363 = ssub.s32 %s24, 1
        %s364 = sand.u32 %s49, 1
        %s365 = scalar_lea.sflag [#allocation4], %s364
        %s366 = sand.u32 %s49, 1
        %s367 = smul.addr %s366, 512
        %s368 = scalar_lea.vmem [#allocation3], %s367
        // Predicated region
        $region57: #{tpu_custom_call.1} parent=55 // pred_check
          %p369 = pneg %p62
        $region58: #{tpu_custom_call.1} parent=55 // pred_check_branch
          %371 = sbr.rel (%p369) target = $region60
        $region59: #{tpu_custom_call.1} parent=55 // pred_region
          %372 = dma.done %s365, 8192
        $region60: #{tpu_custom_call.1} parent=55 // pred_fallthru
          _
        %s373 = sand.u32 %s117, 1
        %s374 = scalar_lea.sflag [#allocation7], %s373
        %s375 = sand.u32 %s117, 1
        %s376 = smul.addr %s375, 512
        %s377 = scalar_lea.vmem [#allocation6], %s376
        // Predicated region
        $region61: #{tpu_custom_call.1} parent=55 // pred_check
          %p378 = pneg %p130
        $region62: #{tpu_custom_call.1} parent=55 // pred_check_branch
          %380 = sbr.rel (%p378) target = $region64
        $region63: #{tpu_custom_call.1} parent=55 // pred_region
          %381 = dma.done %s374, 8192
        $region64: #{tpu_custom_call.1} parent=55 // pred_fallthru
          _
        %s382 = sand.u32 %s49, 1
        %s383 = scalar_lea.sflag [#allocation4], %s382
        %s384 = sand.u32 %s49, 1
        %s385 = smul.addr %s384, 512
        %s386 = scalar_lea.vmem [#allocation3], %s385
        %p387 = pneg %p62
        %p388 = pneg %p59
        %p389 = pneg %p83
        %p390 = pneg %p80
        %p391 = pneg %p104
        %p392 = pneg %p101
        %s393 = sand.u32 %s117, 1
        %s394 = scalar_lea.sflag [#allocation7], %s393
        %s395 = sand.u32 %s117, 1
        %s396 = smul.addr %s395, 512
        %s397 = scalar_lea.vmem [#allocation6], %s396
        %p398 = pneg %p130
        %p399 = pneg %p127
        %s400 = smul.u32 32, %s34
        %p401 = scmp.lt.s32.totalorder %s400, 63
        %s402 = scalar_select %p401, %s400, 63
        %s403 = smul.addr %s402, 8
        %s404 = scalar_lea.vmem %s4, %s403
        %p405 = pneg %p156
        %p406 = pneg %p153
        %p407 = pneg %p177
        %p408 = pneg %p174
        %p409 = pneg %p198
        %p410 = pneg %p195
        %p411 = pneg %p219
        %p412 = pneg %p216
        %p413 = pneg %p240
        %p414 = pneg %p237
        %p415 = pneg %p268
        %p416 = pneg %p265
        %s417 = sand.u32 %s255, 1
        %s418 = scalar_lea.sflag [#allocation5], %s417
        %s419 = sand.u32 %s255, 1
        %s420 = smul.addr %s419, 256
        %s421 = scalar_lea.vmem [#allocation8], %s420
        %s422 = smul.u32 32, %s34
        %s423 = smul.u32 32, %s34
        %p424 = scmp.lt.s32.totalorder %s423, 63
        %s425 = scalar_select %p424, %s423, 63
        %s426 = smul.addr %s425, 8
        %s427 = scalar_lea.vmem %s4, %s426
        %s428 = smul.u32 32, %s34
        %s429 = smul.u32 32, %s34
        %p431 = scmp.eq.s32.totalorder %s34, 0
        // Predicated region
        $region65: #{tpu_custom_call.1} parent=55 // pred_check
          %p432 = pneg %p431
        $region66: #{tpu_custom_call.1} parent=55 // pred_check_branch
          %434 = sbr.rel (%p432) target = $region68
        $region67: #{tpu_custom_call.1} parent=55 // pred_region
          %v435 = vld [vmem:[%s1] sm:$0x1]
          %v436 = vld [vmem:[%s2] sm:$0x1]
          loop: start=0, step=1, limit=2
          $region69: #{tpu_custom_call.1} parent=67 // loop_pre_header
            _
          $region70: #{tpu_custom_call.1} parent=67 // loop_header
            %s438 = sphi 0, %s442
            %p439 = scmp.ge.s32.totalorder %s438, 2
          $region71: #{tpu_custom_call.1} parent=67 // loop_header_branch
            %441 = sbr.rel (%p439) target = $region75
          $region72: #{tpu_custom_call.1} parent=67 // loop_body
            %s443 = smul.u32 %s438, 256
            %s444 = scalar_lea.vmem %s368, %s443 [#allocation3]
            %v445 = vld [vmem:[%s444] sm:$0xff]
            %v446 = vld [vmem:[%s444 + $0x8] sm:$0xff]
            %v447 = vld [vmem:[%s444 + $0x10] sm:$0xff]
            %v448 = vld [vmem:[%s444 + $0x18] sm:$0xff]
            %v449 = vld [vmem:[%s444 + $0x20] sm:$0xff]
            %v450 = vld [vmem:[%s444 + $0x28] sm:$0xff]
            %v451 = vld [vmem:[%s444 + $0x30] sm:$0xff]
            %v452 = vld [vmem:[%s444 + $0x38] sm:$0xff]
            %v453 = vld [vmem:[%s444 + $0x40] sm:$0xff]
            %v454 = vld [vmem:[%s444 + $0x48] sm:$0xff]
            %v455 = vld [vmem:[%s444 + $0x50] sm:$0xff]
            %v456 = vld [vmem:[%s444 + $0x58] sm:$0xff]
            %v457 = vld [vmem:[%s444 + $0x60] sm:$0xff]
            %v458 = vld [vmem:[%s444 + $0x68] sm:$0xff]
            %v459 = vld [vmem:[%s444 + $0x70] sm:$0xff]
            %v460 = vld [vmem:[%s444 + $0x78] sm:$0xff]
            %v461 = vld [vmem:[%s444 + $0x80] sm:$0xff]
            %v462 = vld [vmem:[%s444 + $0x88] sm:$0xff]
            %v463 = vld [vmem:[%s444 + $0x90] sm:$0xff]
            %v464 = vld [vmem:[%s444 + $0x98] sm:$0xff]
            %v465 = vld [vmem:[%s444 + $0xa0] sm:$0xff]
            %v466 = vld [vmem:[%s444 + $0xa8] sm:$0xff]
            %v467 = vld [vmem:[%s444 + $0xb0] sm:$0xff]
            %v468 = vld [vmem:[%s444 + $0xb8] sm:$0xff]
            %v469 = vld [vmem:[%s444 + $0xc0] sm:$0xff]
            %v470 = vld [vmem:[%s444 + $0xc8] sm:$0xff]
            %v471 = vld [vmem:[%s444 + $0xd0] sm:$0xff]
            %v472 = vld [vmem:[%s444 + $0xd8] sm:$0xff]
            %v473 = vld [vmem:[%s444 + $0xe0] sm:$0xff]
            %v474 = vld [vmem:[%s444 + $0xe8] sm:$0xff]
            %v475 = vld [vmem:[%s444 + $0xf0] sm:$0xff]
            %v476 = vld [vmem:[%s444 + $0xf8] sm:$0xff]
            %477 = vadd.xlane.f32.xlu0 %v445
            %v478 = vpop.xlane.xlu0 %477
            %479 = vadd.xlane.f32.xlu0 %v446
            %v480 = vpop.xlane.xlu0 %479
            %481 = vadd.xlane.f32.xlu0 %v447
            %v482 = vpop.xlane.xlu0 %481
            %483 = vadd.xlane.f32.xlu0 %v448
            %v484 = vpop.xlane.xlu0 %483
            %485 = vadd.xlane.f32.xlu0 %v449
            %v486 = vpop.xlane.xlu0 %485
            %487 = vadd.xlane.f32.xlu0 %v450
            %v488 = vpop.xlane.xlu0 %487
            %489 = vadd.xlane.f32.xlu0 %v451
            %v490 = vpop.xlane.xlu0 %489
            %491 = vadd.xlane.f32.xlu0 %v452
            %v492 = vpop.xlane.xlu0 %491
            %493 = vadd.xlane.f32.xlu0 %v453
            %v494 = vpop.xlane.xlu0 %493
            %495 = vadd.xlane.f32.xlu0 %v454
            %v496 = vpop.xlane.xlu0 %495
            %497 = vadd.xlane.f32.xlu0 %v455
            %v498 = vpop.xlane.xlu0 %497
            %499 = vadd.xlane.f32.xlu0 %v456
            %v500 = vpop.xlane.xlu0 %499
            %501 = vadd.xlane.f32.xlu0 %v457
            %v502 = vpop.xlane.xlu0 %501
            %503 = vadd.xlane.f32.xlu0 %v458
            %v504 = vpop.xlane.xlu0 %503
            %505 = vadd.xlane.f32.xlu0 %v459
            %v506 = vpop.xlane.xlu0 %505
            %507 = vadd.xlane.f32.xlu0 %v460
            %v508 = vpop.xlane.xlu0 %507
            %509 = vadd.xlane.f32.xlu0 %v461
            %v510 = vpop.xlane.xlu0 %509
            %511 = vadd.xlane.f32.xlu0 %v462
            %v512 = vpop.xlane.xlu0 %511
            %513 = vadd.xlane.f32.xlu0 %v463
            %v514 = vpop.xlane.xlu0 %513
            %515 = vadd.xlane.f32.xlu0 %v464
            %v516 = vpop.xlane.xlu0 %515
            %517 = vadd.xlane.f32.xlu0 %v465
            %v518 = vpop.xlane.xlu0 %517
            %519 = vadd.xlane.f32.xlu0 %v466
            %v520 = vpop.xlane.xlu0 %519
            %521 = vadd.xlane.f32.xlu0 %v467
            %v522 = vpop.xlane.xlu0 %521
            %523 = vadd.xlane.f32.xlu0 %v468
            %v524 = vpop.xlane.xlu0 %523
            %525 = vadd.xlane.f32.xlu0 %v469
            %v526 = vpop.xlane.xlu0 %525
            %527 = vadd.xlane.f32.xlu0 %v470
            %v528 = vpop.xlane.xlu0 %527
            %529 = vadd.xlane.f32.xlu0 %v471
            %v530 = vpop.xlane.xlu0 %529
            %531 = vadd.xlane.f32.xlu0 %v472
            %v532 = vpop.xlane.xlu0 %531
            %533 = vadd.xlane.f32.xlu0 %v473
            %v534 = vpop.xlane.xlu0 %533
            %535 = vadd.xlane.f32.xlu0 %v474
            %v536 = vpop.xlane.xlu0 %535
            %537 = vadd.xlane.f32.xlu0 %v475
            %v538 = vpop.xlane.xlu0 %537
            %539 = vadd.xlane.f32.xlu0 %v476
            %v540 = vpop.xlane.xlu0 %539
            %v541 = vrcp.pop 128.0
            %v542 = vmul.f32 %v478, %v541
            %v543 = vmul.f32 %v480, %v541
            %v544 = vmul.f32 %v482, %v541
            %v545 = vmul.f32 %v484, %v541
            %v546 = vmul.f32 %v486, %v541
            %v547 = vmul.f32 %v488, %v541
            %v548 = vmul.f32 %v490, %v541
            %v549 = vmul.f32 %v492, %v541
            %v550 = vmul.f32 %v494, %v541
            %v551 = vmul.f32 %v496, %v541
            %v552 = vmul.f32 %v498, %v541
            %v553 = vmul.f32 %v500, %v541
            %v554 = vmul.f32 %v502, %v541
            %v555 = vmul.f32 %v504, %v541
            %v556 = vmul.f32 %v506, %v541
            %v557 = vmul.f32 %v508, %v541
            %v558 = vmul.f32 %v510, %v541
            %v559 = vmul.f32 %v512, %v541
            %v560 = vmul.f32 %v514, %v541
            %v561 = vmul.f32 %v516, %v541
            %v562 = vmul.f32 %v518, %v541
            %v563 = vmul.f32 %v520, %v541
            %v564 = vmul.f32 %v522, %v541
            %v565 = vmul.f32 %v524, %v541
            %v566 = vmul.f32 %v526, %v541
            %v567 = vmul.f32 %v528, %v541
            %v568 = vmul.f32 %v530, %v541
            %v569 = vmul.f32 %v532, %v541
            %v570 = vmul.f32 %v534, %v541
            %v571 = vmul.f32 %v536, %v541
            %v572 = vmul.f32 %v538, %v541
            %v573 = vmul.f32 %v540, %v541
            %v574 = vsub.f32 %v445, %v542
            %v575 = vsub.f32 %v446, %v543
            %v576 = vsub.f32 %v447, %v544
            %v577 = vsub.f32 %v448, %v545
            %v578 = vsub.f32 %v449, %v546
            %v579 = vsub.f32 %v450, %v547
            %v580 = vsub.f32 %v451, %v548
            %v581 = vsub.f32 %v452, %v549
            %v582 = vsub.f32 %v453, %v550
            %v583 = vsub.f32 %v454, %v551
            %v584 = vsub.f32 %v455, %v552
            %v585 = vsub.f32 %v456, %v553
            %v586 = vsub.f32 %v457, %v554
            %v587 = vsub.f32 %v458, %v555
            %v588 = vsub.f32 %v459, %v556
            %v589 = vsub.f32 %v460, %v557
            %v590 = vsub.f32 %v461, %v558
            %v591 = vsub.f32 %v462, %v559
            %v592 = vsub.f32 %v463, %v560
            %v593 = vsub.f32 %v464, %v561
            %v594 = vsub.f32 %v465, %v562
            %v595 = vsub.f32 %v466, %v563
            %v596 = vsub.f32 %v467, %v564
            %v597 = vsub.f32 %v468, %v565
            %v598 = vsub.f32 %v469, %v566
            %v599 = vsub.f32 %v470, %v567
            %v600 = vsub.f32 %v471, %v568
            %v601 = vsub.f32 %v472, %v569
            %v602 = vsub.f32 %v473, %v570
            %v603 = vsub.f32 %v474, %v571
            %v604 = vsub.f32 %v475, %v572
            %v605 = vsub.f32 %v476, %v573
            %v606 = vmul.f32 %v574, %v574
            %v607 = vmul.f32 %v575, %v575
            %v608 = vmul.f32 %v576, %v576
            %v609 = vmul.f32 %v577, %v577
            %v610 = vmul.f32 %v578, %v578
            %v611 = vmul.f32 %v579, %v579
            %v612 = vmul.f32 %v580, %v580
            %v613 = vmul.f32 %v581, %v581
            %v614 = vmul.f32 %v582, %v582
            %v615 = vmul.f32 %v583, %v583
            %v616 = vmul.f32 %v584, %v584
            %v617 = vmul.f32 %v585, %v585
            %v618 = vmul.f32 %v586, %v586
            %v619 = vmul.f32 %v587, %v587
            %v620 = vmul.f32 %v588, %v588
            %v621 = vmul.f32 %v589, %v589
            %v622 = vmul.f32 %v590, %v590
            %v623 = vmul.f32 %v591, %v591
            %v624 = vmul.f32 %v592, %v592
            %v625 = vmul.f32 %v593, %v593
            %v626 = vmul.f32 %v594, %v594
            %v627 = vmul.f32 %v595, %v595
            %v628 = vmul.f32 %v596, %v596
            %v629 = vmul.f32 %v597, %v597
            %v630 = vmul.f32 %v598, %v598
            %v631 = vmul.f32 %v599, %v599
            %v632 = vmul.f32 %v600, %v600
            %v633 = vmul.f32 %v601, %v601
            %v634 = vmul.f32 %v602, %v602
            %v635 = vmul.f32 %v603, %v603
            %v636 = vmul.f32 %v604, %v604
            %v637 = vmul.f32 %v605, %v605
            %638 = vadd.xlane.f32.xlu0 %v606
            %v639 = vpop.xlane.xlu0 %638
            %640 = vadd.xlane.f32.xlu0 %v607
            %v641 = vpop.xlane.xlu0 %640
            %642 = vadd.xlane.f32.xlu0 %v608
            %v643 = vpop.xlane.xlu0 %642
            %644 = vadd.xlane.f32.xlu0 %v609
            %v645 = vpop.xlane.xlu0 %644
            %646 = vadd.xlane.f32.xlu0 %v610
            %v647 = vpop.xlane.xlu0 %646
            %648 = vadd.xlane.f32.xlu0 %v611
            %v649 = vpop.xlane.xlu0 %648
            %650 = vadd.xlane.f32.xlu0 %v612
            %v651 = vpop.xlane.xlu0 %650
            %652 = vadd.xlane.f32.xlu0 %v613
            %v653 = vpop.xlane.xlu0 %652
            %654 = vadd.xlane.f32.xlu0 %v614
            %v655 = vpop.xlane.xlu0 %654
            %656 = vadd.xlane.f32.xlu0 %v615
            %v657 = vpop.xlane.xlu0 %656
            %658 = vadd.xlane.f32.xlu0 %v616
            %v659 = vpop.xlane.xlu0 %658
            %660 = vadd.xlane.f32.xlu0 %v617
            %v661 = vpop.xlane.xlu0 %660
            %662 = vadd.xlane.f32.xlu0 %v618
            %v663 = vpop.xlane.xlu0 %662
            %664 = vadd.xlane.f32.xlu0 %v619
            %v665 = vpop.xlane.xlu0 %664
            %666 = vadd.xlane.f32.xlu0 %v620
            %v667 = vpop.xlane.xlu0 %666
            %668 = vadd.xlane.f32.xlu0 %v621
            %v669 = vpop.xlane.xlu0 %668
            %670 = vadd.xlane.f32.xlu0 %v622
            %v671 = vpop.xlane.xlu0 %670
            %672 = vadd.xlane.f32.xlu0 %v623
            %v673 = vpop.xlane.xlu0 %672
            %674 = vadd.xlane.f32.xlu0 %v624
            %v675 = vpop.xlane.xlu0 %674
            %676 = vadd.xlane.f32.xlu0 %v625
            %v677 = vpop.xlane.xlu0 %676
            %678 = vadd.xlane.f32.xlu0 %v626
            %v679 = vpop.xlane.xlu0 %678
            %680 = vadd.xlane.f32.xlu0 %v627
            %v681 = vpop.xlane.xlu0 %680
            %682 = vadd.xlane.f32.xlu0 %v628
            %v683 = vpop.xlane.xlu0 %682
            %684 = vadd.xlane.f32.xlu0 %v629
            %v685 = vpop.xlane.xlu0 %684
            %686 = vadd.xlane.f32.xlu0 %v630
            %v687 = vpop.xlane.xlu0 %686
            %688 = vadd.xlane.f32.xlu0 %v631
            %v689 = vpop.xlane.xlu0 %688
            %690 = vadd.xlane.f32.xlu0 %v632
            %v691 = vpop.xlane.xlu0 %690
            %692 = vadd.xlane.f32.xlu0 %v633
            %v693 = vpop.xlane.xlu0 %692
            %694 = vadd.xlane.f32.xlu0 %v634
            %v695 = vpop.xlane.xlu0 %694
            %696 = vadd.xlane.f32.xlu0 %v635
            %v697 = vpop.xlane.xlu0 %696
            %698 = vadd.xlane.f32.xlu0 %v636
            %v699 = vpop.xlane.xlu0 %698
            %700 = vadd.xlane.f32.xlu0 %v637
            %v701 = vpop.xlane.xlu0 %700
            %v702 = vmul.f32 %v639, %v541
            %v703 = vmul.f32 %v641, %v541
            %v704 = vmul.f32 %v643, %v541
            %v705 = vmul.f32 %v645, %v541
            %v706 = vmul.f32 %v647, %v541
            %v707 = vmul.f32 %v649, %v541
            %v708 = vmul.f32 %v651, %v541
            %v709 = vmul.f32 %v653, %v541
            %v710 = vmul.f32 %v655, %v541
            %v711 = vmul.f32 %v657, %v541
            %v712 = vmul.f32 %v659, %v541
            %v713 = vmul.f32 %v661, %v541
            %v714 = vmul.f32 %v663, %v541
            %v715 = vmul.f32 %v665, %v541
            %v716 = vmul.f32 %v667, %v541
            %v717 = vmul.f32 %v669, %v541
            %v718 = vmul.f32 %v671, %v541
            %v719 = vmul.f32 %v673, %v541
            %v720 = vmul.f32 %v675, %v541
            %v721 = vmul.f32 %v677, %v541
            %v722 = vmul.f32 %v679, %v541
            %v723 = vmul.f32 %v681, %v541
            %v724 = vmul.f32 %v683, %v541
            %v725 = vmul.f32 %v685, %v541
            %v726 = vmul.f32 %v687, %v541
            %v727 = vmul.f32 %v689, %v541
            %v728 = vmul.f32 %v691, %v541
            %v729 = vmul.f32 %v693, %v541
            %v730 = vmul.f32 %v695, %v541
            %v731 = vmul.f32 %v697, %v541
            %v732 = vmul.f32 %v699, %v541
            %v733 = vmul.f32 %v701, %v541
            %v734 = vadd.f32 %v702, 1e-05
            %v735 = vadd.f32 %v703, 1e-05
            %v736 = vadd.f32 %v704, 1e-05
            %v737 = vadd.f32 %v705, 1e-05
            %v738 = vadd.f32 %v706, 1e-05
            %v739 = vadd.f32 %v707, 1e-05
            %v740 = vadd.f32 %v708, 1e-05
            %v741 = vadd.f32 %v709, 1e-05
            %v742 = vadd.f32 %v710, 1e-05
            %v743 = vadd.f32 %v711, 1e-05
            %v744 = vadd.f32 %v712, 1e-05
            %v745 = vadd.f32 %v713, 1e-05
            %v746 = vadd.f32 %v714, 1e-05
            %v747 = vadd.f32 %v715, 1e-05
            %v748 = vadd.f32 %v716, 1e-05
            %v749 = vadd.f32 %v717, 1e-05
            %v750 = vadd.f32 %v718, 1e-05
            %v751 = vadd.f32 %v719, 1e-05
            %v752 = vadd.f32 %v720, 1e-05
            %v753 = vadd.f32 %v721, 1e-05
            %v754 = vadd.f32 %v722, 1e-05
            %v755 = vadd.f32 %v723, 1e-05
            %v756 = vadd.f32 %v724, 1e-05
            %v757 = vadd.f32 %v725, 1e-05
            %v758 = vadd.f32 %v726, 1e-05
            %v759 = vadd.f32 %v727, 1e-05
            %v760 = vadd.f32 %v728, 1e-05
            %v761 = vadd.f32 %v729, 1e-05
            %v762 = vadd.f32 %v730, 1e-05
            %v763 = vadd.f32 %v731, 1e-05
            %v764 = vadd.f32 %v732, 1e-05
            %v765 = vadd.f32 %v733, 1e-05
            %v766 = vrsqrt.pop %v734
            %v767 = vrsqrt.pop %v735
            %v768 = vrsqrt.pop %v736
            %v769 = vrsqrt.pop %v737
            %v770 = vrsqrt.pop %v738
            %v771 = vrsqrt.pop %v739
            %v772 = vrsqrt.pop %v740
            %v773 = vrsqrt.pop %v741
            %v774 = vrsqrt.pop %v742
            %v775 = vrsqrt.pop %v743
            %v776 = vrsqrt.pop %v744
            %v777 = vrsqrt.pop %v745
            %v778 = vrsqrt.pop %v746
            %v779 = vrsqrt.pop %v747
            %v780 = vrsqrt.pop %v748
            %v781 = vrsqrt.pop %v749
            %v782 = vrsqrt.pop %v750
            %v783 = vrsqrt.pop %v751
            %v784 = vrsqrt.pop %v752
            %v785 = vrsqrt.pop %v753
            %v786 = vrsqrt.pop %v754
            %v787 = vrsqrt.pop %v755
            %v788 = vrsqrt.pop %v756
            %v789 = vrsqrt.pop %v757
            %v790 = vrsqrt.pop %v758
            %v791 = vrsqrt.pop %v759
            %v792 = vrsqrt.pop %v760
            %v793 = vrsqrt.pop %v761
            %v794 = vrsqrt.pop %v762
            %v795 = vrsqrt.pop %v763
            %v796 = vrsqrt.pop %v764
            %v797 = vrsqrt.pop %v765
            %v798 = vmul.f32 %v574, %v766
            %v799 = vmul.f32 %v575, %v767
            %v800 = vmul.f32 %v576, %v768
            %v801 = vmul.f32 %v577, %v769
            %v802 = vmul.f32 %v578, %v770
            %v803 = vmul.f32 %v579, %v771
            %v804 = vmul.f32 %v580, %v772
            %v805 = vmul.f32 %v581, %v773
            %v806 = vmul.f32 %v582, %v774
            %v807 = vmul.f32 %v583, %v775
            %v808 = vmul.f32 %v584, %v776
            %v809 = vmul.f32 %v585, %v777
            %v810 = vmul.f32 %v586, %v778
            %v811 = vmul.f32 %v587, %v779
            %v812 = vmul.f32 %v588, %v780
            %v813 = vmul.f32 %v589, %v781
            %v814 = vmul.f32 %v590, %v782
            %v815 = vmul.f32 %v591, %v783
            %v816 = vmul.f32 %v592, %v784
            %v817 = vmul.f32 %v593, %v785
            %v818 = vmul.f32 %v594, %v786
            %v819 = vmul.f32 %v595, %v787
            %v820 = vmul.f32 %v596, %v788
            %v821 = vmul.f32 %v597, %v789
            %v822 = vmul.f32 %v598, %v790
            %v823 = vmul.f32 %v599, %v791
            %v824 = vmul.f32 %v600, %v792
            %v825 = vmul.f32 %v601, %v793
            %v826 = vmul.f32 %v602, %v794
            %v827 = vmul.f32 %v603, %v795
            %v828 = vmul.f32 %v604, %v796
            %v829 = vmul.f32 %v605, %v797
            %v831 = vlaneseq
            %v832 = vshrl.u32 %v831, 7
            %v833 = vsub.s32 0, %v832
            %v834 = vrot.slane %v435, %v833
            %v836 = vmul.f32 %v798, %v834
            %v837 = vmul.f32 %v799, %v834
            %v838 = vmul.f32 %v800, %v834
            %v839 = vmul.f32 %v801, %v834
            %v840 = vmul.f32 %v802, %v834
            %v841 = vmul.f32 %v803, %v834
            %v842 = vmul.f32 %v804, %v834
            %v843 = vmul.f32 %v805, %v834
            %v844 = vmul.f32 %v806, %v834
            %v845 = vmul.f32 %v807, %v834
            %v846 = vmul.f32 %v808, %v834
            %v847 = vmul.f32 %v809, %v834
            %v848 = vmul.f32 %v810, %v834
            %v849 = vmul.f32 %v811, %v834
            %v850 = vmul.f32 %v812, %v834
            %v851 = vmul.f32 %v813, %v834
            %v852 = vmul.f32 %v814, %v834
            %v853 = vmul.f32 %v815, %v834
            %v854 = vmul.f32 %v816, %v834
            %v855 = vmul.f32 %v817, %v834
            %v856 = vmul.f32 %v818, %v834
            %v857 = vmul.f32 %v819, %v834
            %v858 = vmul.f32 %v820, %v834
            %v859 = vmul.f32 %v821, %v834
            %v860 = vmul.f32 %v822, %v834
            %v861 = vmul.f32 %v823, %v834
            %v862 = vmul.f32 %v824, %v834
            %v863 = vmul.f32 %v825, %v834
            %v864 = vmul.f32 %v826, %v834
            %v865 = vmul.f32 %v827, %v834
            %v866 = vmul.f32 %v828, %v834
            %v867 = vmul.f32 %v829, %v834
            %v869 = vlaneseq
            %v870 = vshrl.u32 %v869, 7
            %v871 = vsub.s32 0, %v870
            %v872 = vrot.slane %v436, %v871
            %v874 = vadd.f32 %v836, %v872
            %v875 = vadd.f32 %v837, %v872
            %v876 = vadd.f32 %v838, %v872
            %v877 = vadd.f32 %v839, %v872
            %v878 = vadd.f32 %v840, %v872
            %v879 = vadd.f32 %v841, %v872
            %v880 = vadd.f32 %v842, %v872
            %v881 = vadd.f32 %v843, %v872
            %v882 = vadd.f32 %v844, %v872
            %v883 = vadd.f32 %v845, %v872
            %v884 = vadd.f32 %v846, %v872
            %v885 = vadd.f32 %v847, %v872
            %v886 = vadd.f32 %v848, %v872
            %v887 = vadd.f32 %v849, %v872
            %v888 = vadd.f32 %v850, %v872
            %v889 = vadd.f32 %v851, %v872
            %v890 = vadd.f32 %v852, %v872
            %v891 = vadd.f32 %v853, %v872
            %v892 = vadd.f32 %v854, %v872
            %v893 = vadd.f32 %v855, %v872
            %v894 = vadd.f32 %v856, %v872
            %v895 = vadd.f32 %v857, %v872
            %v896 = vadd.f32 %v858, %v872
            %v897 = vadd.f32 %v859, %v872
            %v898 = vadd.f32 %v860, %v872
            %v899 = vadd.f32 %v861, %v872
            %v900 = vadd.f32 %v862, %v872
            %v901 = vadd.f32 %v863, %v872
            %v902 = vadd.f32 %v864, %v872
            %v903 = vadd.f32 %v865, %v872
            %v904 = vadd.f32 %v866, %v872
            %v905 = vadd.f32 %v867, %v872
            %v906 = vpack.c.bf16 %v875, %v874
            %v907 = vpack.c.bf16 %v877, %v876
            %v908 = vpack.c.bf16 %v879, %v878
            %v909 = vpack.c.bf16 %v881, %v880
            %v910 = vpack.c.bf16 %v883, %v882
            %v911 = vpack.c.bf16 %v885, %v884
            %v912 = vpack.c.bf16 %v887, %v886
            %v913 = vpack.c.bf16 %v889, %v888
            %v914 = vpack.c.bf16 %v891, %v890
            %v915 = vpack.c.bf16 %v893, %v892
            %v916 = vpack.c.bf16 %v895, %v894
            %v917 = vpack.c.bf16 %v897, %v896
            %v918 = vpack.c.bf16 %v899, %v898
            %v919 = vpack.c.bf16 %v901, %v900
            %v920 = vpack.c.bf16 %v903, %v902
            %v921 = vpack.c.bf16 %v905, %v904
            %v938 = vunpack.c.l.b16 %v906
            %v939 = vunpack.c.h.b16 %v906
            %v940 = vunpack.c.l.b16 %v907
            %v941 = vunpack.c.h.b16 %v907
            %v942 = vunpack.c.l.b16 %v908
            %v943 = vunpack.c.h.b16 %v908
            %v944 = vunpack.c.l.b16 %v909
            %v945 = vunpack.c.h.b16 %v909
            %v946 = vunpack.c.l.b16 %v910
            %v947 = vunpack.c.h.b16 %v910
            %v948 = vunpack.c.l.b16 %v911
            %v949 = vunpack.c.h.b16 %v911
            %v950 = vunpack.c.l.b16 %v912
            %v951 = vunpack.c.h.b16 %v912
            %v952 = vunpack.c.l.b16 %v913
            %v953 = vunpack.c.h.b16 %v913
            %v954 = vunpack.c.l.b16 %v914
            %v955 = vunpack.c.h.b16 %v914
            %v956 = vunpack.c.l.b16 %v915
            %v957 = vunpack.c.h.b16 %v915
            %v958 = vunpack.c.l.b16 %v916
            %v959 = vunpack.c.h.b16 %v916
            %v960 = vunpack.c.l.b16 %v917
            %v961 = vunpack.c.h.b16 %v917
            %v962 = vunpack.c.l.b16 %v918
            %v963 = vunpack.c.h.b16 %v918
            %v964 = vunpack.c.l.b16 %v919
            %v965 = vunpack.c.h.b16 %v919
            %v966 = vunpack.c.l.b16 %v920
            %v967 = vunpack.c.h.b16 %v920
            %v968 = vunpack.c.l.b16 %v921
            %v969 = vunpack.c.h.b16 %v921
            %v970 = vpack.c.b16 %v938, %v938
            %v971 = vpack.c.b16 %v939, %v939
            %v972 = vpack.c.b16 %v940, %v940
            %v973 = vpack.c.b16 %v941, %v941
            %v974 = vpack.c.b16 %v942, %v942
            %v975 = vpack.c.b16 %v943, %v943
            %v976 = vpack.c.b16 %v944, %v944
            %v977 = vpack.c.b16 %v945, %v945
            %v978 = vpack.c.b16 %v946, %v946
            %v979 = vpack.c.b16 %v947, %v947
            %v980 = vpack.c.b16 %v948, %v948
            %v981 = vpack.c.b16 %v949, %v949
            %v982 = vpack.c.b16 %v950, %v950
            %v983 = vpack.c.b16 %v951, %v951
            %v984 = vpack.c.b16 %v952, %v952
            %v985 = vpack.c.b16 %v953, %v953
            %v986 = vpack.c.b16 %v954, %v954
            %v987 = vpack.c.b16 %v955, %v955
            %v988 = vpack.c.b16 %v956, %v956
            %v989 = vpack.c.b16 %v957, %v957
            %v990 = vpack.c.b16 %v958, %v958
            %v991 = vpack.c.b16 %v959, %v959
            %v992 = vpack.c.b16 %v960, %v960
            %v993 = vpack.c.b16 %v961, %v961
            %v994 = vpack.c.b16 %v962, %v962
            %v995 = vpack.c.b16 %v963, %v963
            %v996 = vpack.c.b16 %v964, %v964
            %v997 = vpack.c.b16 %v965, %v965
            %v998 = vpack.c.b16 %v966, %v966
            %v999 = vpack.c.b16 %v967, %v967
            %v1000 = vpack.c.b16 %v968, %v968
            %v1001 = vpack.c.b16 %v969, %v969
            %s1034 = sshra.s32 %s443, 3
            %s1035 = sand.u32 %s443, 7
            %s1036 = smul.addr %s1034, 4
            %s1037 = scalar_lea.vmem [#allocation2], %s1036
            %1038 = vst [vmem:[%s1037] sm:$0xf] %v970
            %1039 = vst [vmem:[%s1037 + $0x4] sm:$0xf] %v971
            %1040 = vst [vmem:[%s1037 + $0x8] sm:$0xf] %v972
            %1041 = vst [vmem:[%s1037 + $0xc] sm:$0xf] %v973
            %1042 = vst [vmem:[%s1037 + $0x10] sm:$0xf] %v974
            %1043 = vst [vmem:[%s1037 + $0x14] sm:$0xf] %v975
            %1044 = vst [vmem:[%s1037 + $0x18] sm:$0xf] %v976
            %1045 = vst [vmem:[%s1037 + $0x1c] sm:$0xf] %v977
            %1046 = vst [vmem:[%s1037 + $0x20] sm:$0xf] %v978
            %1047 = vst [vmem:[%s1037 + $0x24] sm:$0xf] %v979
            %1048 = vst [vmem:[%s1037 + $0x28] sm:$0xf] %v980
            %1049 = vst [vmem:[%s1037 + $0x2c] sm:$0xf] %v981
            %1050 = vst [vmem:[%s1037 + $0x30] sm:$0xf] %v982
            %1051 = vst [vmem:[%s1037 + $0x34] sm:$0xf] %v983
            %1052 = vst [vmem:[%s1037 + $0x38] sm:$0xf] %v984
            %1053 = vst [vmem:[%s1037 + $0x3c] sm:$0xf] %v985
            %1054 = vst [vmem:[%s1037 + $0x40] sm:$0xf] %v986
            %1055 = vst [vmem:[%s1037 + $0x44] sm:$0xf] %v987
            %1056 = vst [vmem:[%s1037 + $0x48] sm:$0xf] %v988
            %1057 = vst [vmem:[%s1037 + $0x4c] sm:$0xf] %v989
            %1058 = vst [vmem:[%s1037 + $0x50] sm:$0xf] %v990
            %1059 = vst [vmem:[%s1037 + $0x54] sm:$0xf] %v991
            %1060 = vst [vmem:[%s1037 + $0x58] sm:$0xf] %v992
            %1061 = vst [vmem:[%s1037 + $0x5c] sm:$0xf] %v993
            %1062 = vst [vmem:[%s1037 + $0x60] sm:$0xf] %v994
            %1063 = vst [vmem:[%s1037 + $0x64] sm:$0xf] %v995
            %1064 = vst [vmem:[%s1037 + $0x68] sm:$0xf] %v996
            %1065 = vst [vmem:[%s1037 + $0x6c] sm:$0xf] %v997
            %1066 = vst [vmem:[%s1037 + $0x70] sm:$0xf] %v998
            %1067 = vst [vmem:[%s1037 + $0x74] sm:$0xf] %v999
            %1068 = vst [vmem:[%s1037 + $0x78] sm:$0xf] %v1000
            %1069 = vst [vmem:[%s1037 + $0x7c] sm:$0xf] %v1001
          $region73: #{tpu_custom_call.1} parent=67 // loop_footer
            %s442 = sadd.s32 1, %s438
          $region74: #{tpu_custom_call.1} parent=67 // loop_footer_branch
            %437 = sbr.rel target = $region70
          $region75: #{tpu_custom_call.1} parent=67 // loop_exit
            _
        $region68: #{tpu_custom_call.1} parent=55 // pred_fallthru
          _
        %s1070 = smul.u32 %s34, 256
        %s1071 = scalar_lea.vmem %s368, %s1070 [#allocation3]
        %v1072 = vld [vmem:[%s1071] sm:$0xff]
        %v1073 = vld [vmem:[%s1071 + $0x8] sm:$0xff]
        %v1074 = vld [vmem:[%s1071 + $0x10] sm:$0xff]
        %v1075 = vld [vmem:[%s1071 + $0x18] sm:$0xff]
        %v1076 = vld [vmem:[%s1071 + $0x20] sm:$0xff]
        %v1077 = vld [vmem:[%s1071 + $0x28] sm:$0xff]
        %v1078 = vld [vmem:[%s1071 + $0x30] sm:$0xff]
        %v1079 = vld [vmem:[%s1071 + $0x38] sm:$0xff]
        %v1080 = vld [vmem:[%s1071 + $0x40] sm:$0xff]
        %v1081 = vld [vmem:[%s1071 + $0x48] sm:$0xff]
        %v1082 = vld [vmem:[%s1071 + $0x50] sm:$0xff]
        %v1083 = vld [vmem:[%s1071 + $0x58] sm:$0xff]
        %v1084 = vld [vmem:[%s1071 + $0x60] sm:$0xff]
        %v1085 = vld [vmem:[%s1071 + $0x68] sm:$0xff]
        %v1086 = vld [vmem:[%s1071 + $0x70] sm:$0xff]
        %v1087 = vld [vmem:[%s1071 + $0x78] sm:$0xff]
        %v1088 = vld [vmem:[%s1071 + $0x80] sm:$0xff]
        %v1089 = vld [vmem:[%s1071 + $0x88] sm:$0xff]
        %v1090 = vld [vmem:[%s1071 + $0x90] sm:$0xff]
        %v1091 = vld [vmem:[%s1071 + $0x98] sm:$0xff]
        %v1092 = vld [vmem:[%s1071 + $0xa0] sm:$0xff]
        %v1093 = vld [vmem:[%s1071 + $0xa8] sm:$0xff]
        %v1094 = vld [vmem:[%s1071 + $0xb0] sm:$0xff]
        %v1095 = vld [vmem:[%s1071 + $0xb8] sm:$0xff]
        %v1096 = vld [vmem:[%s1071 + $0xc0] sm:$0xff]
        %v1097 = vld [vmem:[%s1071 + $0xc8] sm:$0xff]
        %v1098 = vld [vmem:[%s1071 + $0xd0] sm:$0xff]
        %v1099 = vld [vmem:[%s1071 + $0xd8] sm:$0xff]
        %v1100 = vld [vmem:[%s1071 + $0xe0] sm:$0xff]
        %v1101 = vld [vmem:[%s1071 + $0xe8] sm:$0xff]
        %v1102 = vld [vmem:[%s1071 + $0xf0] sm:$0xff]
        %v1103 = vld [vmem:[%s1071 + $0xf8] sm:$0xff]
        %v1104 = vld [vmem:[%s377] sm:$0xff]
        %v1105 = vld [vmem:[%s377 + $0x8] sm:$0xff]
        %v1106 = vld [vmem:[%s377 + $0x10] sm:$0xff]
        %v1107 = vld [vmem:[%s377 + $0x18] sm:$0xff]
        %v1108 = vld [vmem:[%s377 + $0x20] sm:$0xff]
        %v1109 = vld [vmem:[%s377 + $0x28] sm:$0xff]
        %v1110 = vld [vmem:[%s377 + $0x30] sm:$0xff]
        %v1111 = vld [vmem:[%s377 + $0x38] sm:$0xff]
        %v1112 = vld [vmem:[%s377 + $0x40] sm:$0xff]
        %v1113 = vld [vmem:[%s377 + $0x48] sm:$0xff]
        %v1114 = vld [vmem:[%s377 + $0x50] sm:$0xff]
        %v1115 = vld [vmem:[%s377 + $0x58] sm:$0xff]
        %v1116 = vld [vmem:[%s377 + $0x60] sm:$0xff]
        %v1117 = vld [vmem:[%s377 + $0x68] sm:$0xff]
        %v1118 = vld [vmem:[%s377 + $0x70] sm:$0xff]
        %v1119 = vld [vmem:[%s377 + $0x78] sm:$0xff]
        %v1120 = vld [vmem:[%s377 + $0x80] sm:$0xff]
        %v1121 = vld [vmem:[%s377 + $0x88] sm:$0xff]
        %v1122 = vld [vmem:[%s377 + $0x90] sm:$0xff]
        %v1123 = vld [vmem:[%s377 + $0x98] sm:$0xff]
        %v1124 = vld [vmem:[%s377 + $0xa0] sm:$0xff]
        %v1125 = vld [vmem:[%s377 + $0xa8] sm:$0xff]
        %v1126 = vld [vmem:[%s377 + $0xb0] sm:$0xff]
        %v1127 = vld [vmem:[%s377 + $0xb8] sm:$0xff]
        %v1128 = vld [vmem:[%s377 + $0xc0] sm:$0xff]
        %v1129 = vld [vmem:[%s377 + $0xc8] sm:$0xff]
        %v1130 = vld [vmem:[%s377 + $0xd0] sm:$0xff]
        %v1131 = vld [vmem:[%s377 + $0xd8] sm:$0xff]
        %v1132 = vld [vmem:[%s377 + $0xe0] sm:$0xff]
        %v1133 = vld [vmem:[%s377 + $0xe8] sm:$0xff]
        %v1134 = vld [vmem:[%s377 + $0xf0] sm:$0xff]
        %v1135 = vld [vmem:[%s377 + $0xf8] sm:$0xff]
        %v1136 = vld [vmem:[%s377 + $0x100] sm:$0xff]
        %v1137 = vld [vmem:[%s377 + $0x108] sm:$0xff]
        %v1138 = vld [vmem:[%s377 + $0x110] sm:$0xff]
        %v1139 = vld [vmem:[%s377 + $0x118] sm:$0xff]
        %v1140 = vld [vmem:[%s377 + $0x120] sm:$0xff]
        %v1141 = vld [vmem:[%s377 + $0x128] sm:$0xff]
        %v1142 = vld [vmem:[%s377 + $0x130] sm:$0xff]
        %v1143 = vld [vmem:[%s377 + $0x138] sm:$0xff]
        %v1144 = vld [vmem:[%s377 + $0x140] sm:$0xff]
        %v1145 = vld [vmem:[%s377 + $0x148] sm:$0xff]
        %v1146 = vld [vmem:[%s377 + $0x150] sm:$0xff]
        %v1147 = vld [vmem:[%s377 + $0x158] sm:$0xff]
        %v1148 = vld [vmem:[%s377 + $0x160] sm:$0xff]
        %v1149 = vld [vmem:[%s377 + $0x168] sm:$0xff]
        %v1150 = vld [vmem:[%s377 + $0x170] sm:$0xff]
        %v1151 = vld [vmem:[%s377 + $0x178] sm:$0xff]
        %v1152 = vld [vmem:[%s377 + $0x180] sm:$0xff]
        %v1153 = vld [vmem:[%s377 + $0x188] sm:$0xff]
        %v1154 = vld [vmem:[%s377 + $0x190] sm:$0xff]
        %v1155 = vld [vmem:[%s377 + $0x198] sm:$0xff]
        %v1156 = vld [vmem:[%s377 + $0x1a0] sm:$0xff]
        %v1157 = vld [vmem:[%s377 + $0x1a8] sm:$0xff]
        %v1158 = vld [vmem:[%s377 + $0x1b0] sm:$0xff]
        %v1159 = vld [vmem:[%s377 + $0x1b8] sm:$0xff]
        %v1160 = vld [vmem:[%s377 + $0x1c0] sm:$0xff]
        %v1161 = vld [vmem:[%s377 + $0x1c8] sm:$0xff]
        %v1162 = vld [vmem:[%s377 + $0x1d0] sm:$0xff]
        %v1163 = vld [vmem:[%s377 + $0x1d8] sm:$0xff]
        %v1164 = vld [vmem:[%s377 + $0x1e0] sm:$0xff]
        %v1165 = vld [vmem:[%s377 + $0x1e8] sm:$0xff]
        %v1166 = vld [vmem:[%s377 + $0x1f0] sm:$0xff]
        %v1167 = vld [vmem:[%s377 + $0x1f8] sm:$0xff]
        %v1168 = vld [vmem:[#allocation2] sm:$0xf]
        %v1169 = vld [vmem:[#allocation2 + $0x4] sm:$0xf]
        %v1170 = vld [vmem:[#allocation2 + $0x8] sm:$0xf]
        %v1171 = vld [vmem:[#allocation2 + $0xc] sm:$0xf]
        %v1172 = vld [vmem:[#allocation2 + $0x10] sm:$0xf]
        %v1173 = vld [vmem:[#allocation2 + $0x14] sm:$0xf]
        %v1174 = vld [vmem:[#allocation2 + $0x18] sm:$0xf]
        %v1175 = vld [vmem:[#allocation2 + $0x1c] sm:$0xf]
        %v1176 = vld [vmem:[#allocation2 + $0x20] sm:$0xf]
        %v1177 = vld [vmem:[#allocation2 + $0x24] sm:$0xf]
        %v1178 = vld [vmem:[#allocation2 + $0x28] sm:$0xf]
        %v1179 = vld [vmem:[#allocation2 + $0x2c] sm:$0xf]
        %v1180 = vld [vmem:[#allocation2 + $0x30] sm:$0xf]
        %v1181 = vld [vmem:[#allocation2 + $0x34] sm:$0xf]
        %v1182 = vld [vmem:[#allocation2 + $0x38] sm:$0xf]
        %v1183 = vld [vmem:[#allocation2 + $0x3c] sm:$0xf]
        %v1184 = vld [vmem:[#allocation2 + $0x40] sm:$0xf]
        %v1185 = vld [vmem:[#allocation2 + $0x44] sm:$0xf]
        %v1186 = vld [vmem:[#allocation2 + $0x48] sm:$0xf]
        %v1187 = vld [vmem:[#allocation2 + $0x4c] sm:$0xf]
        %v1188 = vld [vmem:[#allocation2 + $0x50] sm:$0xf]
        %v1189 = vld [vmem:[#allocation2 + $0x54] sm:$0xf]
        %v1190 = vld [vmem:[#allocation2 + $0x58] sm:$0xf]
        %v1191 = vld [vmem:[#allocation2 + $0x5c] sm:$0xf]
        %v1192 = vld [vmem:[#allocation2 + $0x60] sm:$0xf]
        %v1193 = vld [vmem:[#allocation2 + $0x64] sm:$0xf]
        %v1194 = vld [vmem:[#allocation2 + $0x68] sm:$0xf]
        %v1195 = vld [vmem:[#allocation2 + $0x6c] sm:$0xf]
        %v1196 = vld [vmem:[#allocation2 + $0x70] sm:$0xf]
        %v1197 = vld [vmem:[#allocation2 + $0x74] sm:$0xf]
        %v1198 = vld [vmem:[#allocation2 + $0x78] sm:$0xf]
        %v1199 = vld [vmem:[#allocation2 + $0x7c] sm:$0xf]
        %v1200 = vld [vmem:[#allocation2 + $0x80] sm:$0xf]
        %v1201 = vld [vmem:[#allocation2 + $0x84] sm:$0xf]
        %v1202 = vld [vmem:[#allocation2 + $0x88] sm:$0xf]
        %v1203 = vld [vmem:[#allocation2 + $0x8c] sm:$0xf]
        %v1204 = vld [vmem:[#allocation2 + $0x90] sm:$0xf]
        %v1205 = vld [vmem:[#allocation2 + $0x94] sm:$0xf]
        %v1206 = vld [vmem:[#allocation2 + $0x98] sm:$0xf]
        %v1207 = vld [vmem:[#allocation2 + $0x9c] sm:$0xf]
        %v1208 = vld [vmem:[#allocation2 + $0xa0] sm:$0xf]
        %v1209 = vld [vmem:[#allocation2 + $0xa4] sm:$0xf]
        %v1210 = vld [vmem:[#allocation2 + $0xa8] sm:$0xf]
        %v1211 = vld [vmem:[#allocation2 + $0xac] sm:$0xf]
        %v1212 = vld [vmem:[#allocation2 + $0xb0] sm:$0xf]
        %v1213 = vld [vmem:[#allocation2 + $0xb4] sm:$0xf]
        %v1214 = vld [vmem:[#allocation2 + $0xb8] sm:$0xf]
        %v1215 = vld [vmem:[#allocation2 + $0xbc] sm:$0xf]
        %v1216 = vld [vmem:[#allocation2 + $0xc0] sm:$0xf]
        %v1217 = vld [vmem:[#allocation2 + $0xc4] sm:$0xf]
        %v1218 = vld [vmem:[#allocation2 + $0xc8] sm:$0xf]
        %v1219 = vld [vmem:[#allocation2 + $0xcc] sm:$0xf]
        %v1220 = vld [vmem:[#allocation2 + $0xd0] sm:$0xf]
        %v1221 = vld [vmem:[#allocation2 + $0xd4] sm:$0xf]
        %v1222 = vld [vmem:[#allocation2 + $0xd8] sm:$0xf]
        %v1223 = vld [vmem:[#allocation2 + $0xdc] sm:$0xf]
        %v1224 = vld [vmem:[#allocation2 + $0xe0] sm:$0xf]
        %v1225 = vld [vmem:[#allocation2 + $0xe4] sm:$0xf]
        %v1226 = vld [vmem:[#allocation2 + $0xe8] sm:$0xf]
        %v1227 = vld [vmem:[#allocation2 + $0xec] sm:$0xf]
        %v1228 = vld [vmem:[#allocation2 + $0xf0] sm:$0xf]
        %v1229 = vld [vmem:[#allocation2 + $0xf4] sm:$0xf]
        %v1230 = vld [vmem:[#allocation2 + $0xf8] sm:$0xf]
        %v1231 = vld [vmem:[#allocation2 + $0xfc] sm:$0xf]
        %v1232 = vld [vmem:[%s427] sm:$0xff]
        %v1233 = vld [vmem:[%s427 + $0x8] sm:$0xff]
        %v1234 = vld [vmem:[%s427 + $0x10] sm:$0xff]
        %v1235 = vld [vmem:[%s427 + $0x18] sm:$0xff]
        %v1236 = vld [vmem:[%s427 + $0x20] sm:$0xff]
        %v1237 = vld [vmem:[%s427 + $0x28] sm:$0xff]
        %v1238 = vld [vmem:[%s427 + $0x30] sm:$0xff]
        %v1239 = vld [vmem:[%s427 + $0x38] sm:$0xff]
        %v1240 = vld [vmem:[%s427 + $0x40] sm:$0xff]
        %v1241 = vld [vmem:[%s427 + $0x48] sm:$0xff]
        %v1242 = vld [vmem:[%s427 + $0x50] sm:$0xff]
        %v1243 = vld [vmem:[%s427 + $0x58] sm:$0xff]
        %v1244 = vld [vmem:[%s427 + $0x60] sm:$0xff]
        %v1245 = vld [vmem:[%s427 + $0x68] sm:$0xff]
        %v1246 = vld [vmem:[%s427 + $0x70] sm:$0xff]
        %v1247 = vld [vmem:[%s427 + $0x78] sm:$0xff]
        %v1248 = vld [vmem:[%s427 + $0x80] sm:$0xff]
        %v1249 = vld [vmem:[%s427 + $0x88] sm:$0xff]
        %v1250 = vld [vmem:[%s427 + $0x90] sm:$0xff]
        %v1251 = vld [vmem:[%s427 + $0x98] sm:$0xff]
        %v1252 = vld [vmem:[%s427 + $0xa0] sm:$0xff]
        %v1253 = vld [vmem:[%s427 + $0xa8] sm:$0xff]
        %v1254 = vld [vmem:[%s427 + $0xb0] sm:$0xff]
        %v1255 = vld [vmem:[%s427 + $0xb8] sm:$0xff]
        %v1256 = vld [vmem:[%s427 + $0xc0] sm:$0xff]
        %v1257 = vld [vmem:[%s427 + $0xc8] sm:$0xff]
        %v1258 = vld [vmem:[%s427 + $0xd0] sm:$0xff]
        %v1259 = vld [vmem:[%s427 + $0xd8] sm:$0xff]
        %v1260 = vld [vmem:[%s427 + $0xe0] sm:$0xff]
        %v1261 = vld [vmem:[%s427 + $0xe8] sm:$0xff]
        %v1262 = vld [vmem:[%s427 + $0xf0] sm:$0xff]
        %v1263 = vld [vmem:[%s427 + $0xf8] sm:$0xff]
        %1265 = vset.pattern.permute.xlu0 0
        %1266 = vperm.xlu0 %1265, %v1232
        %v1267 = vpop.permute.xlu0 %1266
        %1270 = vset.pattern.permute.xlu0 0
        %1271 = vperm.xlu0 %1270, %v1233
        %v1272 = vpop.permute.xlu0 %1271
        %1275 = vset.pattern.permute.xlu0 0
        %1276 = vperm.xlu0 %1275, %v1234
        %v1277 = vpop.permute.xlu0 %1276
        %1280 = vset.pattern.permute.xlu0 0
        %1281 = vperm.xlu0 %1280, %v1235
        %v1282 = vpop.permute.xlu0 %1281
        %1285 = vset.pattern.permute.xlu0 0
        %1286 = vperm.xlu0 %1285, %v1236
        %v1287 = vpop.permute.xlu0 %1286
        %1290 = vset.pattern.permute.xlu0 0
        %1291 = vperm.xlu0 %1290, %v1237
        %v1292 = vpop.permute.xlu0 %1291
        %1295 = vset.pattern.permute.xlu0 0
        %1296 = vperm.xlu0 %1295, %v1238
        %v1297 = vpop.permute.xlu0 %1296
        %1300 = vset.pattern.permute.xlu0 0
        %1301 = vperm.xlu0 %1300, %v1239
        %v1302 = vpop.permute.xlu0 %1301
        %1305 = vset.pattern.permute.xlu0 0
        %1306 = vperm.xlu0 %1305, %v1240
        %v1307 = vpop.permute.xlu0 %1306
        %1310 = vset.pattern.permute.xlu0 0
        %1311 = vperm.xlu0 %1310, %v1241
        %v1312 = vpop.permute.xlu0 %1311
        %1315 = vset.pattern.permute.xlu0 0
        %1316 = vperm.xlu0 %1315, %v1242
        %v1317 = vpop.permute.xlu0 %1316
        %1320 = vset.pattern.permute.xlu0 0
        %1321 = vperm.xlu0 %1320, %v1243
        %v1322 = vpop.permute.xlu0 %1321
        %1325 = vset.pattern.permute.xlu0 0
        %1326 = vperm.xlu0 %1325, %v1244
        %v1327 = vpop.permute.xlu0 %1326
        %1330 = vset.pattern.permute.xlu0 0
        %1331 = vperm.xlu0 %1330, %v1245
        %v1332 = vpop.permute.xlu0 %1331
        %1335 = vset.pattern.permute.xlu0 0
        %1336 = vperm.xlu0 %1335, %v1246
        %v1337 = vpop.permute.xlu0 %1336
        %1340 = vset.pattern.permute.xlu0 0
        %1341 = vperm.xlu0 %1340, %v1247
        %v1342 = vpop.permute.xlu0 %1341
        %1345 = vset.pattern.permute.xlu0 0
        %1346 = vperm.xlu0 %1345, %v1248
        %v1347 = vpop.permute.xlu0 %1346
        %1350 = vset.pattern.permute.xlu0 0
        %1351 = vperm.xlu0 %1350, %v1249
        %v1352 = vpop.permute.xlu0 %1351
        %1355 = vset.pattern.permute.xlu0 0
        %1356 = vperm.xlu0 %1355, %v1250
        %v1357 = vpop.permute.xlu0 %1356
        %1360 = vset.pattern.permute.xlu0 0
        %1361 = vperm.xlu0 %1360, %v1251
        %v1362 = vpop.permute.xlu0 %1361
        %1365 = vset.pattern.permute.xlu0 0
        %1366 = vperm.xlu0 %1365, %v1252
        %v1367 = vpop.permute.xlu0 %1366
        %1370 = vset.pattern.permute.xlu0 0
        %1371 = vperm.xlu0 %1370, %v1253
        %v1372 = vpop.permute.xlu0 %1371
        %1375 = vset.pattern.permute.xlu0 0
        %1376 = vperm.xlu0 %1375, %v1254
        %v1377 = vpop.permute.xlu0 %1376
        %1380 = vset.pattern.permute.xlu0 0
        %1381 = vperm.xlu0 %1380, %v1255
        %v1382 = vpop.permute.xlu0 %1381
        %1385 = vset.pattern.permute.xlu0 0
        %1386 = vperm.xlu0 %1385, %v1256
        %v1387 = vpop.permute.xlu0 %1386
        %1390 = vset.pattern.permute.xlu0 0
        %1391 = vperm.xlu0 %1390, %v1257
        %v1392 = vpop.permute.xlu0 %1391
        %1395 = vset.pattern.permute.xlu0 0
        %1396 = vperm.xlu0 %1395, %v1258
        %v1397 = vpop.permute.xlu0 %1396
        %1400 = vset.pattern.permute.xlu0 0
        %1401 = vperm.xlu0 %1400, %v1259
        %v1402 = vpop.permute.xlu0 %1401
        %1405 = vset.pattern.permute.xlu0 0
        %1406 = vperm.xlu0 %1405, %v1260
        %v1407 = vpop.permute.xlu0 %1406
        %1410 = vset.pattern.permute.xlu0 0
        %1411 = vperm.xlu0 %1410, %v1261
        %v1412 = vpop.permute.xlu0 %1411
        %1415 = vset.pattern.permute.xlu0 0
        %1416 = vperm.xlu0 %1415, %v1262
        %v1417 = vpop.permute.xlu0 %1416
        %1420 = vset.pattern.permute.xlu0 0
        %1421 = vperm.xlu0 %1420, %v1263
        %v1422 = vpop.permute.xlu0 %1421
        %v1488 = vunpack.c.l.b16 %v1104
        %v1489 = vunpack.c.h.b16 %v1104
        %v1490 = vunpack.c.l.b16 %v1105
        %v1491 = vunpack.c.h.b16 %v1105
        %v1492 = vunpack.c.l.b16 %v1106
        %v1493 = vunpack.c.h.b16 %v1106
        %v1494 = vunpack.c.l.b16 %v1107
        %v1495 = vunpack.c.h.b16 %v1107
        %v1496 = vunpack.c.l.b16 %v1108
        %v1497 = vunpack.c.h.b16 %v1108
        %v1498 = vunpack.c.l.b16 %v1109
        %v1499 = vunpack.c.h.b16 %v1109
        %v1500 = vunpack.c.l.b16 %v1110
        %v1501 = vunpack.c.h.b16 %v1110
        %v1502 = vunpack.c.l.b16 %v1111
        %v1503 = vunpack.c.h.b16 %v1111
        %v1504 = vunpack.c.l.b16 %v1112
        %v1505 = vunpack.c.h.b16 %v1112
        %v1506 = vunpack.c.l.b16 %v1113
        %v1507 = vunpack.c.h.b16 %v1113
        %v1508 = vunpack.c.l.b16 %v1114
        %v1509 = vunpack.c.h.b16 %v1114
        %v1510 = vunpack.c.l.b16 %v1115
        %v1511 = vunpack.c.h.b16 %v1115
        %v1512 = vunpack.c.l.b16 %v1116
        %v1513 = vunpack.c.h.b16 %v1116
        %v1514 = vunpack.c.l.b16 %v1117
        %v1515 = vunpack.c.h.b16 %v1117
        %v1516 = vunpack.c.l.b16 %v1118
        %v1517 = vunpack.c.h.b16 %v1118
        %v1518 = vunpack.c.l.b16 %v1119
        %v1519 = vunpack.c.h.b16 %v1119
        %v1520 = vunpack.c.l.b16 %v1120
        %v1521 = vunpack.c.h.b16 %v1120
        %v1522 = vunpack.c.l.b16 %v1121
        %v1523 = vunpack.c.h.b16 %v1121
        %v1524 = vunpack.c.l.b16 %v1122
        %v1525 = vunpack.c.h.b16 %v1122
        %v1526 = vunpack.c.l.b16 %v1123
        %v1527 = vunpack.c.h.b16 %v1123
        %v1528 = vunpack.c.l.b16 %v1124
        %v1529 = vunpack.c.h.b16 %v1124
        %v1530 = vunpack.c.l.b16 %v1125
        %v1531 = vunpack.c.h.b16 %v1125
        %v1532 = vunpack.c.l.b16 %v1126
        %v1533 = vunpack.c.h.b16 %v1126
        %v1534 = vunpack.c.l.b16 %v1127
        %v1535 = vunpack.c.h.b16 %v1127
        %v1536 = vunpack.c.l.b16 %v1128
        %v1537 = vunpack.c.h.b16 %v1128
        %v1538 = vunpack.c.l.b16 %v1129
        %v1539 = vunpack.c.h.b16 %v1129
        %v1540 = vunpack.c.l.b16 %v1130
        %v1541 = vunpack.c.h.b16 %v1130
        %v1542 = vunpack.c.l.b16 %v1131
        %v1543 = vunpack.c.h.b16 %v1131
        %v1544 = vunpack.c.l.b16 %v1132
        %v1545 = vunpack.c.h.b16 %v1132
        %v1546 = vunpack.c.l.b16 %v1133
        %v1547 = vunpack.c.h.b16 %v1133
        %v1548 = vunpack.c.l.b16 %v1134
        %v1549 = vunpack.c.h.b16 %v1134
        %v1550 = vunpack.c.l.b16 %v1135
        %v1551 = vunpack.c.h.b16 %v1135
        %v1552 = vunpack.c.l.b16 %v1136
        %v1553 = vunpack.c.h.b16 %v1136
        %v1554 = vunpack.c.l.b16 %v1137
        %v1555 = vunpack.c.h.b16 %v1137
        %v1556 = vunpack.c.l.b16 %v1138
        %v1557 = vunpack.c.h.b16 %v1138
        %v1558 = vunpack.c.l.b16 %v1139
        %v1559 = vunpack.c.h.b16 %v1139
        %v1560 = vunpack.c.l.b16 %v1140
        %v1561 = vunpack.c.h.b16 %v1140
        %v1562 = vunpack.c.l.b16 %v1141
        %v1563 = vunpack.c.h.b16 %v1141
        %v1564 = vunpack.c.l.b16 %v1142
        %v1565 = vunpack.c.h.b16 %v1142
        %v1566 = vunpack.c.l.b16 %v1143
        %v1567 = vunpack.c.h.b16 %v1143
        %v1568 = vunpack.c.l.b16 %v1144
        %v1569 = vunpack.c.h.b16 %v1144
        %v1570 = vunpack.c.l.b16 %v1145
        %v1571 = vunpack.c.h.b16 %v1145
        %v1572 = vunpack.c.l.b16 %v1146
        %v1573 = vunpack.c.h.b16 %v1146
        %v1574 = vunpack.c.l.b16 %v1147
        %v1575 = vunpack.c.h.b16 %v1147
        %v1576 = vunpack.c.l.b16 %v1148
        %v1577 = vunpack.c.h.b16 %v1148
        %v1578 = vunpack.c.l.b16 %v1149
        %v1579 = vunpack.c.h.b16 %v1149
        %v1580 = vunpack.c.l.b16 %v1150
        %v1581 = vunpack.c.h.b16 %v1150
        %v1582 = vunpack.c.l.b16 %v1151
        %v1583 = vunpack.c.h.b16 %v1151
        %v1584 = vunpack.c.l.b16 %v1152
        %v1585 = vunpack.c.h.b16 %v1152
        %v1586 = vunpack.c.l.b16 %v1153
        %v1587 = vunpack.c.h.b16 %v1153
        %v1588 = vunpack.c.l.b16 %v1154
        %v1589 = vunpack.c.h.b16 %v1154
        %v1590 = vunpack.c.l.b16 %v1155
        %v1591 = vunpack.c.h.b16 %v1155
        %v1592 = vunpack.c.l.b16 %v1156
        %v1593 = vunpack.c.h.b16 %v1156
        %v1594 = vunpack.c.l.b16 %v1157
        %v1595 = vunpack.c.h.b16 %v1157
        %v1596 = vunpack.c.l.b16 %v1158
        %v1597 = vunpack.c.h.b16 %v1158
        %v1598 = vunpack.c.l.b16 %v1159
        %v1599 = vunpack.c.h.b16 %v1159
        %v1600 = vunpack.c.l.b16 %v1160
        %v1601 = vunpack.c.h.b16 %v1160
        %v1602 = vunpack.c.l.b16 %v1161
        %v1603 = vunpack.c.h.b16 %v1161
        %v1604 = vunpack.c.l.b16 %v1162
        %v1605 = vunpack.c.h.b16 %v1162
        %v1606 = vunpack.c.l.b16 %v1163
        %v1607 = vunpack.c.h.b16 %v1163
        %v1608 = vunpack.c.l.b16 %v1164
        %v1609 = vunpack.c.h.b16 %v1164
        %v1610 = vunpack.c.l.b16 %v1165
        %v1611 = vunpack.c.h.b16 %v1165
        %v1612 = vunpack.c.l.b16 %v1166
        %v1613 = vunpack.c.h.b16 %v1166
        %v1614 = vunpack.c.l.b16 %v1167
        %v1615 = vunpack.c.h.b16 %v1167
        %v1616 = vpack.c.b16 %v1492, %v1488
        %v1617 = vpack.c.b16 %v1493, %v1489
        %v1618 = vpack.c.b16 %v1494, %v1490
        %v1619 = vpack.c.b16 %v1495, %v1491
        %v1620 = vpack.c.b16 %v1500, %v1496
        %v1621 = vpack.c.b16 %v1501, %v1497
        %v1622 = vpack.c.b16 %v1502, %v1498
        %v1623 = vpack.c.b16 %v1503, %v1499
        %v1624 = vpack.c.b16 %v1508, %v1504
        %v1625 = vpack.c.b16 %v1509, %v1505
        %v1626 = vpack.c.b16 %v1510, %v1506
        %v1627 = vpack.c.b16 %v1511, %v1507
        %v1628 = vpack.c.b16 %v1516, %v1512
        %v1629 = vpack.c.b16 %v1517, %v1513
        %v1630 = vpack.c.b16 %v1518, %v1514
        %v1631 = vpack.c.b16 %v1519, %v1515
        %v1632 = vpack.c.b16 %v1524, %v1520
        %v1633 = vpack.c.b16 %v1525, %v1521
        %v1634 = vpack.c.b16 %v1526, %v1522
        %v1635 = vpack.c.b16 %v1527, %v1523
        %v1636 = vpack.c.b16 %v1532, %v1528
        %v1637 = vpack.c.b16 %v1533, %v1529
        %v1638 = vpack.c.b16 %v1534, %v1530
        %v1639 = vpack.c.b16 %v1535, %v1531
        %v1640 = vpack.c.b16 %v1540, %v1536
        %v1641 = vpack.c.b16 %v1541, %v1537
        %v1642 = vpack.c.b16 %v1542, %v1538
        %v1643 = vpack.c.b16 %v1543, %v1539
        %v1644 = vpack.c.b16 %v1548, %v1544
        %v1645 = vpack.c.b16 %v1549, %v1545
        %v1646 = vpack.c.b16 %v1550, %v1546
        %v1647 = vpack.c.b16 %v1551, %v1547
        %v1648 = vpack.c.b16 %v1556, %v1552
        %v1649 = vpack.c.b16 %v1557, %v1553
        %v1650 = vpack.c.b16 %v1558, %v1554
        %v1651 = vpack.c.b16 %v1559, %v1555
        %v1652 = vpack.c.b16 %v1564, %v1560
        %v1653 = vpack.c.b16 %v1565, %v1561
        %v1654 = vpack.c.b16 %v1566, %v1562
        %v1655 = vpack.c.b16 %v1567, %v1563
        %v1656 = vpack.c.b16 %v1572, %v1568
        %v1657 = vpack.c.b16 %v1573, %v1569
        %v1658 = vpack.c.b16 %v1574, %v1570
        %v1659 = vpack.c.b16 %v1575, %v1571
        %v1660 = vpack.c.b16 %v1580, %v1576
        %v1661 = vpack.c.b16 %v1581, %v1577
        %v1662 = vpack.c.b16 %v1582, %v1578
        %v1663 = vpack.c.b16 %v1583, %v1579
        %v1664 = vpack.c.b16 %v1588, %v1584
        %v1665 = vpack.c.b16 %v1589, %v1585
        %v1666 = vpack.c.b16 %v1590, %v1586
        %v1667 = vpack.c.b16 %v1591, %v1587
        %v1668 = vpack.c.b16 %v1596, %v1592
        %v1669 = vpack.c.b16 %v1597, %v1593
        %v1670 = vpack.c.b16 %v1598, %v1594
        %v1671 = vpack.c.b16 %v1599, %v1595
        %v1672 = vpack.c.b16 %v1604, %v1600
        %v1673 = vpack.c.b16 %v1605, %v1601
        %v1674 = vpack.c.b16 %v1606, %v1602
        %v1675 = vpack.c.b16 %v1607, %v1603
        %v1676 = vpack.c.b16 %v1612, %v1608
        %v1677 = vpack.c.b16 %v1613, %v1609
        %v1678 = vpack.c.b16 %v1614, %v1610
        %v1679 = vpack.c.b16 %v1615, %v1611
        %v1808 = vunpack.c.l.b16 %v1168
        %v1809 = vunpack.c.l.b16 %v1169
        %v1810 = vunpack.c.l.b16 %v1170
        %v1811 = vunpack.c.l.b16 %v1171
        %v1812 = vunpack.c.l.b16 %v1172
        %v1813 = vunpack.c.l.b16 %v1173
        %v1814 = vunpack.c.l.b16 %v1174
        %v1815 = vunpack.c.l.b16 %v1175
        %v1816 = vunpack.c.l.b16 %v1176
        %v1817 = vunpack.c.l.b16 %v1177
        %v1818 = vunpack.c.l.b16 %v1178
        %v1819 = vunpack.c.l.b16 %v1179
        %v1820 = vunpack.c.l.b16 %v1180
        %v1821 = vunpack.c.l.b16 %v1181
        %v1822 = vunpack.c.l.b16 %v1182
        %v1823 = vunpack.c.l.b16 %v1183
        %v1824 = vunpack.c.l.b16 %v1184
        %v1825 = vunpack.c.l.b16 %v1185
        %v1826 = vunpack.c.l.b16 %v1186
        %v1827 = vunpack.c.l.b16 %v1187
        %v1828 = vunpack.c.l.b16 %v1188
        %v1829 = vunpack.c.l.b16 %v1189
        %v1830 = vunpack.c.l.b16 %v1190
        %v1831 = vunpack.c.l.b16 %v1191
        %v1832 = vunpack.c.l.b16 %v1192
        %v1833 = vunpack.c.l.b16 %v1193
        %v1834 = vunpack.c.l.b16 %v1194
        %v1835 = vunpack.c.l.b16 %v1195
        %v1836 = vunpack.c.l.b16 %v1196
        %v1837 = vunpack.c.l.b16 %v1197
        %v1838 = vunpack.c.l.b16 %v1198
        %v1839 = vunpack.c.l.b16 %v1199
        %v1840 = vunpack.c.l.b16 %v1200
        %v1841 = vunpack.c.l.b16 %v1201
        %v1842 = vunpack.c.l.b16 %v1202
        %v1843 = vunpack.c.l.b16 %v1203
        %v1844 = vunpack.c.l.b16 %v1204
        %v1845 = vunpack.c.l.b16 %v1205
        %v1846 = vunpack.c.l.b16 %v1206
        %v1847 = vunpack.c.l.b16 %v1207
        %v1848 = vunpack.c.l.b16 %v1208
        %v1849 = vunpack.c.l.b16 %v1209
        %v1850 = vunpack.c.l.b16 %v1210
        %v1851 = vunpack.c.l.b16 %v1211
        %v1852 = vunpack.c.l.b16 %v1212
        %v1853 = vunpack.c.l.b16 %v1213
        %v1854 = vunpack.c.l.b16 %v1214
        %v1855 = vunpack.c.l.b16 %v1215
        %v1856 = vunpack.c.l.b16 %v1216
        %v1857 = vunpack.c.l.b16 %v1217
        %v1858 = vunpack.c.l.b16 %v1218
        %v1859 = vunpack.c.l.b16 %v1219
        %v1860 = vunpack.c.l.b16 %v1220
        %v1861 = vunpack.c.l.b16 %v1221
        %v1862 = vunpack.c.l.b16 %v1222
        %v1863 = vunpack.c.l.b16 %v1223
        %v1864 = vunpack.c.l.b16 %v1224
        %v1865 = vunpack.c.l.b16 %v1225
        %v1866 = vunpack.c.l.b16 %v1226
        %v1867 = vunpack.c.l.b16 %v1227
        %v1868 = vunpack.c.l.b16 %v1228
        %v1869 = vunpack.c.l.b16 %v1229
        %v1870 = vunpack.c.l.b16 %v1230
        %v1871 = vunpack.c.l.b16 %v1231
        %v1872 = vpack.c.b16 %v1809, %v1808
        %v1873 = vpack.c.b16 %v1811, %v1810
        %v1874 = vpack.c.b16 %v1813, %v1812
        %v1875 = vpack.c.b16 %v1815, %v1814
        %v1876 = vpack.c.b16 %v1817, %v1816
        %v1877 = vpack.c.b16 %v1819, %v1818
        %v1878 = vpack.c.b16 %v1821, %v1820
        %v1879 = vpack.c.b16 %v1823, %v1822
        %v1880 = vpack.c.b16 %v1825, %v1824
        %v1881 = vpack.c.b16 %v1827, %v1826
        %v1882 = vpack.c.b16 %v1829, %v1828
        %v1883 = vpack.c.b16 %v1831, %v1830
        %v1884 = vpack.c.b16 %v1833, %v1832
        %v1885 = vpack.c.b16 %v1835, %v1834
        %v1886 = vpack.c.b16 %v1837, %v1836
        %v1887 = vpack.c.b16 %v1839, %v1838
        %v1888 = vpack.c.b16 %v1841, %v1840
        %v1889 = vpack.c.b16 %v1843, %v1842
        %v1890 = vpack.c.b16 %v1845, %v1844
        %v1891 = vpack.c.b16 %v1847, %v1846
        %v1892 = vpack.c.b16 %v1849, %v1848
        %v1893 = vpack.c.b16 %v1851, %v1850
        %v1894 = vpack.c.b16 %v1853, %v1852
        %v1895 = vpack.c.b16 %v1855, %v1854
        %v1896 = vpack.c.b16 %v1857, %v1856
        %v1897 = vpack.c.b16 %v1859, %v1858
        %v1898 = vpack.c.b16 %v1861, %v1860
        %v1899 = vpack.c.b16 %v1863, %v1862
        %v1900 = vpack.c.b16 %v1865, %v1864
        %v1901 = vpack.c.b16 %v1867, %v1866
        %v1902 = vpack.c.b16 %v1869, %v1868
        %v1903 = vpack.c.b16 %v1871, %v1870
        %1936 = vmatprep.subr.bf16.mxu0 0
        %1937 = vmatpush1.bf16.msra.mxu0 %v1879
        %1938 = vmatprep.subr.bf16.mxu0 0
        %1939 = vmatpush1.bf16.msra.mxu0 %v1878
        %1940 = vmatprep.subr.bf16.mxu0 0
        %1941 = vmatpush1.bf16.msra.mxu0 %v1877
        %1942 = vmatprep.subr.bf16.mxu0 0
        %1943 = vmatpush1.bf16.msra.mxu0 %v1876
        %1944 = vmatprep.subr.bf16.mxu0 0
        %1945 = vmatpush1.bf16.msra.mxu0 %v1875
        %1946 = vmatprep.subr.bf16.mxu0 0
        %1947 = vmatpush1.bf16.msra.mxu0 %v1874
        %1948 = vmatprep.subr.bf16.mxu0 0
        %1949 = vmatpush1.bf16.msra.mxu0 %v1873
        %1950 = vmatprep.subr.bf16.mxu0 0
        %1951 = vmatpush1.bf16.msra.mxu0 %v1872
        %1952 = vmatprep.subr.bf16.mxu0 0
        %1953 = vmatpush2.bf16.msra.mxu0 %v1887
        %1954 = vmatprep.subr.bf16.mxu0 0
        %1955 = vmatpush2.bf16.msra.mxu0 %v1886
        %1956 = vmatprep.subr.bf16.mxu0 0
        %1957 = vmatpush2.bf16.msra.mxu0 %v1885
        %1958 = vmatprep.subr.bf16.mxu0 0
        %1959 = vmatpush2.bf16.msra.mxu0 %v1884
        %1960 = vmatprep.subr.bf16.mxu0 0
        %1961 = vmatpush2.bf16.msra.mxu0 %v1883
        %1962 = vmatprep.subr.bf16.mxu0 0
        %1963 = vmatpush2.bf16.msra.mxu0 %v1882
        %1964 = vmatprep.subr.bf16.mxu0 0
        %1965 = vmatpush2.bf16.msra.mxu0 %v1881
        %1966 = vmatprep.subr.bf16.mxu0 0
        %1967 = vmatpush2.bf16.msra.mxu0 %v1880
        %1968 = vmatprep.mubr.bf16.mxu0 %v1617
        %1969 = vmatmul.mubr.bf16.gmra.mxu0 %v1616
        %v1970 = vpop.f32.mrf.mxu0
        %v1971 = vadd.f32 %v1267, %v1970
        %v1972 = vpop.f32.mrf.mxu0
        %v1973 = vpop.f32.mrf.mxu0
        %v1974 = vadd.f32 %v1272, %v1973
        %v1975 = vpop.f32.mrf.mxu0
        %1976 = vmatprep.mubr.bf16.mxu0 %v1621
        %1977 = vmatmul.mubr.bf16.gmra.mxu0 %v1620
        %v1978 = vpop.f32.mrf.mxu0
        %v1979 = vadd.f32 %v1277, %v1978
        %v1980 = vpop.f32.mrf.mxu0
        %v1981 = vpop.f32.mrf.mxu0
        %v1982 = vadd.f32 %v1282, %v1981
        %v1983 = vpop.f32.mrf.mxu0
        %1984 = vmatprep.mubr.bf16.mxu0 %v1625
        %1985 = vmatmul.mubr.bf16.gmra.mxu0 %v1624
        %v1986 = vpop.f32.mrf.mxu0
        %v1987 = vadd.f32 %v1287, %v1986
        %v1988 = vpop.f32.mrf.mxu0
        %v1989 = vpop.f32.mrf.mxu0
        %v1990 = vadd.f32 %v1292, %v1989
        %v1991 = vpop.f32.mrf.mxu0
        %1992 = vmatprep.mubr.bf16.mxu0 %v1629
        %1993 = vmatmul.mubr.bf16.gmra.mxu0 %v1628
        %v1994 = vpop.f32.mrf.mxu0
        %v1995 = vadd.f32 %v1297, %v1994
        %v1996 = vpop.f32.mrf.mxu0
        %v1997 = vpop.f32.mrf.mxu0
        %v1998 = vadd.f32 %v1302, %v1997
        %v1999 = vpop.f32.mrf.mxu0
        %2000 = vmatprep.mubr.bf16.mxu0 %v1633
        %2001 = vmatmul.mubr.bf16.gmra.mxu0 %v1632
        %v2002 = vpop.f32.mrf.mxu0
        %v2003 = vadd.f32 %v1307, %v2002
        %v2004 = vpop.f32.mrf.mxu0
        %v2005 = vpop.f32.mrf.mxu0
        %v2006 = vadd.f32 %v1312, %v2005
        %v2007 = vpop.f32.mrf.mxu0
        %2008 = vmatprep.mubr.bf16.mxu0 %v1637
        %2009 = vmatmul.mubr.bf16.gmra.mxu0 %v1636
        %v2010 = vpop.f32.mrf.mxu0
        %v2011 = vadd.f32 %v1317, %v2010
        %v2012 = vpop.f32.mrf.mxu0
        %v2013 = vpop.f32.mrf.mxu0
        %v2014 = vadd.f32 %v1322, %v2013
        %v2015 = vpop.f32.mrf.mxu0
        %2016 = vmatprep.mubr.bf16.mxu0 %v1641
        %2017 = vmatmul.mubr.bf16.gmra.mxu0 %v1640
        %v2018 = vpop.f32.mrf.mxu0
        %v2019 = vadd.f32 %v1327, %v2018
        %v2020 = vpop.f32.mrf.mxu0
        %v2021 = vpop.f32.mrf.mxu0
        %v2022 = vadd.f32 %v1332, %v2021
        %v2023 = vpop.f32.mrf.mxu0
        %2024 = vmatprep.mubr.bf16.mxu0 %v1645
        %2025 = vmatmul.mubr.bf16.gmra.mxu0 %v1644
        %v2026 = vpop.f32.mrf.mxu0
        %v2027 = vadd.f32 %v1337, %v2026
        %v2028 = vpop.f32.mrf.mxu0
        %v2029 = vpop.f32.mrf.mxu0
        %v2030 = vadd.f32 %v1342, %v2029
        %v2031 = vpop.f32.mrf.mxu0
        %2032 = vmatprep.mubr.bf16.mxu0 %v1649
        %2033 = vmatmul.mubr.bf16.gmra.mxu0 %v1648
        %v2034 = vpop.f32.mrf.mxu0
        %v2035 = vadd.f32 %v1347, %v2034
        %v2036 = vpop.f32.mrf.mxu0
        %v2037 = vpop.f32.mrf.mxu0
        %v2038 = vadd.f32 %v1352, %v2037
        %v2039 = vpop.f32.mrf.mxu0
        %2040 = vmatprep.mubr.bf16.mxu0 %v1653
        %2041 = vmatmul.mubr.bf16.gmra.mxu0 %v1652
        %v2042 = vpop.f32.mrf.mxu0
        %v2043 = vadd.f32 %v1357, %v2042
        %v2044 = vpop.f32.mrf.mxu0
        %v2045 = vpop.f32.mrf.mxu0
        %v2046 = vadd.f32 %v1362, %v2045
        %v2047 = vpop.f32.mrf.mxu0
        %2048 = vmatprep.mubr.bf16.mxu0 %v1657
        %2049 = vmatmul.mubr.bf16.gmra.mxu0 %v1656
        %v2050 = vpop.f32.mrf.mxu0
        %v2051 = vadd.f32 %v1367, %v2050
        %v2052 = vpop.f32.mrf.mxu0
        %v2053 = vpop.f32.mrf.mxu0
        %v2054 = vadd.f32 %v1372, %v2053
        %v2055 = vpop.f32.mrf.mxu0
        %2056 = vmatprep.mubr.bf16.mxu0 %v1661
        %2057 = vmatmul.mubr.bf16.gmra.mxu0 %v1660
        %v2058 = vpop.f32.mrf.mxu0
        %v2059 = vadd.f32 %v1377, %v2058
        %v2060 = vpop.f32.mrf.mxu0
        %v2061 = vpop.f32.mrf.mxu0
        %v2062 = vadd.f32 %v1382, %v2061
        %v2063 = vpop.f32.mrf.mxu0
        %2064 = vmatprep.mubr.bf16.mxu0 %v1665
        %2065 = vmatmul.mubr.bf16.gmra.mxu0 %v1664
        %v2066 = vpop.f32.mrf.mxu0
        %v2067 = vadd.f32 %v1387, %v2066
        %v2068 = vpop.f32.mrf.mxu0
        %v2069 = vpop.f32.mrf.mxu0
        %v2070 = vadd.f32 %v1392, %v2069
        %v2071 = vpop.f32.mrf.mxu0
        %2072 = vmatprep.mubr.bf16.mxu0 %v1669
        %2073 = vmatmul.mubr.bf16.gmra.mxu0 %v1668
        %v2074 = vpop.f32.mrf.mxu0
        %v2075 = vadd.f32 %v1397, %v2074
        %v2076 = vpop.f32.mrf.mxu0
        %v2077 = vpop.f32.mrf.mxu0
        %v2078 = vadd.f32 %v1402, %v2077
        %v2079 = vpop.f32.mrf.mxu0
        %2080 = vmatprep.mubr.bf16.mxu0 %v1673
        %2081 = vmatmul.mubr.bf16.gmra.mxu0 %v1672
        %v2082 = vpop.f32.mrf.mxu0
        %v2083 = vadd.f32 %v1407, %v2082
        %v2084 = vpop.f32.mrf.mxu0
        %v2085 = vpop.f32.mrf.mxu0
        %v2086 = vadd.f32 %v1412, %v2085
        %v2087 = vpop.f32.mrf.mxu0
        %2088 = vmatprep.mubr.bf16.mxu0 %v1677
        %2089 = vmatmul.mubr.bf16.gmra.mxu0 %v1676
        %v2090 = vpop.f32.mrf.mxu0
        %v2091 = vadd.f32 %v1417, %v2090
        %v2092 = vpop.f32.mrf.mxu0
        %v2093 = vpop.f32.mrf.mxu0
        %v2094 = vadd.f32 %v1422, %v2093
        %v2095 = vpop.f32.mrf.mxu0
        %2096 = vdwg.mxu0
        %2097 = vmatprep.subr.bf16.mxu0 0
        %2098 = vmatpush1.bf16.msra.mxu0 %v1895
        %2099 = vmatprep.subr.bf16.mxu0 0
        %2100 = vmatpush1.bf16.msra.mxu0 %v1894
        %2101 = vmatprep.subr.bf16.mxu0 0
        %2102 = vmatpush1.bf16.msra.mxu0 %v1893
        %2103 = vmatprep.subr.bf16.mxu0 0
        %2104 = vmatpush1.bf16.msra.mxu0 %v1892
        %2105 = vmatprep.subr.bf16.mxu0 0
        %2106 = vmatpush1.bf16.msra.mxu0 %v1891
        %2107 = vmatprep.subr.bf16.mxu0 0
        %2108 = vmatpush1.bf16.msra.mxu0 %v1890
        %2109 = vmatprep.subr.bf16.mxu0 0
        %2110 = vmatpush1.bf16.msra.mxu0 %v1889
        %2111 = vmatprep.subr.bf16.mxu0 0
        %2112 = vmatpush1.bf16.msra.mxu0 %v1888
        %2113 = vmatprep.subr.bf16.mxu0 0
        %2114 = vmatpush2.bf16.msra.mxu0 %v1903
        %2115 = vmatprep.subr.bf16.mxu0 0
        %2116 = vmatpush2.bf16.msra.mxu0 %v1902
        %2117 = vmatprep.subr.bf16.mxu0 0
        %2118 = vmatpush2.bf16.msra.mxu0 %v1901
        %2119 = vmatprep.subr.bf16.mxu0 0
        %2120 = vmatpush2.bf16.msra.mxu0 %v1900
        %2121 = vmatprep.subr.bf16.mxu0 0
        %2122 = vmatpush2.bf16.msra.mxu0 %v1899
        %2123 = vmatprep.subr.bf16.mxu0 0
        %2124 = vmatpush2.bf16.msra.mxu0 %v1898
        %2125 = vmatprep.subr.bf16.mxu0 0
        %2126 = vmatpush2.bf16.msra.mxu0 %v1897
        %2127 = vmatprep.subr.bf16.mxu0 0
        %2128 = vmatpush2.bf16.msra.mxu0 %v1896
        %2129 = vmatprep.mubr.bf16.mxu0 %v1619
        %2130 = vmatmul.mubr.bf16.gmra.mxu0 %v1618
        %v2131 = vpop.f32.mrf.mxu0
        %v2132 = vadd.f32 %v1971, %v2131
        %v2133 = vpop.f32.mrf.mxu0
        %v2134 = vpop.f32.mrf.mxu0
        %v2135 = vadd.f32 %v1974, %v2134
        %v2136 = vpop.f32.mrf.mxu0
        %2137 = vmatprep.mubr.bf16.mxu0 %v1623
        %2138 = vmatmul.mubr.bf16.gmra.mxu0 %v1622
        %v2139 = vpop.f32.mrf.mxu0
        %v2140 = vadd.f32 %v1979, %v2139
        %v2141 = vpop.f32.mrf.mxu0
        %v2142 = vpop.f32.mrf.mxu0
        %v2143 = vadd.f32 %v1982, %v2142
        %v2144 = vpop.f32.mrf.mxu0
        %2145 = vmatprep.mubr.bf16.mxu0 %v1627
        %2146 = vmatmul.mubr.bf16.gmra.mxu0 %v1626
        %v2147 = vpop.f32.mrf.mxu0
        %v2148 = vadd.f32 %v1987, %v2147
        %v2149 = vpop.f32.mrf.mxu0
        %v2150 = vpop.f32.mrf.mxu0
        %v2151 = vadd.f32 %v1990, %v2150
        %v2152 = vpop.f32.mrf.mxu0
        %2153 = vmatprep.mubr.bf16.mxu0 %v1631
        %2154 = vmatmul.mubr.bf16.gmra.mxu0 %v1630
        %v2155 = vpop.f32.mrf.mxu0
        %v2156 = vadd.f32 %v1995, %v2155
        %v2157 = vpop.f32.mrf.mxu0
        %v2158 = vpop.f32.mrf.mxu0
        %v2159 = vadd.f32 %v1998, %v2158
        %v2160 = vpop.f32.mrf.mxu0
        %2161 = vmatprep.mubr.bf16.mxu0 %v1635
        %2162 = vmatmul.mubr.bf16.gmra.mxu0 %v1634
        %v2163 = vpop.f32.mrf.mxu0
        %v2164 = vadd.f32 %v2003, %v2163
        %v2165 = vpop.f32.mrf.mxu0
        %v2166 = vpop.f32.mrf.mxu0
        %v2167 = vadd.f32 %v2006, %v2166
        %v2168 = vpop.f32.mrf.mxu0
        %2169 = vmatprep.mubr.bf16.mxu0 %v1639
        %2170 = vmatmul.mubr.bf16.gmra.mxu0 %v1638
        %v2171 = vpop.f32.mrf.mxu0
        %v2172 = vadd.f32 %v2011, %v2171
        %v2173 = vpop.f32.mrf.mxu0
        %v2174 = vpop.f32.mrf.mxu0
        %v2175 = vadd.f32 %v2014, %v2174
        %v2176 = vpop.f32.mrf.mxu0
        %2177 = vmatprep.mubr.bf16.mxu0 %v1643
        %2178 = vmatmul.mubr.bf16.gmra.mxu0 %v1642
        %v2179 = vpop.f32.mrf.mxu0
        %v2180 = vadd.f32 %v2019, %v2179
        %v2181 = vpop.f32.mrf.mxu0
        %v2182 = vpop.f32.mrf.mxu0
        %v2183 = vadd.f32 %v2022, %v2182
        %v2184 = vpop.f32.mrf.mxu0
        %2185 = vmatprep.mubr.bf16.mxu0 %v1647
        %2186 = vmatmul.mubr.bf16.gmra.mxu0 %v1646
        %v2187 = vpop.f32.mrf.mxu0
        %v2188 = vadd.f32 %v2027, %v2187
        %v2189 = vpop.f32.mrf.mxu0
        %v2190 = vpop.f32.mrf.mxu0
        %v2191 = vadd.f32 %v2030, %v2190
        %v2192 = vpop.f32.mrf.mxu0
        %2193 = vmatprep.mubr.bf16.mxu0 %v1651
        %2194 = vmatmul.mubr.bf16.gmra.mxu0 %v1650
        %v2195 = vpop.f32.mrf.mxu0
        %v2196 = vadd.f32 %v2035, %v2195
        %v2197 = vpop.f32.mrf.mxu0
        %v2198 = vpop.f32.mrf.mxu0
        %v2199 = vadd.f32 %v2038, %v2198
        %v2200 = vpop.f32.mrf.mxu0
        %2201 = vmatprep.mubr.bf16.mxu0 %v1655
        %2202 = vmatmul.mubr.bf16.gmra.mxu0 %v1654
        %v2203 = vpop.f32.mrf.mxu0
        %v2204 = vadd.f32 %v2043, %v2203
        %v2205 = vpop.f32.mrf.mxu0
        %v2206 = vpop.f32.mrf.mxu0
        %v2207 = vadd.f32 %v2046, %v2206
        %v2208 = vpop.f32.mrf.mxu0
        %2209 = vmatprep.mubr.bf16.mxu0 %v1659
        %2210 = vmatmul.mubr.bf16.gmra.mxu0 %v1658
        %v2211 = vpop.f32.mrf.mxu0
        %v2212 = vadd.f32 %v2051, %v2211
        %v2213 = vpop.f32.mrf.mxu0
        %v2214 = vpop.f32.mrf.mxu0
        %v2215 = vadd.f32 %v2054, %v2214
        %v2216 = vpop.f32.mrf.mxu0
        %2217 = vmatprep.mubr.bf16.mxu0 %v1663
        %2218 = vmatmul.mubr.bf16.gmra.mxu0 %v1662
        %v2219 = vpop.f32.mrf.mxu0
        %v2220 = vadd.f32 %v2059, %v2219
        %v2221 = vpop.f32.mrf.mxu0
        %v2222 = vpop.f32.mrf.mxu0
        %v2223 = vadd.f32 %v2062, %v2222
        %v2224 = vpop.f32.mrf.mxu0
        %2225 = vmatprep.mubr.bf16.mxu0 %v1667
        %2226 = vmatmul.mubr.bf16.gmra.mxu0 %v1666
        %v2227 = vpop.f32.mrf.mxu0
        %v2228 = vadd.f32 %v2067, %v2227
        %v2229 = vpop.f32.mrf.mxu0
        %v2230 = vpop.f32.mrf.mxu0
        %v2231 = vadd.f32 %v2070, %v2230
        %v2232 = vpop.f32.mrf.mxu0
        %2233 = vmatprep.mubr.bf16.mxu0 %v1671
        %2234 = vmatmul.mubr.bf16.gmra.mxu0 %v1670
        %v2235 = vpop.f32.mrf.mxu0
        %v2236 = vadd.f32 %v2075, %v2235
        %v2237 = vpop.f32.mrf.mxu0
        %v2238 = vpop.f32.mrf.mxu0
        %v2239 = vadd.f32 %v2078, %v2238
        %v2240 = vpop.f32.mrf.mxu0
        %2241 = vmatprep.mubr.bf16.mxu0 %v1675
        %2242 = vmatmul.mubr.bf16.gmra.mxu0 %v1674
        %v2243 = vpop.f32.mrf.mxu0
        %v2244 = vadd.f32 %v2083, %v2243
        %v2245 = vpop.f32.mrf.mxu0
        %v2246 = vpop.f32.mrf.mxu0
        %v2247 = vadd.f32 %v2086, %v2246
        %v2248 = vpop.f32.mrf.mxu0
        %2249 = vmatprep.mubr.bf16.mxu0 %v1679
        %2250 = vmatmul.mubr.bf16.gmra.mxu0 %v1678
        %v2251 = vpop.f32.mrf.mxu0
        %v2252 = vadd.f32 %v2091, %v2251
        %v2253 = vpop.f32.mrf.mxu0
        %v2254 = vpop.f32.mrf.mxu0
        %v2255 = vadd.f32 %v2094, %v2254
        %v2256 = vpop.f32.mrf.mxu0
        %2257 = vdwg.mxu0
        %v2258 = vadd.f32 %v2132, %v1072
        %v2259 = vadd.f32 %v2135, %v1073
        %v2260 = vadd.f32 %v2140, %v1074
        %v2261 = vadd.f32 %v2143, %v1075
        %v2262 = vadd.f32 %v2148, %v1076
        %v2263 = vadd.f32 %v2151, %v1077
        %v2264 = vadd.f32 %v2156, %v1078
        %v2265 = vadd.f32 %v2159, %v1079
        %v2266 = vadd.f32 %v2164, %v1080
        %v2267 = vadd.f32 %v2167, %v1081
        %v2268 = vadd.f32 %v2172, %v1082
        %v2269 = vadd.f32 %v2175, %v1083
        %v2270 = vadd.f32 %v2180, %v1084
        %v2271 = vadd.f32 %v2183, %v1085
        %v2272 = vadd.f32 %v2188, %v1086
        %v2273 = vadd.f32 %v2191, %v1087
        %v2274 = vadd.f32 %v2196, %v1088
        %v2275 = vadd.f32 %v2199, %v1089
        %v2276 = vadd.f32 %v2204, %v1090
        %v2277 = vadd.f32 %v2207, %v1091
        %v2278 = vadd.f32 %v2212, %v1092
        %v2279 = vadd.f32 %v2215, %v1093
        %v2280 = vadd.f32 %v2220, %v1094
        %v2281 = vadd.f32 %v2223, %v1095
        %v2282 = vadd.f32 %v2228, %v1096
        %v2283 = vadd.f32 %v2231, %v1097
        %v2284 = vadd.f32 %v2236, %v1098
        %v2285 = vadd.f32 %v2239, %v1099
        %v2286 = vadd.f32 %v2244, %v1100
        %v2287 = vadd.f32 %v2247, %v1101
        %v2288 = vadd.f32 %v2252, %v1102
        %v2289 = vadd.f32 %v2255, %v1103
        %v2290 = vmul.f32 %v2258, %v2258
        %v2291 = vmul.f32 %v2259, %v2259
        %v2292 = vmul.f32 %v2260, %v2260
        %v2293 = vmul.f32 %v2261, %v2261
        %v2294 = vmul.f32 %v2262, %v2262
        %v2295 = vmul.f32 %v2263, %v2263
        %v2296 = vmul.f32 %v2264, %v2264
        %v2297 = vmul.f32 %v2265, %v2265
        %v2298 = vmul.f32 %v2266, %v2266
        %v2299 = vmul.f32 %v2267, %v2267
        %v2300 = vmul.f32 %v2268, %v2268
        %v2301 = vmul.f32 %v2269, %v2269
        %v2302 = vmul.f32 %v2270, %v2270
        %v2303 = vmul.f32 %v2271, %v2271
        %v2304 = vmul.f32 %v2272, %v2272
        %v2305 = vmul.f32 %v2273, %v2273
        %v2306 = vmul.f32 %v2274, %v2274
        %v2307 = vmul.f32 %v2275, %v2275
        %v2308 = vmul.f32 %v2276, %v2276
        %v2309 = vmul.f32 %v2277, %v2277
        %v2310 = vmul.f32 %v2278, %v2278
        %v2311 = vmul.f32 %v2279, %v2279
        %v2312 = vmul.f32 %v2280, %v2280
        %v2313 = vmul.f32 %v2281, %v2281
        %v2314 = vmul.f32 %v2282, %v2282
        %v2315 = vmul.f32 %v2283, %v2283
        %v2316 = vmul.f32 %v2284, %v2284
        %v2317 = vmul.f32 %v2285, %v2285
        %v2318 = vmul.f32 %v2286, %v2286
        %v2319 = vmul.f32 %v2287, %v2287
        %v2320 = vmul.f32 %v2288, %v2288
        %v2321 = vmul.f32 %v2289, %v2289
        %v2322 = vmul.f32 %v2258, %v2290
        %v2323 = vmul.f32 %v2259, %v2291
        %v2324 = vmul.f32 %v2260, %v2292
        %v2325 = vmul.f32 %v2261, %v2293
        %v2326 = vmul.f32 %v2262, %v2294
        %v2327 = vmul.f32 %v2263, %v2295
        %v2328 = vmul.f32 %v2264, %v2296
        %v2329 = vmul.f32 %v2265, %v2297
        %v2330 = vmul.f32 %v2266, %v2298
        %v2331 = vmul.f32 %v2267, %v2299
        %v2332 = vmul.f32 %v2268, %v2300
        %v2333 = vmul.f32 %v2269, %v2301
        %v2334 = vmul.f32 %v2270, %v2302
        %v2335 = vmul.f32 %v2271, %v2303
        %v2336 = vmul.f32 %v2272, %v2304
        %v2337 = vmul.f32 %v2273, %v2305
        %v2338 = vmul.f32 %v2274, %v2306
        %v2339 = vmul.f32 %v2275, %v2307
        %v2340 = vmul.f32 %v2276, %v2308
        %v2341 = vmul.f32 %v2277, %v2309
        %v2342 = vmul.f32 %v2278, %v2310
        %v2343 = vmul.f32 %v2279, %v2311
        %v2344 = vmul.f32 %v2280, %v2312
        %v2345 = vmul.f32 %v2281, %v2313
        %v2346 = vmul.f32 %v2282, %v2314
        %v2347 = vmul.f32 %v2283, %v2315
        %v2348 = vmul.f32 %v2284, %v2316
        %v2349 = vmul.f32 %v2285, %v2317
        %v2350 = vmul.f32 %v2286, %v2318
        %v2351 = vmul.f32 %v2287, %v2319
        %v2352 = vmul.f32 %v2288, %v2320
        %v2353 = vmul.f32 %v2289, %v2321
        %v2354 = vmul.f32 %v2322, 0.044715
        %v2355 = vmul.f32 %v2323, 0.044715
        %v2356 = vmul.f32 %v2324, 0.044715
        %v2357 = vmul.f32 %v2325, 0.044715
        %v2358 = vmul.f32 %v2326, 0.044715
        %v2359 = vmul.f32 %v2327, 0.044715
        %v2360 = vmul.f32 %v2328, 0.044715
        %v2361 = vmul.f32 %v2329, 0.044715
        %v2362 = vmul.f32 %v2330, 0.044715
        %v2363 = vmul.f32 %v2331, 0.044715
        %v2364 = vmul.f32 %v2332, 0.044715
        %v2365 = vmul.f32 %v2333, 0.044715
        %v2366 = vmul.f32 %v2334, 0.044715
        %v2367 = vmul.f32 %v2335, 0.044715
        %v2368 = vmul.f32 %v2336, 0.044715
        %v2369 = vmul.f32 %v2337, 0.044715
        %v2370 = vmul.f32 %v2338, 0.044715
        %v2371 = vmul.f32 %v2339, 0.044715
        %v2372 = vmul.f32 %v2340, 0.044715
        %v2373 = vmul.f32 %v2341, 0.044715
        %v2374 = vmul.f32 %v2342, 0.044715
        %v2375 = vmul.f32 %v2343, 0.044715
        %v2376 = vmul.f32 %v2344, 0.044715
        %v2377 = vmul.f32 %v2345, 0.044715
        %v2378 = vmul.f32 %v2346, 0.044715
        %v2379 = vmul.f32 %v2347, 0.044715
        %v2380 = vmul.f32 %v2348, 0.044715
        %v2381 = vmul.f32 %v2349, 0.044715
        %v2382 = vmul.f32 %v2350, 0.044715
        %v2383 = vmul.f32 %v2351, 0.044715
        %v2384 = vmul.f32 %v2352, 0.044715
        %v2385 = vmul.f32 %v2353, 0.044715
        %v2386 = vadd.f32 %v2258, %v2354
        %v2387 = vadd.f32 %v2259, %v2355
        %v2388 = vadd.f32 %v2260, %v2356
        %v2389 = vadd.f32 %v2261, %v2357
        %v2390 = vadd.f32 %v2262, %v2358
        %v2391 = vadd.f32 %v2263, %v2359
        %v2392 = vadd.f32 %v2264, %v2360
        %v2393 = vadd.f32 %v2265, %v2361
        %v2394 = vadd.f32 %v2266, %v2362
        %v2395 = vadd.f32 %v2267, %v2363
        %v2396 = vadd.f32 %v2268, %v2364
        %v2397 = vadd.f32 %v2269, %v2365
        %v2398 = vadd.f32 %v2270, %v2366
        %v2399 = vadd.f32 %v2271, %v2367
        %v2400 = vadd.f32 %v2272, %v2368
        %v2401 = vadd.f32 %v2273, %v2369
        %v2402 = vadd.f32 %v2274, %v2370
        %v2403 = vadd.f32 %v2275, %v2371
        %v2404 = vadd.f32 %v2276, %v2372
        %v2405 = vadd.f32 %v2277, %v2373
        %v2406 = vadd.f32 %v2278, %v2374
        %v2407 = vadd.f32 %v2279, %v2375
        %v2408 = vadd.f32 %v2280, %v2376
        %v2409 = vadd.f32 %v2281, %v2377
        %v2410 = vadd.f32 %v2282, %v2378
        %v2411 = vadd.f32 %v2283, %v2379
        %v2412 = vadd.f32 %v2284, %v2380
        %v2413 = vadd.f32 %v2285, %v2381
        %v2414 = vadd.f32 %v2286, %v2382
        %v2415 = vadd.f32 %v2287, %v2383
        %v2416 = vadd.f32 %v2288, %v2384
        %v2417 = vadd.f32 %v2289, %v2385
        %v2418 = vmul.f32 %v2386, 0.7978846
        %v2419 = vmul.f32 %v2387, 0.7978846
        %v2420 = vmul.f32 %v2388, 0.7978846
        %v2421 = vmul.f32 %v2389, 0.7978846
        %v2422 = vmul.f32 %v2390, 0.7978846
        %v2423 = vmul.f32 %v2391, 0.7978846
        %v2424 = vmul.f32 %v2392, 0.7978846
        %v2425 = vmul.f32 %v2393, 0.7978846
        %v2426 = vmul.f32 %v2394, 0.7978846
        %v2427 = vmul.f32 %v2395, 0.7978846
        %v2428 = vmul.f32 %v2396, 0.7978846
        %v2429 = vmul.f32 %v2397, 0.7978846
        %v2430 = vmul.f32 %v2398, 0.7978846
        %v2431 = vmul.f32 %v2399, 0.7978846
        %v2432 = vmul.f32 %v2400, 0.7978846
        %v2433 = vmul.f32 %v2401, 0.7978846
        %v2434 = vmul.f32 %v2402, 0.7978846
        %v2435 = vmul.f32 %v2403, 0.7978846
        %v2436 = vmul.f32 %v2404, 0.7978846
        %v2437 = vmul.f32 %v2405, 0.7978846
        %v2438 = vmul.f32 %v2406, 0.7978846
        %v2439 = vmul.f32 %v2407, 0.7978846
        %v2440 = vmul.f32 %v2408, 0.7978846
        %v2441 = vmul.f32 %v2409, 0.7978846
        %v2442 = vmul.f32 %v2410, 0.7978846
        %v2443 = vmul.f32 %v2411, 0.7978846
        %v2444 = vmul.f32 %v2412, 0.7978846
        %v2445 = vmul.f32 %v2413, 0.7978846
        %v2446 = vmul.f32 %v2414, 0.7978846
        %v2447 = vmul.f32 %v2415, 0.7978846
        %v2448 = vmul.f32 %v2416, 0.7978846
        %v2449 = vmul.f32 %v2417, 0.7978846
        %v2450 = vtanh.pop %v2418
        %v2451 = vtanh.pop %v2419
        %v2452 = vtanh.pop %v2420
        %v2453 = vtanh.pop %v2421
        %v2454 = vtanh.pop %v2422
        %v2455 = vtanh.pop %v2423
        %v2456 = vtanh.pop %v2424
        %v2457 = vtanh.pop %v2425
        %v2458 = vtanh.pop %v2426
        %v2459 = vtanh.pop %v2427
        %v2460 = vtanh.pop %v2428
        %v2461 = vtanh.pop %v2429
        %v2462 = vtanh.pop %v2430
        %v2463 = vtanh.pop %v2431
        %v2464 = vtanh.pop %v2432
        %v2465 = vtanh.pop %v2433
        %v2466 = vtanh.pop %v2434
        %v2467 = vtanh.pop %v2435
        %v2468 = vtanh.pop %v2436
        %v2469 = vtanh.pop %v2437
        %v2470 = vtanh.pop %v2438
        %v2471 = vtanh.pop %v2439
        %v2472 = vtanh.pop %v2440
        %v2473 = vtanh.pop %v2441
        %v2474 = vtanh.pop %v2442
        %v2475 = vtanh.pop %v2443
        %v2476 = vtanh.pop %v2444
        %v2477 = vtanh.pop %v2445
        %v2478 = vtanh.pop %v2446
        %v2479 = vtanh.pop %v2447
        %v2480 = vtanh.pop %v2448
        %v2481 = vtanh.pop %v2449
        %v2482 = vadd.f32 %v2450, 1.0
        %v2483 = vadd.f32 %v2451, 1.0
        %v2484 = vadd.f32 %v2452, 1.0
        %v2485 = vadd.f32 %v2453, 1.0
        %v2486 = vadd.f32 %v2454, 1.0
        %v2487 = vadd.f32 %v2455, 1.0
        %v2488 = vadd.f32 %v2456, 1.0
        %v2489 = vadd.f32 %v2457, 1.0
        %v2490 = vadd.f32 %v2458, 1.0
        %v2491 = vadd.f32 %v2459, 1.0
        %v2492 = vadd.f32 %v2460, 1.0
        %v2493 = vadd.f32 %v2461, 1.0
        %v2494 = vadd.f32 %v2462, 1.0
        %v2495 = vadd.f32 %v2463, 1.0
        %v2496 = vadd.f32 %v2464, 1.0
        %v2497 = vadd.f32 %v2465, 1.0
        %v2498 = vadd.f32 %v2466, 1.0
        %v2499 = vadd.f32 %v2467, 1.0
        %v2500 = vadd.f32 %v2468, 1.0
        %v2501 = vadd.f32 %v2469, 1.0
        %v2502 = vadd.f32 %v2470, 1.0
        %v2503 = vadd.f32 %v2471, 1.0
        %v2504 = vadd.f32 %v2472, 1.0
        %v2505 = vadd.f32 %v2473, 1.0
        %v2506 = vadd.f32 %v2474, 1.0
        %v2507 = vadd.f32 %v2475, 1.0
        %v2508 = vadd.f32 %v2476, 1.0
        %v2509 = vadd.f32 %v2477, 1.0
        %v2510 = vadd.f32 %v2478, 1.0
        %v2511 = vadd.f32 %v2479, 1.0
        %v2512 = vadd.f32 %v2480, 1.0
        %v2513 = vadd.f32 %v2481, 1.0
        %v2514 = vmul.f32 %v2482, 0.5
        %v2515 = vmul.f32 %v2483, 0.5
        %v2516 = vmul.f32 %v2484, 0.5
        %v2517 = vmul.f32 %v2485, 0.5
        %v2518 = vmul.f32 %v2486, 0.5
        %v2519 = vmul.f32 %v2487, 0.5
        %v2520 = vmul.f32 %v2488, 0.5
        %v2521 = vmul.f32 %v2489, 0.5
        %v2522 = vmul.f32 %v2490, 0.5
        %v2523 = vmul.f32 %v2491, 0.5
        %v2524 = vmul.f32 %v2492, 0.5
        %v2525 = vmul.f32 %v2493, 0.5
        %v2526 = vmul.f32 %v2494, 0.5
        %v2527 = vmul.f32 %v2495, 0.5
        %v2528 = vmul.f32 %v2496, 0.5
        %v2529 = vmul.f32 %v2497, 0.5
        %v2530 = vmul.f32 %v2498, 0.5
        %v2531 = vmul.f32 %v2499, 0.5
        %v2532 = vmul.f32 %v2500, 0.5
        %v2533 = vmul.f32 %v2501, 0.5
        %v2534 = vmul.f32 %v2502, 0.5
        %v2535 = vmul.f32 %v2503, 0.5
        %v2536 = vmul.f32 %v2504, 0.5
        %v2537 = vmul.f32 %v2505, 0.5
        %v2538 = vmul.f32 %v2506, 0.5
        %v2539 = vmul.f32 %v2507, 0.5
        %v2540 = vmul.f32 %v2508, 0.5
        %v2541 = vmul.f32 %v2509, 0.5
        %v2542 = vmul.f32 %v2510, 0.5
        %v2543 = vmul.f32 %v2511, 0.5
        %v2544 = vmul.f32 %v2512, 0.5
        %v2545 = vmul.f32 %v2513, 0.5
        %v2546 = vmul.f32 %v2258, %v2514
        %v2547 = vmul.f32 %v2259, %v2515
        %v2548 = vmul.f32 %v2260, %v2516
        %v2549 = vmul.f32 %v2261, %v2517
        %v2550 = vmul.f32 %v2262, %v2518
        %v2551 = vmul.f32 %v2263, %v2519
        %v2552 = vmul.f32 %v2264, %v2520
        %v2553 = vmul.f32 %v2265, %v2521
        %v2554 = vmul.f32 %v2266, %v2522
        %v2555 = vmul.f32 %v2267, %v2523
        %v2556 = vmul.f32 %v2268, %v2524
        %v2557 = vmul.f32 %v2269, %v2525
        %v2558 = vmul.f32 %v2270, %v2526
        %v2559 = vmul.f32 %v2271, %v2527
        %v2560 = vmul.f32 %v2272, %v2528
        %v2561 = vmul.f32 %v2273, %v2529
        %v2562 = vmul.f32 %v2274, %v2530
        %v2563 = vmul.f32 %v2275, %v2531
        %v2564 = vmul.f32 %v2276, %v2532
        %v2565 = vmul.f32 %v2277, %v2533
        %v2566 = vmul.f32 %v2278, %v2534
        %v2567 = vmul.f32 %v2279, %v2535
        %v2568 = vmul.f32 %v2280, %v2536
        %v2569 = vmul.f32 %v2281, %v2537
        %v2570 = vmul.f32 %v2282, %v2538
        %v2571 = vmul.f32 %v2283, %v2539
        %v2572 = vmul.f32 %v2284, %v2540
        %v2573 = vmul.f32 %v2285, %v2541
        %v2574 = vmul.f32 %v2286, %v2542
        %v2575 = vmul.f32 %v2287, %v2543
        %v2576 = vmul.f32 %v2288, %v2544
        %v2577 = vmul.f32 %v2289, %v2545
        %v2578 = vld [vmem:[%s5] sm:$0x1]
        %v2579 = vld [vmem:[%s6] sm:$0x1]
        %2580 = vadd.xlane.f32.xlu0 %v2546
        %v2581 = vpop.xlane.xlu0 %2580
        %2582 = vadd.xlane.f32.xlu0 %v2547
        %v2583 = vpop.xlane.xlu0 %2582
        %2584 = vadd.xlane.f32.xlu0 %v2548
        %v2585 = vpop.xlane.xlu0 %2584
        %2586 = vadd.xlane.f32.xlu0 %v2549
        %v2587 = vpop.xlane.xlu0 %2586
        %2588 = vadd.xlane.f32.xlu0 %v2550
        %v2589 = vpop.xlane.xlu0 %2588
        %2590 = vadd.xlane.f32.xlu0 %v2551
        %v2591 = vpop.xlane.xlu0 %2590
        %2592 = vadd.xlane.f32.xlu0 %v2552
        %v2593 = vpop.xlane.xlu0 %2592
        %2594 = vadd.xlane.f32.xlu0 %v2553
        %v2595 = vpop.xlane.xlu0 %2594
        %2596 = vadd.xlane.f32.xlu0 %v2554
        %v2597 = vpop.xlane.xlu0 %2596
        %2598 = vadd.xlane.f32.xlu0 %v2555
        %v2599 = vpop.xlane.xlu0 %2598
        %2600 = vadd.xlane.f32.xlu0 %v2556
        %v2601 = vpop.xlane.xlu0 %2600
        %2602 = vadd.xlane.f32.xlu0 %v2557
        %v2603 = vpop.xlane.xlu0 %2602
        %2604 = vadd.xlane.f32.xlu0 %v2558
        %v2605 = vpop.xlane.xlu0 %2604
        %2606 = vadd.xlane.f32.xlu0 %v2559
        %v2607 = vpop.xlane.xlu0 %2606
        %2608 = vadd.xlane.f32.xlu0 %v2560
        %v2609 = vpop.xlane.xlu0 %2608
        %2610 = vadd.xlane.f32.xlu0 %v2561
        %v2611 = vpop.xlane.xlu0 %2610
        %2612 = vadd.xlane.f32.xlu0 %v2562
        %v2613 = vpop.xlane.xlu0 %2612
        %2614 = vadd.xlane.f32.xlu0 %v2563
        %v2615 = vpop.xlane.xlu0 %2614
        %2616 = vadd.xlane.f32.xlu0 %v2564
        %v2617 = vpop.xlane.xlu0 %2616
        %2618 = vadd.xlane.f32.xlu0 %v2565
        %v2619 = vpop.xlane.xlu0 %2618
        %2620 = vadd.xlane.f32.xlu0 %v2566
        %v2621 = vpop.xlane.xlu0 %2620
        %2622 = vadd.xlane.f32.xlu0 %v2567
        %v2623 = vpop.xlane.xlu0 %2622
        %2624 = vadd.xlane.f32.xlu0 %v2568
        %v2625 = vpop.xlane.xlu0 %2624
        %2626 = vadd.xlane.f32.xlu0 %v2569
        %v2627 = vpop.xlane.xlu0 %2626
        %2628 = vadd.xlane.f32.xlu0 %v2570
        %v2629 = vpop.xlane.xlu0 %2628
        %2630 = vadd.xlane.f32.xlu0 %v2571
        %v2631 = vpop.xlane.xlu0 %2630
        %2632 = vadd.xlane.f32.xlu0 %v2572
        %v2633 = vpop.xlane.xlu0 %2632
        %2634 = vadd.xlane.f32.xlu0 %v2573
        %v2635 = vpop.xlane.xlu0 %2634
        %2636 = vadd.xlane.f32.xlu0 %v2574
        %v2637 = vpop.xlane.xlu0 %2636
        %2638 = vadd.xlane.f32.xlu0 %v2575
        %v2639 = vpop.xlane.xlu0 %2638
        %2640 = vadd.xlane.f32.xlu0 %v2576
        %v2641 = vpop.xlane.xlu0 %2640
        %2642 = vadd.xlane.f32.xlu0 %v2577
        %v2643 = vpop.xlane.xlu0 %2642
        %v2644 = vrcp.pop 128.0
        %v2645 = vmul.f32 %v2581, %v2644
        %v2646 = vmul.f32 %v2583, %v2644
        %v2647 = vmul.f32 %v2585, %v2644
        %v2648 = vmul.f32 %v2587, %v2644
        %v2649 = vmul.f32 %v2589, %v2644
        %v2650 = vmul.f32 %v2591, %v2644
        %v2651 = vmul.f32 %v2593, %v2644
        %v2652 = vmul.f32 %v2595, %v2644
        %v2653 = vmul.f32 %v2597, %v2644
        %v2654 = vmul.f32 %v2599, %v2644
        %v2655 = vmul.f32 %v2601, %v2644
        %v2656 = vmul.f32 %v2603, %v2644
        %v2657 = vmul.f32 %v2605, %v2644
        %v2658 = vmul.f32 %v2607, %v2644
        %v2659 = vmul.f32 %v2609, %v2644
        %v2660 = vmul.f32 %v2611, %v2644
        %v2661 = vmul.f32 %v2613, %v2644
        %v2662 = vmul.f32 %v2615, %v2644
        %v2663 = vmul.f32 %v2617, %v2644
        %v2664 = vmul.f32 %v2619, %v2644
        %v2665 = vmul.f32 %v2621, %v2644
        %v2666 = vmul.f32 %v2623, %v2644
        %v2667 = vmul.f32 %v2625, %v2644
        %v2668 = vmul.f32 %v2627, %v2644
        %v2669 = vmul.f32 %v2629, %v2644
        %v2670 = vmul.f32 %v2631, %v2644
        %v2671 = vmul.f32 %v2633, %v2644
        %v2672 = vmul.f32 %v2635, %v2644
        %v2673 = vmul.f32 %v2637, %v2644
        %v2674 = vmul.f32 %v2639, %v2644
        %v2675 = vmul.f32 %v2641, %v2644
        %v2676 = vmul.f32 %v2643, %v2644
        %v2677 = vsub.f32 %v2546, %v2645
        %v2678 = vsub.f32 %v2547, %v2646
        %v2679 = vsub.f32 %v2548, %v2647
        %v2680 = vsub.f32 %v2549, %v2648
        %v2681 = vsub.f32 %v2550, %v2649
        %v2682 = vsub.f32 %v2551, %v2650
        %v2683 = vsub.f32 %v2552, %v2651
        %v2684 = vsub.f32 %v2553, %v2652
        %v2685 = vsub.f32 %v2554, %v2653
        %v2686 = vsub.f32 %v2555, %v2654
        %v2687 = vsub.f32 %v2556, %v2655
        %v2688 = vsub.f32 %v2557, %v2656
        %v2689 = vsub.f32 %v2558, %v2657
        %v2690 = vsub.f32 %v2559, %v2658
        %v2691 = vsub.f32 %v2560, %v2659
        %v2692 = vsub.f32 %v2561, %v2660
        %v2693 = vsub.f32 %v2562, %v2661
        %v2694 = vsub.f32 %v2563, %v2662
        %v2695 = vsub.f32 %v2564, %v2663
        %v2696 = vsub.f32 %v2565, %v2664
        %v2697 = vsub.f32 %v2566, %v2665
        %v2698 = vsub.f32 %v2567, %v2666
        %v2699 = vsub.f32 %v2568, %v2667
        %v2700 = vsub.f32 %v2569, %v2668
        %v2701 = vsub.f32 %v2570, %v2669
        %v2702 = vsub.f32 %v2571, %v2670
        %v2703 = vsub.f32 %v2572, %v2671
        %v2704 = vsub.f32 %v2573, %v2672
        %v2705 = vsub.f32 %v2574, %v2673
        %v2706 = vsub.f32 %v2575, %v2674
        %v2707 = vsub.f32 %v2576, %v2675
        %v2708 = vsub.f32 %v2577, %v2676
        %v2709 = vmul.f32 %v2677, %v2677
        %v2710 = vmul.f32 %v2678, %v2678
        %v2711 = vmul.f32 %v2679, %v2679
        %v2712 = vmul.f32 %v2680, %v2680
        %v2713 = vmul.f32 %v2681, %v2681
        %v2714 = vmul.f32 %v2682, %v2682
        %v2715 = vmul.f32 %v2683, %v2683
        %v2716 = vmul.f32 %v2684, %v2684
        %v2717 = vmul.f32 %v2685, %v2685
        %v2718 = vmul.f32 %v2686, %v2686
        %v2719 = vmul.f32 %v2687, %v2687
        %v2720 = vmul.f32 %v2688, %v2688
        %v2721 = vmul.f32 %v2689, %v2689
        %v2722 = vmul.f32 %v2690, %v2690
        %v2723 = vmul.f32 %v2691, %v2691
        %v2724 = vmul.f32 %v2692, %v2692
        %v2725 = vmul.f32 %v2693, %v2693
        %v2726 = vmul.f32 %v2694, %v2694
        %v2727 = vmul.f32 %v2695, %v2695
        %v2728 = vmul.f32 %v2696, %v2696
        %v2729 = vmul.f32 %v2697, %v2697
        %v2730 = vmul.f32 %v2698, %v2698
        %v2731 = vmul.f32 %v2699, %v2699
        %v2732 = vmul.f32 %v2700, %v2700
        %v2733 = vmul.f32 %v2701, %v2701
        %v2734 = vmul.f32 %v2702, %v2702
        %v2735 = vmul.f32 %v2703, %v2703
        %v2736 = vmul.f32 %v2704, %v2704
        %v2737 = vmul.f32 %v2705, %v2705
        %v2738 = vmul.f32 %v2706, %v2706
        %v2739 = vmul.f32 %v2707, %v2707
        %v2740 = vmul.f32 %v2708, %v2708
        %2741 = vadd.xlane.f32.xlu0 %v2709
        %v2742 = vpop.xlane.xlu0 %2741
        %2743 = vadd.xlane.f32.xlu0 %v2710
        %v2744 = vpop.xlane.xlu0 %2743
        %2745 = vadd.xlane.f32.xlu0 %v2711
        %v2746 = vpop.xlane.xlu0 %2745
        %2747 = vadd.xlane.f32.xlu0 %v2712
        %v2748 = vpop.xlane.xlu0 %2747
        %2749 = vadd.xlane.f32.xlu0 %v2713
        %v2750 = vpop.xlane.xlu0 %2749
        %2751 = vadd.xlane.f32.xlu0 %v2714
        %v2752 = vpop.xlane.xlu0 %2751
        %2753 = vadd.xlane.f32.xlu0 %v2715
        %v2754 = vpop.xlane.xlu0 %2753
        %2755 = vadd.xlane.f32.xlu0 %v2716
        %v2756 = vpop.xlane.xlu0 %2755
        %2757 = vadd.xlane.f32.xlu0 %v2717
        %v2758 = vpop.xlane.xlu0 %2757
        %2759 = vadd.xlane.f32.xlu0 %v2718
        %v2760 = vpop.xlane.xlu0 %2759
        %2761 = vadd.xlane.f32.xlu0 %v2719
        %v2762 = vpop.xlane.xlu0 %2761
        %2763 = vadd.xlane.f32.xlu0 %v2720
        %v2764 = vpop.xlane.xlu0 %2763
        %2765 = vadd.xlane.f32.xlu0 %v2721
        %v2766 = vpop.xlane.xlu0 %2765
        %2767 = vadd.xlane.f32.xlu0 %v2722
        %v2768 = vpop.xlane.xlu0 %2767
        %2769 = vadd.xlane.f32.xlu0 %v2723
        %v2770 = vpop.xlane.xlu0 %2769
        %2771 = vadd.xlane.f32.xlu0 %v2724
        %v2772 = vpop.xlane.xlu0 %2771
        %2773 = vadd.xlane.f32.xlu0 %v2725
        %v2774 = vpop.xlane.xlu0 %2773
        %2775 = vadd.xlane.f32.xlu0 %v2726
        %v2776 = vpop.xlane.xlu0 %2775
        %2777 = vadd.xlane.f32.xlu0 %v2727
        %v2778 = vpop.xlane.xlu0 %2777
        %2779 = vadd.xlane.f32.xlu0 %v2728
        %v2780 = vpop.xlane.xlu0 %2779
        %2781 = vadd.xlane.f32.xlu0 %v2729
        %v2782 = vpop.xlane.xlu0 %2781
        %2783 = vadd.xlane.f32.xlu0 %v2730
        %v2784 = vpop.xlane.xlu0 %2783
        %2785 = vadd.xlane.f32.xlu0 %v2731
        %v2786 = vpop.xlane.xlu0 %2785
        %2787 = vadd.xlane.f32.xlu0 %v2732
        %v2788 = vpop.xlane.xlu0 %2787
        %2789 = vadd.xlane.f32.xlu0 %v2733
        %v2790 = vpop.xlane.xlu0 %2789
        %2791 = vadd.xlane.f32.xlu0 %v2734
        %v2792 = vpop.xlane.xlu0 %2791
        %2793 = vadd.xlane.f32.xlu0 %v2735
        %v2794 = vpop.xlane.xlu0 %2793
        %2795 = vadd.xlane.f32.xlu0 %v2736
        %v2796 = vpop.xlane.xlu0 %2795
        %2797 = vadd.xlane.f32.xlu0 %v2737
        %v2798 = vpop.xlane.xlu0 %2797
        %2799 = vadd.xlane.f32.xlu0 %v2738
        %v2800 = vpop.xlane.xlu0 %2799
        %2801 = vadd.xlane.f32.xlu0 %v2739
        %v2802 = vpop.xlane.xlu0 %2801
        %2803 = vadd.xlane.f32.xlu0 %v2740
        %v2804 = vpop.xlane.xlu0 %2803
        %v2805 = vmul.f32 %v2742, %v2644
        %v2806 = vmul.f32 %v2744, %v2644
        %v2807 = vmul.f32 %v2746, %v2644
        %v2808 = vmul.f32 %v2748, %v2644
        %v2809 = vmul.f32 %v2750, %v2644
        %v2810 = vmul.f32 %v2752, %v2644
        %v2811 = vmul.f32 %v2754, %v2644
        %v2812 = vmul.f32 %v2756, %v2644
        %v2813 = vmul.f32 %v2758, %v2644
        %v2814 = vmul.f32 %v2760, %v2644
        %v2815 = vmul.f32 %v2762, %v2644
        %v2816 = vmul.f32 %v2764, %v2644
        %v2817 = vmul.f32 %v2766, %v2644
        %v2818 = vmul.f32 %v2768, %v2644
        %v2819 = vmul.f32 %v2770, %v2644
        %v2820 = vmul.f32 %v2772, %v2644
        %v2821 = vmul.f32 %v2774, %v2644
        %v2822 = vmul.f32 %v2776, %v2644
        %v2823 = vmul.f32 %v2778, %v2644
        %v2824 = vmul.f32 %v2780, %v2644
        %v2825 = vmul.f32 %v2782, %v2644
        %v2826 = vmul.f32 %v2784, %v2644
        %v2827 = vmul.f32 %v2786, %v2644
        %v2828 = vmul.f32 %v2788, %v2644
        %v2829 = vmul.f32 %v2790, %v2644
        %v2830 = vmul.f32 %v2792, %v2644
        %v2831 = vmul.f32 %v2794, %v2644
        %v2832 = vmul.f32 %v2796, %v2644
        %v2833 = vmul.f32 %v2798, %v2644
        %v2834 = vmul.f32 %v2800, %v2644
        %v2835 = vmul.f32 %v2802, %v2644
        %v2836 = vmul.f32 %v2804, %v2644
        %v2837 = vadd.f32 %v2805, 1e-05
        %v2838 = vadd.f32 %v2806, 1e-05
        %v2839 = vadd.f32 %v2807, 1e-05
        %v2840 = vadd.f32 %v2808, 1e-05
        %v2841 = vadd.f32 %v2809, 1e-05
        %v2842 = vadd.f32 %v2810, 1e-05
        %v2843 = vadd.f32 %v2811, 1e-05
        %v2844 = vadd.f32 %v2812, 1e-05
        %v2845 = vadd.f32 %v2813, 1e-05
        %v2846 = vadd.f32 %v2814, 1e-05
        %v2847 = vadd.f32 %v2815, 1e-05
        %v2848 = vadd.f32 %v2816, 1e-05
        %v2849 = vadd.f32 %v2817, 1e-05
        %v2850 = vadd.f32 %v2818, 1e-05
        %v2851 = vadd.f32 %v2819, 1e-05
        %v2852 = vadd.f32 %v2820, 1e-05
        %v2853 = vadd.f32 %v2821, 1e-05
        %v2854 = vadd.f32 %v2822, 1e-05
        %v2855 = vadd.f32 %v2823, 1e-05
        %v2856 = vadd.f32 %v2824, 1e-05
        %v2857 = vadd.f32 %v2825, 1e-05
        %v2858 = vadd.f32 %v2826, 1e-05
        %v2859 = vadd.f32 %v2827, 1e-05
        %v2860 = vadd.f32 %v2828, 1e-05
        %v2861 = vadd.f32 %v2829, 1e-05
        %v2862 = vadd.f32 %v2830, 1e-05
        %v2863 = vadd.f32 %v2831, 1e-05
        %v2864 = vadd.f32 %v2832, 1e-05
        %v2865 = vadd.f32 %v2833, 1e-05
        %v2866 = vadd.f32 %v2834, 1e-05
        %v2867 = vadd.f32 %v2835, 1e-05
        %v2868 = vadd.f32 %v2836, 1e-05
        %v2869 = vrsqrt.pop %v2837
        %v2870 = vrsqrt.pop %v2838
        %v2871 = vrsqrt.pop %v2839
        %v2872 = vrsqrt.pop %v2840
        %v2873 = vrsqrt.pop %v2841
        %v2874 = vrsqrt.pop %v2842
        %v2875 = vrsqrt.pop %v2843
        %v2876 = vrsqrt.pop %v2844
        %v2877 = vrsqrt.pop %v2845
        %v2878 = vrsqrt.pop %v2846
        %v2879 = vrsqrt.pop %v2847
        %v2880 = vrsqrt.pop %v2848
        %v2881 = vrsqrt.pop %v2849
        %v2882 = vrsqrt.pop %v2850
        %v2883 = vrsqrt.pop %v2851
        %v2884 = vrsqrt.pop %v2852
        %v2885 = vrsqrt.pop %v2853
        %v2886 = vrsqrt.pop %v2854
        %v2887 = vrsqrt.pop %v2855
        %v2888 = vrsqrt.pop %v2856
        %v2889 = vrsqrt.pop %v2857
        %v2890 = vrsqrt.pop %v2858
        %v2891 = vrsqrt.pop %v2859
        %v2892 = vrsqrt.pop %v2860
        %v2893 = vrsqrt.pop %v2861
        %v2894 = vrsqrt.pop %v2862
        %v2895 = vrsqrt.pop %v2863
        %v2896 = vrsqrt.pop %v2864
        %v2897 = vrsqrt.pop %v2865
        %v2898 = vrsqrt.pop %v2866
        %v2899 = vrsqrt.pop %v2867
        %v2900 = vrsqrt.pop %v2868
        %v2901 = vmul.f32 %v2677, %v2869
        %v2902 = vmul.f32 %v2678, %v2870
        %v2903 = vmul.f32 %v2679, %v2871
        %v2904 = vmul.f32 %v2680, %v2872
        %v2905 = vmul.f32 %v2681, %v2873
        %v2906 = vmul.f32 %v2682, %v2874
        %v2907 = vmul.f32 %v2683, %v2875
        %v2908 = vmul.f32 %v2684, %v2876
        %v2909 = vmul.f32 %v2685, %v2877
        %v2910 = vmul.f32 %v2686, %v2878
        %v2911 = vmul.f32 %v2687, %v2879
        %v2912 = vmul.f32 %v2688, %v2880
        %v2913 = vmul.f32 %v2689, %v2881
        %v2914 = vmul.f32 %v2690, %v2882
        %v2915 = vmul.f32 %v2691, %v2883
        %v2916 = vmul.f32 %v2692, %v2884
        %v2917 = vmul.f32 %v2693, %v2885
        %v2918 = vmul.f32 %v2694, %v2886
        %v2919 = vmul.f32 %v2695, %v2887
        %v2920 = vmul.f32 %v2696, %v2888
        %v2921 = vmul.f32 %v2697, %v2889
        %v2922 = vmul.f32 %v2698, %v2890
        %v2923 = vmul.f32 %v2699, %v2891
        %v2924 = vmul.f32 %v2700, %v2892
        %v2925 = vmul.f32 %v2701, %v2893
        %v2926 = vmul.f32 %v2702, %v2894
        %v2927 = vmul.f32 %v2703, %v2895
        %v2928 = vmul.f32 %v2704, %v2896
        %v2929 = vmul.f32 %v2705, %v2897
        %v2930 = vmul.f32 %v2706, %v2898
        %v2931 = vmul.f32 %v2707, %v2899
        %v2932 = vmul.f32 %v2708, %v2900
        %v2934 = vlaneseq
        %v2935 = vshrl.u32 %v2934, 7
        %v2936 = vsub.s32 0, %v2935
        %v2937 = vrot.slane %v2578, %v2936
        %v2939 = vmul.f32 %v2901, %v2937
        %v2940 = vmul.f32 %v2902, %v2937
        %v2941 = vmul.f32 %v2903, %v2937
        %v2942 = vmul.f32 %v2904, %v2937
        %v2943 = vmul.f32 %v2905, %v2937
        %v2944 = vmul.f32 %v2906, %v2937
        %v2945 = vmul.f32 %v2907, %v2937
        %v2946 = vmul.f32 %v2908, %v2937
        %v2947 = vmul.f32 %v2909, %v2937
        %v2948 = vmul.f32 %v2910, %v2937
        %v2949 = vmul.f32 %v2911, %v2937
        %v2950 = vmul.f32 %v2912, %v2937
        %v2951 = vmul.f32 %v2913, %v2937
        %v2952 = vmul.f32 %v2914, %v2937
        %v2953 = vmul.f32 %v2915, %v2937
        %v2954 = vmul.f32 %v2916, %v2937
        %v2955 = vmul.f32 %v2917, %v2937
        %v2956 = vmul.f32 %v2918, %v2937
        %v2957 = vmul.f32 %v2919, %v2937
        %v2958 = vmul.f32 %v2920, %v2937
        %v2959 = vmul.f32 %v2921, %v2937
        %v2960 = vmul.f32 %v2922, %v2937
        %v2961 = vmul.f32 %v2923, %v2937
        %v2962 = vmul.f32 %v2924, %v2937
        %v2963 = vmul.f32 %v2925, %v2937
        %v2964 = vmul.f32 %v2926, %v2937
        %v2965 = vmul.f32 %v2927, %v2937
        %v2966 = vmul.f32 %v2928, %v2937
        %v2967 = vmul.f32 %v2929, %v2937
        %v2968 = vmul.f32 %v2930, %v2937
        %v2969 = vmul.f32 %v2931, %v2937
        %v2970 = vmul.f32 %v2932, %v2937
        %v2972 = vlaneseq
        %v2973 = vshrl.u32 %v2972, 7
        %v2974 = vsub.s32 0, %v2973
        %v2975 = vrot.slane %v2579, %v2974
        %v2977 = vadd.f32 %v2939, %v2975
        %v2978 = vadd.f32 %v2940, %v2975
        %v2979 = vadd.f32 %v2941, %v2975
        %v2980 = vadd.f32 %v2942, %v2975
        %v2981 = vadd.f32 %v2943, %v2975
        %v2982 = vadd.f32 %v2944, %v2975
        %v2983 = vadd.f32 %v2945, %v2975
        %v2984 = vadd.f32 %v2946, %v2975
        %v2985 = vadd.f32 %v2947, %v2975
        %v2986 = vadd.f32 %v2948, %v2975
        %v2987 = vadd.f32 %v2949, %v2975
        %v2988 = vadd.f32 %v2950, %v2975
        %v2989 = vadd.f32 %v2951, %v2975
        %v2990 = vadd.f32 %v2952, %v2975
        %v2991 = vadd.f32 %v2953, %v2975
        %v2992 = vadd.f32 %v2954, %v2975
        %v2993 = vadd.f32 %v2955, %v2975
        %v2994 = vadd.f32 %v2956, %v2975
        %v2995 = vadd.f32 %v2957, %v2975
        %v2996 = vadd.f32 %v2958, %v2975
        %v2997 = vadd.f32 %v2959, %v2975
        %v2998 = vadd.f32 %v2960, %v2975
        %v2999 = vadd.f32 %v2961, %v2975
        %v3000 = vadd.f32 %v2962, %v2975
        %v3001 = vadd.f32 %v2963, %v2975
        %v3002 = vadd.f32 %v2964, %v2975
        %v3003 = vadd.f32 %v2965, %v2975
        %v3004 = vadd.f32 %v2966, %v2975
        %v3005 = vadd.f32 %v2967, %v2975
        %v3006 = vadd.f32 %v2968, %v2975
        %v3007 = vadd.f32 %v2969, %v2975
        %v3008 = vadd.f32 %v2970, %v2975
        %v3009 = vpack.c.bf16 %v2978, %v2977
        %v3010 = vpack.c.bf16 %v2980, %v2979
        %v3011 = vpack.c.bf16 %v2982, %v2981
        %v3012 = vpack.c.bf16 %v2984, %v2983
        %v3013 = vpack.c.bf16 %v2986, %v2985
        %v3014 = vpack.c.bf16 %v2988, %v2987
        %v3015 = vpack.c.bf16 %v2990, %v2989
        %v3016 = vpack.c.bf16 %v2992, %v2991
        %v3017 = vpack.c.bf16 %v2994, %v2993
        %v3018 = vpack.c.bf16 %v2996, %v2995
        %v3019 = vpack.c.bf16 %v2998, %v2997
        %v3020 = vpack.c.bf16 %v3000, %v2999
        %v3021 = vpack.c.bf16 %v3002, %v3001
        %v3022 = vpack.c.bf16 %v3004, %v3003
        %v3023 = vpack.c.bf16 %v3006, %v3005
        %v3024 = vpack.c.bf16 %v3008, %v3007
        %v3025 = vld [vmem:[%s7] sm:$0xf]
        %v3026 = vld [vmem:[%s7 + $0x4] sm:$0xf]
        %v3027 = vld [vmem:[%s7 + $0x8] sm:$0xf]
        %v3028 = vld [vmem:[%s7 + $0xc] sm:$0xf]
        %v3029 = vld [vmem:[%s7 + $0x10] sm:$0xf]
        %v3030 = vld [vmem:[%s7 + $0x14] sm:$0xf]
        %v3031 = vld [vmem:[%s7 + $0x18] sm:$0xf]
        %v3032 = vld [vmem:[%s7 + $0x1c] sm:$0xf]
        %v3033 = vld [vmem:[%s7 + $0x20] sm:$0xf]
        %v3034 = vld [vmem:[%s7 + $0x24] sm:$0xf]
        %v3035 = vld [vmem:[%s7 + $0x28] sm:$0xf]
        %v3036 = vld [vmem:[%s7 + $0x2c] sm:$0xf]
        %v3037 = vld [vmem:[%s7 + $0x30] sm:$0xf]
        %v3038 = vld [vmem:[%s7 + $0x34] sm:$0xf]
        %v3039 = vld [vmem:[%s7 + $0x38] sm:$0xf]
        %v3040 = vld [vmem:[%s7 + $0x3c] sm:$0xf]
        %v3041 = vld [vmem:[%s8] sm:$0x1]
        %v3043 = vlaneseq
        %v3044 = vshrl.u32 %v3043, 7
        %v3045 = vsub.s32 0, %v3044
        %v3046 = vrot.slane %v3041, %v3045
        %v3064 = vunpack.c.l.b16 %v3025
        %v3065 = vunpack.c.l.b16 %v3026
        %v3066 = vunpack.c.l.b16 %v3027
        %v3067 = vunpack.c.l.b16 %v3028
        %v3068 = vunpack.c.l.b16 %v3029
        %v3069 = vunpack.c.l.b16 %v3030
        %v3070 = vunpack.c.l.b16 %v3031
        %v3071 = vunpack.c.l.b16 %v3032
        %v3072 = vunpack.c.l.b16 %v3033
        %v3073 = vunpack.c.l.b16 %v3034
        %v3074 = vunpack.c.l.b16 %v3035
        %v3075 = vunpack.c.l.b16 %v3036
        %v3076 = vunpack.c.l.b16 %v3037
        %v3077 = vunpack.c.l.b16 %v3038
        %v3078 = vunpack.c.l.b16 %v3039
        %v3079 = vunpack.c.l.b16 %v3040
        %v3080 = vpack.c.b16 %v3065, %v3064
        %v3081 = vpack.c.b16 %v3067, %v3066
        %v3082 = vpack.c.b16 %v3069, %v3068
        %v3083 = vpack.c.b16 %v3071, %v3070
        %v3084 = vpack.c.b16 %v3073, %v3072
        %v3085 = vpack.c.b16 %v3075, %v3074
        %v3086 = vpack.c.b16 %v3077, %v3076
        %v3087 = vpack.c.b16 %v3079, %v3078
        %3096 = vmatprep.subr.bf16.mxu0 0
        %3097 = vmatpush1.bf16.msra.mxu0 %v3087
        %3098 = vmatprep.subr.bf16.mxu0 0
        %3099 = vmatpush1.bf16.msra.mxu0 %v3086
        %3100 = vmatprep.subr.bf16.mxu0 0
        %3101 = vmatpush1.bf16.msra.mxu0 %v3085
        %3102 = vmatprep.subr.bf16.mxu0 0
        %3103 = vmatpush1.bf16.msra.mxu0 %v3084
        %3104 = vmatprep.subr.bf16.mxu0 0
        %3105 = vmatpush1.bf16.msra.mxu0 %v3083
        %3106 = vmatprep.subr.bf16.mxu0 0
        %3107 = vmatpush1.bf16.msra.mxu0 %v3082
        %3108 = vmatprep.subr.bf16.mxu0 0
        %3109 = vmatpush1.bf16.msra.mxu0 %v3081
        %3110 = vmatprep.subr.bf16.mxu0 0
        %3111 = vmatpush1.bf16.msra.mxu0 %v3080
        %3112 = vmatprep.subr.bf16.mxu0 0
        %3113 = vmatpush2.bf16.msra.mxu0 0
        %3114 = vmatprep.subr.bf16.mxu0 0
        %3115 = vmatpush2.bf16.msra.mxu0 0
        %3116 = vmatprep.subr.bf16.mxu0 0
        %3117 = vmatpush2.bf16.msra.mxu0 0
        %3118 = vmatprep.subr.bf16.mxu0 0
        %3119 = vmatpush2.bf16.msra.mxu0 0
        %3120 = vmatprep.subr.bf16.mxu0 0
        %3121 = vmatpush2.bf16.msra.mxu0 0
        %3122 = vmatprep.subr.bf16.mxu0 0
        %3123 = vmatpush2.bf16.msra.mxu0 0
        %3124 = vmatprep.subr.bf16.mxu0 0
        %3125 = vmatpush2.bf16.msra.mxu0 0
        %3126 = vmatprep.subr.bf16.mxu0 0
        %3127 = vmatpush2.bf16.msra.mxu0 0
        %3128 = vmatprep.mubr.bf16.mxu0 0
        %3129 = vmatmul.mubr.bf16.gmra.mxu0 %v3009
        %v3130 = vpop.f32.mrf.mxu0
        %v3131 = vadd.f32 %v3046, %v3130
        %v3132 = vpop.f32.mrf.mxu0
        %v3133 = vpop.f32.mrf.mxu0
        %v3134 = vadd.f32 %v3046, %v3133
        %v3135 = vpop.f32.mrf.mxu0
        %3136 = vmatprep.mubr.bf16.mxu0 0
        %3137 = vmatmul.mubr.bf16.gmra.mxu0 %v3010
        %v3138 = vpop.f32.mrf.mxu0
        %v3139 = vadd.f32 %v3046, %v3138
        %v3140 = vpop.f32.mrf.mxu0
        %v3141 = vpop.f32.mrf.mxu0
        %v3142 = vadd.f32 %v3046, %v3141
        %v3143 = vpop.f32.mrf.mxu0
        %3144 = vmatprep.mubr.bf16.mxu0 0
        %3145 = vmatmul.mubr.bf16.gmra.mxu0 %v3011
        %v3146 = vpop.f32.mrf.mxu0
        %v3147 = vadd.f32 %v3046, %v3146
        %v3148 = vpop.f32.mrf.mxu0
        %v3149 = vpop.f32.mrf.mxu0
        %v3150 = vadd.f32 %v3046, %v3149
        %v3151 = vpop.f32.mrf.mxu0
        %3152 = vmatprep.mubr.bf16.mxu0 0
        %3153 = vmatmul.mubr.bf16.gmra.mxu0 %v3012
        %v3154 = vpop.f32.mrf.mxu0
        %v3155 = vadd.f32 %v3046, %v3154
        %v3156 = vpop.f32.mrf.mxu0
        %v3157 = vpop.f32.mrf.mxu0
        %v3158 = vadd.f32 %v3046, %v3157
        %v3159 = vpop.f32.mrf.mxu0
        %3160 = vmatprep.mubr.bf16.mxu0 0
        %3161 = vmatmul.mubr.bf16.gmra.mxu0 %v3013
        %v3162 = vpop.f32.mrf.mxu0
        %v3163 = vadd.f32 %v3046, %v3162
        %v3164 = vpop.f32.mrf.mxu0
        %v3165 = vpop.f32.mrf.mxu0
        %v3166 = vadd.f32 %v3046, %v3165
        %v3167 = vpop.f32.mrf.mxu0
        %3168 = vmatprep.mubr.bf16.mxu0 0
        %3169 = vmatmul.mubr.bf16.gmra.mxu0 %v3014
        %v3170 = vpop.f32.mrf.mxu0
        %v3171 = vadd.f32 %v3046, %v3170
        %v3172 = vpop.f32.mrf.mxu0
        %v3173 = vpop.f32.mrf.mxu0
        %v3174 = vadd.f32 %v3046, %v3173
        %v3175 = vpop.f32.mrf.mxu0
        %3176 = vmatprep.mubr.bf16.mxu0 0
        %3177 = vmatmul.mubr.bf16.gmra.mxu0 %v3015
        %v3178 = vpop.f32.mrf.mxu0
        %v3179 = vadd.f32 %v3046, %v3178
        %v3180 = vpop.f32.mrf.mxu0
        %v3181 = vpop.f32.mrf.mxu0
        %v3182 = vadd.f32 %v3046, %v3181
        %v3183 = vpop.f32.mrf.mxu0
        %3184 = vmatprep.mubr.bf16.mxu0 0
        %3185 = vmatmul.mubr.bf16.gmra.mxu0 %v3016
        %v3186 = vpop.f32.mrf.mxu0
        %v3187 = vadd.f32 %v3046, %v3186
        %v3188 = vpop.f32.mrf.mxu0
        %v3189 = vpop.f32.mrf.mxu0
        %v3190 = vadd.f32 %v3046, %v3189
        %v3191 = vpop.f32.mrf.mxu0
        %3192 = vmatprep.mubr.bf16.mxu0 0
        %3193 = vmatmul.mubr.bf16.gmra.mxu0 %v3017
        %v3194 = vpop.f32.mrf.mxu0
        %v3195 = vadd.f32 %v3046, %v3194
        %v3196 = vpop.f32.mrf.mxu0
        %v3197 = vpop.f32.mrf.mxu0
        %v3198 = vadd.f32 %v3046, %v3197
        %v3199 = vpop.f32.mrf.mxu0
        %3200 = vmatprep.mubr.bf16.mxu0 0
        %3201 = vmatmul.mubr.bf16.gmra.mxu0 %v3018
        %v3202 = vpop.f32.mrf.mxu0
        %v3203 = vadd.f32 %v3046, %v3202
        %v3204 = vpop.f32.mrf.mxu0
        %v3205 = vpop.f32.mrf.mxu0
        %v3206 = vadd.f32 %v3046, %v3205
        %v3207 = vpop.f32.mrf.mxu0
        %3208 = vmatprep.mubr.bf16.mxu0 0
        %3209 = vmatmul.mubr.bf16.gmra.mxu0 %v3019
        %v3210 = vpop.f32.mrf.mxu0
        %v3211 = vadd.f32 %v3046, %v3210
        %v3212 = vpop.f32.mrf.mxu0
        %v3213 = vpop.f32.mrf.mxu0
        %v3214 = vadd.f32 %v3046, %v3213
        %v3215 = vpop.f32.mrf.mxu0
        %3216 = vmatprep.mubr.bf16.mxu0 0
        %3217 = vmatmul.mubr.bf16.gmra.mxu0 %v3020
        %v3218 = vpop.f32.mrf.mxu0
        %v3219 = vadd.f32 %v3046, %v3218
        %v3220 = vpop.f32.mrf.mxu0
        %v3221 = vpop.f32.mrf.mxu0
        %v3222 = vadd.f32 %v3046, %v3221
        %v3223 = vpop.f32.mrf.mxu0
        %3224 = vmatprep.mubr.bf16.mxu0 0
        %3225 = vmatmul.mubr.bf16.gmra.mxu0 %v3021
        %v3226 = vpop.f32.mrf.mxu0
        %v3227 = vadd.f32 %v3046, %v3226
        %v3228 = vpop.f32.mrf.mxu0
        %v3229 = vpop.f32.mrf.mxu0
        %v3230 = vadd.f32 %v3046, %v3229
        %v3231 = vpop.f32.mrf.mxu0
        %3232 = vmatprep.mubr.bf16.mxu0 0
        %3233 = vmatmul.mubr.bf16.gmra.mxu0 %v3022
        %v3234 = vpop.f32.mrf.mxu0
        %v3235 = vadd.f32 %v3046, %v3234
        %v3236 = vpop.f32.mrf.mxu0
        %v3237 = vpop.f32.mrf.mxu0
        %v3238 = vadd.f32 %v3046, %v3237
        %v3239 = vpop.f32.mrf.mxu0
        %3240 = vmatprep.mubr.bf16.mxu0 0
        %3241 = vmatmul.mubr.bf16.gmra.mxu0 %v3023
        %v3242 = vpop.f32.mrf.mxu0
        %v3243 = vadd.f32 %v3046, %v3242
        %v3244 = vpop.f32.mrf.mxu0
        %v3245 = vpop.f32.mrf.mxu0
        %v3246 = vadd.f32 %v3046, %v3245
        %v3247 = vpop.f32.mrf.mxu0
        %3248 = vmatprep.mubr.bf16.mxu0 0
        %3249 = vmatmul.mubr.bf16.gmra.mxu0 %v3024
        %v3250 = vpop.f32.mrf.mxu0
        %v3251 = vadd.f32 %v3046, %v3250
        %v3252 = vpop.f32.mrf.mxu0
        %v3253 = vpop.f32.mrf.mxu0
        %v3254 = vadd.f32 %v3046, %v3253
        %v3255 = vpop.f32.mrf.mxu0
        %3256 = vdwg.mxu0
        %v3257 = vadd.f32 %v3131, %v2546
        %v3258 = vadd.f32 %v3134, %v2547
        %v3259 = vadd.f32 %v3139, %v2548
        %v3260 = vadd.f32 %v3142, %v2549
        %v3261 = vadd.f32 %v3147, %v2550
        %v3262 = vadd.f32 %v3150, %v2551
        %v3263 = vadd.f32 %v3155, %v2552
        %v3264 = vadd.f32 %v3158, %v2553
        %v3265 = vadd.f32 %v3163, %v2554
        %v3266 = vadd.f32 %v3166, %v2555
        %v3267 = vadd.f32 %v3171, %v2556
        %v3268 = vadd.f32 %v3174, %v2557
        %v3269 = vadd.f32 %v3179, %v2558
        %v3270 = vadd.f32 %v3182, %v2559
        %v3271 = vadd.f32 %v3187, %v2560
        %v3272 = vadd.f32 %v3190, %v2561
        %v3273 = vadd.f32 %v3195, %v2562
        %v3274 = vadd.f32 %v3198, %v2563
        %v3275 = vadd.f32 %v3203, %v2564
        %v3276 = vadd.f32 %v3206, %v2565
        %v3277 = vadd.f32 %v3211, %v2566
        %v3278 = vadd.f32 %v3214, %v2567
        %v3279 = vadd.f32 %v3219, %v2568
        %v3280 = vadd.f32 %v3222, %v2569
        %v3281 = vadd.f32 %v3227, %v2570
        %v3282 = vadd.f32 %v3230, %v2571
        %v3283 = vadd.f32 %v3235, %v2572
        %v3284 = vadd.f32 %v3238, %v2573
        %v3285 = vadd.f32 %v3243, %v2574
        %v3286 = vadd.f32 %v3246, %v2575
        %v3287 = vadd.f32 %v3251, %v2576
        %v3288 = vadd.f32 %v3254, %v2577
        %v3289 = vmul.f32 %v3257, %v3257
        %v3290 = vmul.f32 %v3258, %v3258
        %v3291 = vmul.f32 %v3259, %v3259
        %v3292 = vmul.f32 %v3260, %v3260
        %v3293 = vmul.f32 %v3261, %v3261
        %v3294 = vmul.f32 %v3262, %v3262
        %v3295 = vmul.f32 %v3263, %v3263
        %v3296 = vmul.f32 %v3264, %v3264
        %v3297 = vmul.f32 %v3265, %v3265
        %v3298 = vmul.f32 %v3266, %v3266
        %v3299 = vmul.f32 %v3267, %v3267
        %v3300 = vmul.f32 %v3268, %v3268
        %v3301 = vmul.f32 %v3269, %v3269
        %v3302 = vmul.f32 %v3270, %v3270
        %v3303 = vmul.f32 %v3271, %v3271
        %v3304 = vmul.f32 %v3272, %v3272
        %v3305 = vmul.f32 %v3273, %v3273
        %v3306 = vmul.f32 %v3274, %v3274
        %v3307 = vmul.f32 %v3275, %v3275
        %v3308 = vmul.f32 %v3276, %v3276
        %v3309 = vmul.f32 %v3277, %v3277
        %v3310 = vmul.f32 %v3278, %v3278
        %v3311 = vmul.f32 %v3279, %v3279
        %v3312 = vmul.f32 %v3280, %v3280
        %v3313 = vmul.f32 %v3281, %v3281
        %v3314 = vmul.f32 %v3282, %v3282
        %v3315 = vmul.f32 %v3283, %v3283
        %v3316 = vmul.f32 %v3284, %v3284
        %v3317 = vmul.f32 %v3285, %v3285
        %v3318 = vmul.f32 %v3286, %v3286
        %v3319 = vmul.f32 %v3287, %v3287
        %v3320 = vmul.f32 %v3288, %v3288
        %v3321 = vmul.f32 %v3257, %v3289
        %v3322 = vmul.f32 %v3258, %v3290
        %v3323 = vmul.f32 %v3259, %v3291
        %v3324 = vmul.f32 %v3260, %v3292
        %v3325 = vmul.f32 %v3261, %v3293
        %v3326 = vmul.f32 %v3262, %v3294
        %v3327 = vmul.f32 %v3263, %v3295
        %v3328 = vmul.f32 %v3264, %v3296
        %v3329 = vmul.f32 %v3265, %v3297
        %v3330 = vmul.f32 %v3266, %v3298
        %v3331 = vmul.f32 %v3267, %v3299
        %v3332 = vmul.f32 %v3268, %v3300
        %v3333 = vmul.f32 %v3269, %v3301
        %v3334 = vmul.f32 %v3270, %v3302
        %v3335 = vmul.f32 %v3271, %v3303
        %v3336 = vmul.f32 %v3272, %v3304
        %v3337 = vmul.f32 %v3273, %v3305
        %v3338 = vmul.f32 %v3274, %v3306
        %v3339 = vmul.f32 %v3275, %v3307
        %v3340 = vmul.f32 %v3276, %v3308
        %v3341 = vmul.f32 %v3277, %v3309
        %v3342 = vmul.f32 %v3278, %v3310
        %v3343 = vmul.f32 %v3279, %v3311
        %v3344 = vmul.f32 %v3280, %v3312
        %v3345 = vmul.f32 %v3281, %v3313
        %v3346 = vmul.f32 %v3282, %v3314
        %v3347 = vmul.f32 %v3283, %v3315
        %v3348 = vmul.f32 %v3284, %v3316
        %v3349 = vmul.f32 %v3285, %v3317
        %v3350 = vmul.f32 %v3286, %v3318
        %v3351 = vmul.f32 %v3287, %v3319
        %v3352 = vmul.f32 %v3288, %v3320
        %v3353 = vmul.f32 %v3321, 0.044715
        %v3354 = vmul.f32 %v3322, 0.044715
        %v3355 = vmul.f32 %v3323, 0.044715
        %v3356 = vmul.f32 %v3324, 0.044715
        %v3357 = vmul.f32 %v3325, 0.044715
        %v3358 = vmul.f32 %v3326, 0.044715
        %v3359 = vmul.f32 %v3327, 0.044715
        %v3360 = vmul.f32 %v3328, 0.044715
        %v3361 = vmul.f32 %v3329, 0.044715
        %v3362 = vmul.f32 %v3330, 0.044715
        %v3363 = vmul.f32 %v3331, 0.044715
        %v3364 = vmul.f32 %v3332, 0.044715
        %v3365 = vmul.f32 %v3333, 0.044715
        %v3366 = vmul.f32 %v3334, 0.044715
        %v3367 = vmul.f32 %v3335, 0.044715
        %v3368 = vmul.f32 %v3336, 0.044715
        %v3369 = vmul.f32 %v3337, 0.044715
        %v3370 = vmul.f32 %v3338, 0.044715
        %v3371 = vmul.f32 %v3339, 0.044715
        %v3372 = vmul.f32 %v3340, 0.044715
        %v3373 = vmul.f32 %v3341, 0.044715
        %v3374 = vmul.f32 %v3342, 0.044715
        %v3375 = vmul.f32 %v3343, 0.044715
        %v3376 = vmul.f32 %v3344, 0.044715
        %v3377 = vmul.f32 %v3345, 0.044715
        %v3378 = vmul.f32 %v3346, 0.044715
        %v3379 = vmul.f32 %v3347, 0.044715
        %v3380 = vmul.f32 %v3348, 0.044715
        %v3381 = vmul.f32 %v3349, 0.044715
        %v3382 = vmul.f32 %v3350, 0.044715
        %v3383 = vmul.f32 %v3351, 0.044715
        %v3384 = vmul.f32 %v3352, 0.044715
        %v3385 = vadd.f32 %v3257, %v3353
        %v3386 = vadd.f32 %v3258, %v3354
        %v3387 = vadd.f32 %v3259, %v3355
        %v3388 = vadd.f32 %v3260, %v3356
        %v3389 = vadd.f32 %v3261, %v3357
        %v3390 = vadd.f32 %v3262, %v3358
        %v3391 = vadd.f32 %v3263, %v3359
        %v3392 = vadd.f32 %v3264, %v3360
        %v3393 = vadd.f32 %v3265, %v3361
        %v3394 = vadd.f32 %v3266, %v3362
        %v3395 = vadd.f32 %v3267, %v3363
        %v3396 = vadd.f32 %v3268, %v3364
        %v3397 = vadd.f32 %v3269, %v3365
        %v3398 = vadd.f32 %v3270, %v3366
        %v3399 = vadd.f32 %v3271, %v3367
        %v3400 = vadd.f32 %v3272, %v3368
        %v3401 = vadd.f32 %v3273, %v3369
        %v3402 = vadd.f32 %v3274, %v3370
        %v3403 = vadd.f32 %v3275, %v3371
        %v3404 = vadd.f32 %v3276, %v3372
        %v3405 = vadd.f32 %v3277, %v3373
        %v3406 = vadd.f32 %v3278, %v3374
        %v3407 = vadd.f32 %v3279, %v3375
        %v3408 = vadd.f32 %v3280, %v3376
        %v3409 = vadd.f32 %v3281, %v3377
        %v3410 = vadd.f32 %v3282, %v3378
        %v3411 = vadd.f32 %v3283, %v3379
        %v3412 = vadd.f32 %v3284, %v3380
        %v3413 = vadd.f32 %v3285, %v3381
        %v3414 = vadd.f32 %v3286, %v3382
        %v3415 = vadd.f32 %v3287, %v3383
        %v3416 = vadd.f32 %v3288, %v3384
        %v3417 = vmul.f32 %v3385, 0.7978846
        %v3418 = vmul.f32 %v3386, 0.7978846
        %v3419 = vmul.f32 %v3387, 0.7978846
        %v3420 = vmul.f32 %v3388, 0.7978846
        %v3421 = vmul.f32 %v3389, 0.7978846
        %v3422 = vmul.f32 %v3390, 0.7978846
        %v3423 = vmul.f32 %v3391, 0.7978846
        %v3424 = vmul.f32 %v3392, 0.7978846
        %v3425 = vmul.f32 %v3393, 0.7978846
        %v3426 = vmul.f32 %v3394, 0.7978846
        %v3427 = vmul.f32 %v3395, 0.7978846
        %v3428 = vmul.f32 %v3396, 0.7978846
        %v3429 = vmul.f32 %v3397, 0.7978846
        %v3430 = vmul.f32 %v3398, 0.7978846
        %v3431 = vmul.f32 %v3399, 0.7978846
        %v3432 = vmul.f32 %v3400, 0.7978846
        %v3433 = vmul.f32 %v3401, 0.7978846
        %v3434 = vmul.f32 %v3402, 0.7978846
        %v3435 = vmul.f32 %v3403, 0.7978846
        %v3436 = vmul.f32 %v3404, 0.7978846
        %v3437 = vmul.f32 %v3405, 0.7978846
        %v3438 = vmul.f32 %v3406, 0.7978846
        %v3439 = vmul.f32 %v3407, 0.7978846
        %v3440 = vmul.f32 %v3408, 0.7978846
        %v3441 = vmul.f32 %v3409, 0.7978846
        %v3442 = vmul.f32 %v3410, 0.7978846
        %v3443 = vmul.f32 %v3411, 0.7978846
        %v3444 = vmul.f32 %v3412, 0.7978846
        %v3445 = vmul.f32 %v3413, 0.7978846
        %v3446 = vmul.f32 %v3414, 0.7978846
        %v3447 = vmul.f32 %v3415, 0.7978846
        %v3448 = vmul.f32 %v3416, 0.7978846
        %v3449 = vtanh.pop %v3417
        %v3450 = vtanh.pop %v3418
        %v3451 = vtanh.pop %v3419
        %v3452 = vtanh.pop %v3420
        %v3453 = vtanh.pop %v3421
        %v3454 = vtanh.pop %v3422
        %v3455 = vtanh.pop %v3423
        %v3456 = vtanh.pop %v3424
        %v3457 = vtanh.pop %v3425
        %v3458 = vtanh.pop %v3426
        %v3459 = vtanh.pop %v3427
        %v3460 = vtanh.pop %v3428
        %v3461 = vtanh.pop %v3429
        %v3462 = vtanh.pop %v3430
        %v3463 = vtanh.pop %v3431
        %v3464 = vtanh.pop %v3432
        %v3465 = vtanh.pop %v3433
        %v3466 = vtanh.pop %v3434
        %v3467 = vtanh.pop %v3435
        %v3468 = vtanh.pop %v3436
        %v3469 = vtanh.pop %v3437
        %v3470 = vtanh.pop %v3438
        %v3471 = vtanh.pop %v3439
        %v3472 = vtanh.pop %v3440
        %v3473 = vtanh.pop %v3441
        %v3474 = vtanh.pop %v3442
        %v3475 = vtanh.pop %v3443
        %v3476 = vtanh.pop %v3444
        %v3477 = vtanh.pop %v3445
        %v3478 = vtanh.pop %v3446
        %v3479 = vtanh.pop %v3447
        %v3480 = vtanh.pop %v3448
        %v3481 = vadd.f32 %v3449, 1.0
        %v3482 = vadd.f32 %v3450, 1.0
        %v3483 = vadd.f32 %v3451, 1.0
        %v3484 = vadd.f32 %v3452, 1.0
        %v3485 = vadd.f32 %v3453, 1.0
        %v3486 = vadd.f32 %v3454, 1.0
        %v3487 = vadd.f32 %v3455, 1.0
        %v3488 = vadd.f32 %v3456, 1.0
        %v3489 = vadd.f32 %v3457, 1.0
        %v3490 = vadd.f32 %v3458, 1.0
        %v3491 = vadd.f32 %v3459, 1.0
        %v3492 = vadd.f32 %v3460, 1.0
        %v3493 = vadd.f32 %v3461, 1.0
        %v3494 = vadd.f32 %v3462, 1.0
        %v3495 = vadd.f32 %v3463, 1.0
        %v3496 = vadd.f32 %v3464, 1.0
        %v3497 = vadd.f32 %v3465, 1.0
        %v3498 = vadd.f32 %v3466, 1.0
        %v3499 = vadd.f32 %v3467, 1.0
        %v3500 = vadd.f32 %v3468, 1.0
        %v3501 = vadd.f32 %v3469, 1.0
        %v3502 = vadd.f32 %v3470, 1.0
        %v3503 = vadd.f32 %v3471, 1.0
        %v3504 = vadd.f32 %v3472, 1.0
        %v3505 = vadd.f32 %v3473, 1.0
        %v3506 = vadd.f32 %v3474, 1.0
        %v3507 = vadd.f32 %v3475, 1.0
        %v3508 = vadd.f32 %v3476, 1.0
        %v3509 = vadd.f32 %v3477, 1.0
        %v3510 = vadd.f32 %v3478, 1.0
        %v3511 = vadd.f32 %v3479, 1.0
        %v3512 = vadd.f32 %v3480, 1.0
        %v3513 = vmul.f32 %v3481, 0.5
        %v3514 = vmul.f32 %v3482, 0.5
        %v3515 = vmul.f32 %v3483, 0.5
        %v3516 = vmul.f32 %v3484, 0.5
        %v3517 = vmul.f32 %v3485, 0.5
        %v3518 = vmul.f32 %v3486, 0.5
        %v3519 = vmul.f32 %v3487, 0.5
        %v3520 = vmul.f32 %v3488, 0.5
        %v3521 = vmul.f32 %v3489, 0.5
        %v3522 = vmul.f32 %v3490, 0.5
        %v3523 = vmul.f32 %v3491, 0.5
        %v3524 = vmul.f32 %v3492, 0.5
        %v3525 = vmul.f32 %v3493, 0.5
        %v3526 = vmul.f32 %v3494, 0.5
        %v3527 = vmul.f32 %v3495, 0.5
        %v3528 = vmul.f32 %v3496, 0.5
        %v3529 = vmul.f32 %v3497, 0.5
        %v3530 = vmul.f32 %v3498, 0.5
        %v3531 = vmul.f32 %v3499, 0.5
        %v3532 = vmul.f32 %v3500, 0.5
        %v3533 = vmul.f32 %v3501, 0.5
        %v3534 = vmul.f32 %v3502, 0.5
        %v3535 = vmul.f32 %v3503, 0.5
        %v3536 = vmul.f32 %v3504, 0.5
        %v3537 = vmul.f32 %v3505, 0.5
        %v3538 = vmul.f32 %v3506, 0.5
        %v3539 = vmul.f32 %v3507, 0.5
        %v3540 = vmul.f32 %v3508, 0.5
        %v3541 = vmul.f32 %v3509, 0.5
        %v3542 = vmul.f32 %v3510, 0.5
        %v3543 = vmul.f32 %v3511, 0.5
        %v3544 = vmul.f32 %v3512, 0.5
        %v3545 = vmul.f32 %v3257, %v3513
        %v3546 = vmul.f32 %v3258, %v3514
        %v3547 = vmul.f32 %v3259, %v3515
        %v3548 = vmul.f32 %v3260, %v3516
        %v3549 = vmul.f32 %v3261, %v3517
        %v3550 = vmul.f32 %v3262, %v3518
        %v3551 = vmul.f32 %v3263, %v3519
        %v3552 = vmul.f32 %v3264, %v3520
        %v3553 = vmul.f32 %v3265, %v3521
        %v3554 = vmul.f32 %v3266, %v3522
        %v3555 = vmul.f32 %v3267, %v3523
        %v3556 = vmul.f32 %v3268, %v3524
        %v3557 = vmul.f32 %v3269, %v3525
        %v3558 = vmul.f32 %v3270, %v3526
        %v3559 = vmul.f32 %v3271, %v3527
        %v3560 = vmul.f32 %v3272, %v3528
        %v3561 = vmul.f32 %v3273, %v3529
        %v3562 = vmul.f32 %v3274, %v3530
        %v3563 = vmul.f32 %v3275, %v3531
        %v3564 = vmul.f32 %v3276, %v3532
        %v3565 = vmul.f32 %v3277, %v3533
        %v3566 = vmul.f32 %v3278, %v3534
        %v3567 = vmul.f32 %v3279, %v3535
        %v3568 = vmul.f32 %v3280, %v3536
        %v3569 = vmul.f32 %v3281, %v3537
        %v3570 = vmul.f32 %v3282, %v3538
        %v3571 = vmul.f32 %v3283, %v3539
        %v3572 = vmul.f32 %v3284, %v3540
        %v3573 = vmul.f32 %v3285, %v3541
        %v3574 = vmul.f32 %v3286, %v3542
        %v3575 = vmul.f32 %v3287, %v3543
        %v3576 = vmul.f32 %v3288, %v3544
        %3577 = vst [vmem:[%s421] sm:$0xff] %v3545
        %3578 = vst [vmem:[%s421 + $0x8] sm:$0xff] %v3546
        %3579 = vst [vmem:[%s421 + $0x10] sm:$0xff] %v3547
        %3580 = vst [vmem:[%s421 + $0x18] sm:$0xff] %v3548
        %3581 = vst [vmem:[%s421 + $0x20] sm:$0xff] %v3549
        %3582 = vst [vmem:[%s421 + $0x28] sm:$0xff] %v3550
        %3583 = vst [vmem:[%s421 + $0x30] sm:$0xff] %v3551
        %3584 = vst [vmem:[%s421 + $0x38] sm:$0xff] %v3552
        %3585 = vst [vmem:[%s421 + $0x40] sm:$0xff] %v3553
        %3586 = vst [vmem:[%s421 + $0x48] sm:$0xff] %v3554
        %3587 = vst [vmem:[%s421 + $0x50] sm:$0xff] %v3555
        %3588 = vst [vmem:[%s421 + $0x58] sm:$0xff] %v3556
        %3589 = vst [vmem:[%s421 + $0x60] sm:$0xff] %v3557
        %3590 = vst [vmem:[%s421 + $0x68] sm:$0xff] %v3558
        %3591 = vst [vmem:[%s421 + $0x70] sm:$0xff] %v3559
        %3592 = vst [vmem:[%s421 + $0x78] sm:$0xff] %v3560
        %3593 = vst [vmem:[%s421 + $0x80] sm:$0xff] %v3561
        %3594 = vst [vmem:[%s421 + $0x88] sm:$0xff] %v3562
        %3595 = vst [vmem:[%s421 + $0x90] sm:$0xff] %v3563
        %3596 = vst [vmem:[%s421 + $0x98] sm:$0xff] %v3564
        %3597 = vst [vmem:[%s421 + $0xa0] sm:$0xff] %v3565
        %3598 = vst [vmem:[%s421 + $0xa8] sm:$0xff] %v3566
        %3599 = vst [vmem:[%s421 + $0xb0] sm:$0xff] %v3567
        %3600 = vst [vmem:[%s421 + $0xb8] sm:$0xff] %v3568
        %3601 = vst [vmem:[%s421 + $0xc0] sm:$0xff] %v3569
        %3602 = vst [vmem:[%s421 + $0xc8] sm:$0xff] %v3570
        %3603 = vst [vmem:[%s421 + $0xd0] sm:$0xff] %v3571
        %3604 = vst [vmem:[%s421 + $0xd8] sm:$0xff] %v3572
        %3605 = vst [vmem:[%s421 + $0xe0] sm:$0xff] %v3573
        %3606 = vst [vmem:[%s421 + $0xe8] sm:$0xff] %v3574
        %3607 = vst [vmem:[%s421 + $0xf0] sm:$0xff] %v3575
        %3608 = vst [vmem:[%s421 + $0xf8] sm:$0xff] %v3576
        %s3609 = sand.u32 %s255, 1
        %s3610 = scalar_lea.sflag [#allocation5], %s3609
        %s3611 = sand.u32 %s255, 1
        %s3612 = smul.addr %s3611, 256
        %s3613 = scalar_lea.vmem [#allocation8], %s3612
        // Predicated region
        $region76: #{tpu_custom_call.1} parent=55 // pred_check
          %p3614 = pneg %p265
        $region77: #{tpu_custom_call.1} parent=55 // pred_check_branch
          %3616 = sbr.rel (%p3614) target = $region79
        $region78: #{tpu_custom_call.1} parent=55 // pred_region
          %s3617 = smul.u32 32, %s34
          %s3619 = ssub.s32 4096, 4096
          %3620 = vsyncadd %s3610, %s3619
          %s3621 = smul.addr %s33, 64
          %s3622 = sadd.s32 %s3617, %s3621
          %s3623 = smul.addr %s3622, 128
          %s3624 = scalar_lea.hbm %s9, %s3623
          %s3625 = sshll.u32 %s3613, 4
          %s3626 = int_to_ptr.vmem [resolvable:$true] %s3625
          %3631 = dma.vmem_to_hbm [thread:$0]  %s3626, 4096, %s3624, %s3610, 128, 128, 8
        $region79: #{tpu_custom_call.1} parent=55 // pred_fallthru
          _
      $region56: #{tpu_custom_call.1} parent=5 // pred_fallthru
        _
      %p3632 = scmp.le.s32.totalorder 2, %s24
      // Predicated region
      $region80: #{tpu_custom_call.1} parent=5 // pred_check
        %p3633 = pneg %p3632
      $region81: #{tpu_custom_call.1} parent=5 // pred_check_branch
        %3635 = sbr.rel (%p3633) target = $region83
      $region82: #{tpu_custom_call.1} parent=5 // pred_region
        %s3636 = ssub.s32 %s24, 2
        // Predicated region
        $region84: #{tpu_custom_call.1} parent=82 // pred_check
          %p3637 = pneg %p271
        $region85: #{tpu_custom_call.1} parent=82 // pred_check_branch
          %3639 = sbr.rel (%p3637) target = $region87
        $region86: #{tpu_custom_call.1} parent=82 // pred_region
          %s3640 = sand.u32 %s256, 1
          %s3641 = scalar_lea.sflag [#allocation5], %s3640
          %s3642 = sand.u32 %s256, 1
          %s3643 = smul.addr %s3642, 256
          %s3644 = scalar_lea.vmem [#allocation8], %s3643
          %3645 = dma.done %s3641, 4096
        $region87: #{tpu_custom_call.1} parent=82 // pred_fallthru
          _
      $region83: #{tpu_custom_call.1} parent=5 // pred_fallthru
        _
    $region6: #{tpu_custom_call.1} parent=1 // loop_footer
      %s28 = sadd.s32 1, %s24
    $region7: #{tpu_custom_call.1} parent=1 // loop_footer_branch
      %23 = sbr.rel target = $region3
    $region8: #{tpu_custom_call.1} parent=1 // loop_exit
      _
    %3646 = vsyncpa [#allocation4], 1
    %s3647 = scalar_lea.sflag [#allocation4], 1
    %3648 = vsyncpa %s3647, 1
    %3649 = vsyncpa [#allocation7], 1
    %s3650 = scalar_lea.sflag [#allocation7], 1
    %3651 = vsyncpa %s3650, 1
    %3652 = vsyncpa [#allocation5], 1
    %s3653 = scalar_lea.sflag [#allocation5], 1
    %3654 = vsyncpa %s3653, 1

</llo_original>
